<compile_context>
chip_gen: v7x
topology: tpu7x:2x2x1
jax: 0.10.0
libtpu: 0.0.40
codegen_flags: <defaults>
</compile_context>

<pallas_src>
import jax
import jax.numpy as jnp
from jax.experimental import pallas as pl
from jax.experimental.pallas import tpu as pltpu

# ---- model hyperparameters (match L_05.__init__ / chosen small input) ----
INPUT_SIZE = 4
HID = 48
NGATE = 4                      # PyTorch gate order (i, f, g, o)
G = NGATE * HID                # 192 packed gate columns (PyTorch layout)
GP = 128                       # lane-aligned gate pitch inside the kernel
G_PAD = NGATE * GP             # 512 = padded gate width (gate k at lanes [128k,128k+48))
NFC = 12
SEQ_LEN = 16                   # seq > 1 so both torch.squeeze(·, 0) are no-ops

# ---- bf16 gate-weight blob rows (width G_PAD) ----
R_WIH = 0                      # (INPUT_SIZE, G_PAD)  = Wih^T, gate-padded
R_WHH = 8                      # (HID, G_PAD)         = Whh^T, gate-padded
WG_ROWS = R_WHH + HID          # 56

# ---- f32 FC-parameter blob rows (width 128) ----
R_FC1W = 0                     # (HID, NFC) = fc1_w^T       (cols 0:NFC)
R_FC1B = R_FC1W + HID          # (1, NFC)   = fc1_b
R_FC2W = R_FC1B + 1            # (1, NFC)   = fc2_w (row)
R_FC2B = R_FC2W + 1            # (1, 1)     = fc2_b
FC_ROWS = 56


def l05_kernel(x_ref, wg_ref, bias_ref, fcp_ref, out_ref, gx_ref, hseq_ref):
    x = x_ref[...].astype(jnp.bfloat16)                      # (L, IN)
    wih_t = wg_ref[R_WIH:R_WIH + INPUT_SIZE, :]              # (IN, 512) bf16
    whh_t = wg_ref[R_WHH:R_WHH + HID, :]                     # (H, 512) bf16
    bias = bias_ref[...]                                     # (1, 512) f32, gate-padded

    # --- hoisted input-to-hidden projection for all steps, parked in VMEM scratch ---
    gx_ref[...] = jnp.dot(x, wih_t, preferred_element_type=jnp.float32) + bias  # (L,512)

    # --- LSTM recurrence, fully statically unrolled (h0 = c0 = 0); state kept f32 ---
    h = jnp.zeros((1, HID), jnp.float32)
    c = jnp.zeros((1, HID), jnp.float32)
    for t in range(SEQ_LEN):
        rec = jnp.dot(h.astype(jnp.bfloat16), whh_t,
                      preferred_element_type=jnp.float32)    # (1, 512), single bf16 pass
        gates = gx_ref[t:t + 1, :] + rec                     # (1, 512)
        # vreg-aligned gate slices; EUP only where needed per gate.
        i = jax.nn.sigmoid(gates[:, 0 * GP:0 * GP + HID])
        f = jax.nn.sigmoid(gates[:, 1 * GP:1 * GP + HID])
        g = jnp.tanh(gates[:, 2 * GP:2 * GP + HID])
        o = jax.nn.sigmoid(gates[:, 3 * GP:3 * GP + HID])
        c = f * c + i * g
        h = o * jnp.tanh(c)
        hseq_ref[t:t + 1, :] = h                             # bound live ranges

    # --- batched relu -> fc1 -> relu -> fc2 epilogue over all time steps ---
    hseq = hseq_ref[...]                                     # (L, H)
    fc1_wt = fcp_ref[R_FC1W:R_FC1W + HID, 0:NFC]             # (H, 12)
    fc1_b = fcp_ref[R_FC1B:R_FC1B + 1, 0:NFC]                # (1, 12)
    fc2_w = fcp_ref[R_FC2W:R_FC2W + 1, 0:NFC]                # (1, 12)
    fc2_b = fcp_ref[R_FC2B:R_FC2B + 1, 0:1]                  # (1, 1)

    y = jnp.maximum(hseq, 0.0)
    y = jnp.dot(y, fc1_wt, preferred_element_type=jnp.float32) + fc1_b    # (L, 12)
    y = jnp.maximum(y, 0.0)
    y = jnp.sum(y * fc2_w, axis=-1, keepdims=True) + fc2_b                # (L, 1)
    out_ref[...] = y


def init_params(key):
    """Deterministic synthetic params in PyTorch layouts."""
    ks = jax.random.split(key, 8)
    s = 0.1
    p = {}
    p["w_ih"] = s * jax.random.normal(ks[0], (4 * HID, INPUT_SIZE), jnp.float32)
    p["w_hh"] = s * jax.random.normal(ks[1], (4 * HID, HID), jnp.float32)
    p["b_ih"] = s * jax.random.normal(ks[2], (4 * HID,), jnp.float32)
    p["b_hh"] = s * jax.random.normal(ks[3], (4 * HID,), jnp.float32)
    p["fc1_w"] = s * jax.random.normal(ks[4], (NFC, HID), jnp.float32)
    p["fc1_b"] = s * jax.random.normal(ks[5], (NFC,), jnp.float32)
    p["fc2_w"] = s * jax.random.normal(ks[6], (1, NFC), jnp.float32)
    p["fc2_b"] = s * jax.random.normal(ks[7], (1,), jnp.float32)
    return p


def _gate_pad(m):
    """(rows, 4*HID) PyTorch gate-packed -> (rows, G_PAD), gate k at lanes [128k,128k+48)."""
    out = jnp.zeros((m.shape[0], G_PAD), m.dtype)
    for k in range(NGATE):
        out = out.at[:, k * GP:k * GP + HID].set(m[:, k * HID:(k + 1) * HID])
    return out


def pack_params(p):
    """Pack parameters: bf16 gate-weight blob, f32 gate-padded bias, f32 FC blob."""
    wg = jnp.zeros((WG_ROWS, G_PAD), jnp.float32)
    wg = wg.at[R_WIH:R_WIH + INPUT_SIZE, :].set(_gate_pad(p["w_ih"].T))
    wg = wg.at[R_WHH:R_WHH + HID, :].set(_gate_pad(p["w_hh"].T))
    wg = wg.astype(jnp.bfloat16)

    bias = _gate_pad((p["b_ih"] + p["b_hh"]).reshape(1, G)).astype(jnp.float32)  # (1,512)

    fcp = jnp.zeros((FC_ROWS, GP), jnp.float32)
    fcp = fcp.at[R_FC1W:R_FC1W + HID, 0:NFC].set(p["fc1_w"].T)
    fcp = fcp.at[R_FC1B, 0:NFC].set(p["fc1_b"])
    fcp = fcp.at[R_FC2W, 0:NFC].set(p["fc2_w"][0])
    fcp = fcp.at[R_FC2B, 0].set(p["fc2_b"][0])
    return wg, bias, fcp


def l05_forward(x, p):
    """x: (SEQ_LEN, INPUT_SIZE), exactly like the PyTorch module's input."""
    wg, bias, fcp = pack_params(p)
    vmem = pl.BlockSpec(memory_space=pltpu.MemorySpace.VMEM)
    y = pl.pallas_call(
        l05_kernel,
        out_shape=jax.ShapeDtypeStruct((SEQ_LEN, 1), jnp.float32),
        in_specs=[vmem, vmem, vmem, vmem],
        out_specs=vmem,
        scratch_shapes=[
            pltpu.VMEM((SEQ_LEN, G_PAD), jnp.float32),   # gx: hoisted x @ Wih^T + bias
            pltpu.VMEM((SEQ_LEN, HID), jnp.float32),     # collected hidden states
        ],
    )(x, wg, bias, fcp)
    # PyTorch output after the two squeezes (seq>1): (seq, 1, 1)
    return y.reshape(SEQ_LEN, 1, 1)


def reference_forward(x, p):
    """Pure-JAX f32 reference mirroring the PyTorch forward."""
    h = c = jnp.zeros((1, HID), jnp.float32)
    outs = []
    for t in range(SEQ_LEN):
        g = (x[t:t + 1] @ p["w_ih"].T + h @ p["w_hh"].T
             + p["b_ih"] + p["b_hh"])
        i, f, gg, o = jnp.split(g, 4, axis=-1)
        c = jax.nn.sigmoid(f) * c + jax.nn.sigmoid(i) * jnp.tanh(gg)
        h = jax.nn.sigmoid(o) * jnp.tanh(c)
        outs.append(h)
    hs = jnp.stack(outs, axis=0)                       # (L, 1, H)
    y = jax.nn.relu(hs)
    y = jax.nn.relu(y @ p["fc1_w"].T + p["fc1_b"])
    y = y @ p["fc2_w"].T + p["fc2_b"]                  # (L, 1, 1)
    return y


if __name__ == "__main__":
    key = jax.random.PRNGKey(0)
    k_x, k_p = jax.random.split(key)
    # LSTM input with implicit batch=1 (the module's unsqueeze(1)): x is (seq, input)
    x = jax.random.normal(k_x, (SEQ_LEN, INPUT_SIZE), jnp.float32)
    params = init_params(k_p)

    out = l05_forward(x, params)
    out = jax.block_until_ready(out)

    ref = reference_forward(x, params)
    assert out.shape == (SEQ_LEN, 1, 1), out.shape
    # bf16 MXU operands in the recurrence => slightly relaxed tolerance vs f32 reference.
    assert jnp.allclose(out, ref, atol=2e-3, rtol=2e-3), (out, ref)
    print("KERNEL_OK")
</pallas_src>

<mosaic_0001>
module attributes {stable_mosaic.version = 11 : i64} {
  func.func @l05_kernel(%arg0: memref<16x4xf32, #tpu.memory_space<vmem>>, %arg1: memref<56x512xbf16, #tpu.memory_space<vmem>>, %arg2: memref<1x512xf32, #tpu.memory_space<vmem>>, %arg3: memref<56x128xf32, #tpu.memory_space<vmem>>, %arg4: memref<16x1xf32, #tpu.memory_space<vmem>>, %arg5: memref<16x512xf32, #tpu.memory_space<vmem>>, %arg6: memref<16x48xf32, #tpu.memory_space<vmem>>) attributes {dimension_semantics = [], scalar_prefetch = 0 : i64, scratch_operands = 2 : i64, tpu.core_type = #tpu.core_type<tc>} {
    %c0 = arith.constant 0 : index
    %c0_0 = arith.constant 0 : index
    %0 = vector.load %arg0[%c0, %c0_0] : memref<16x4xf32, #tpu.memory_space<vmem>>, vector<16x4xf32>
    %1 = arith.truncf %0 : vector<16x4xf32> to vector<16x4xbf16>
    %c0_1 = arith.constant 0 : index
    %c0_2 = arith.constant 0 : index
    %2 = vector.load %arg1[%c0_1, %c0_2] : memref<56x512xbf16, #tpu.memory_space<vmem>>, vector<4x512xbf16>
    %c8 = arith.constant 8 : index
    %c0_3 = arith.constant 0 : index
    %3 = vector.load %arg1[%c8, %c0_3] : memref<56x512xbf16, #tpu.memory_space<vmem>>, vector<48x512xbf16>
    %c0_4 = arith.constant 0 : index
    %c0_5 = arith.constant 0 : index
    %4 = vector.load %arg2[%c0_4, %c0_5] : memref<1x512xf32, #tpu.memory_space<vmem>>, vector<1x512xf32>
    %cst = arith.constant dense<0.000000e+00> : vector<16x512xf32>
    %5 = tpu.matmul %1, %2, %cst {dimension_numbers = #tpu.dot_dimension_numbers<[1], [0], [0], [1], [0, 0, 1, 1], [], []>} : vector<16x4xbf16>, vector<4x512xbf16>, vector<16x512xf32> -> vector<16x512xf32>
    %6 = vector.broadcast %4 : vector<1x512xf32> to vector<16x512xf32>
    %7 = arith.addf %5, %6 : vector<16x512xf32>
    %c0_6 = arith.constant 0 : index
    %c0_7 = arith.constant 0 : index
    %8 = vector.load %arg5[%c0_6, %c0_7] : memref<16x512xf32, #tpu.memory_space<vmem>>, vector<16x512xf32>
    tpu.vector_store %arg5[%c0_6, %c0_7], %7 {strides = array<i32>} : memref<16x512xf32, #tpu.memory_space<vmem>>, vector<16x512xf32>,
    %cst_8 = arith.constant 0.000000e+00 : f32
    %9 = vector.broadcast %cst_8 : f32 to vector<1x48xf32>
    %cst_9 = arith.constant 0.000000e+00 : f32
    %10 = vector.broadcast %cst_9 : f32 to vector<1x48xf32>
    %11 = arith.truncf %9 : vector<1x48xf32> to vector<1x48xbf16>
    %cst_10 = arith.constant dense<0.000000e+00> : vector<1x512xf32>
    %12 = tpu.matmul %11, %3, %cst_10 {dimension_numbers = #tpu.dot_dimension_numbers<[1], [0], [0], [1], [0, 0, 1, 1], [], []>} : vector<1x48xbf16>, vector<48x512xbf16>, vector<1x512xf32> -> vector<1x512xf32>
    %c0_11 = arith.constant 0 : index
    %c0_12 = arith.constant 0 : index
    %13 = vector.load %arg5[%c0_11, %c0_12] : memref<16x512xf32, #tpu.memory_space<vmem>>, vector<1x512xf32>
    %14 = arith.addf %13, %12 : vector<1x512xf32>
    %15 = vector.extract_strided_slice %14 {offsets = [0, 0], sizes = [1, 48], strides = [1, 1]} : vector<1x512xf32> to vector<1x48xf32>
    %16 = arith.negf %15 : vector<1x48xf32>
    %17 = math.exp %16 : vector<1x48xf32>
    %cst_13 = arith.constant 1.000000e+00 : f32
    %18 = vector.broadcast %cst_13 : f32 to vector<1x48xf32>
    %19 = arith.addf %18, %17 : vector<1x48xf32>
    %20 = arith.divf %18, %19 : vector<1x48xf32>
    %21 = vector.extract_strided_slice %14 {offsets = [0, 128], sizes = [1, 48], strides = [1, 1]} : vector<1x512xf32> to vector<1x48xf32>
    %22 = arith.negf %21 : vector<1x48xf32>
    %23 = math.exp %22 : vector<1x48xf32>
    %cst_14 = arith.constant 1.000000e+00 : f32
    %24 = vector.broadcast %cst_14 : f32 to vector<1x48xf32>
    %25 = arith.addf %24, %23 : vector<1x48xf32>
    %26 = arith.divf %24, %25 : vector<1x48xf32>
    %27 = vector.extract_strided_slice %14 {offsets = [0, 256], sizes = [1, 48], strides = [1, 1]} : vector<1x512xf32> to vector<1x48xf32>
    %28 = math.tanh %27 : vector<1x48xf32>
    %29 = vector.extract_strided_slice %14 {offsets = [0, 384], sizes = [1, 48], strides = [1, 1]} : vector<1x512xf32> to vector<1x48xf32>
    %30 = arith.negf %29 : vector<1x48xf32>
    %31 = math.exp %30 : vector<1x48xf32>
    %cst_15 = arith.constant 1.000000e+00 : f32
    %32 = vector.broadcast %cst_15 : f32 to vector<1x48xf32>
    %33 = arith.addf %32, %31 : vector<1x48xf32>
    %34 = arith.divf %32, %33 : vector<1x48xf32>
    %35 = arith.mulf %26, %10 : vector<1x48xf32>
    %36 = arith.mulf %20, %28 : vector<1x48xf32>
    %37 = arith.addf %35, %36 : vector<1x48xf32>
    %38 = math.tanh %37 : vector<1x48xf32>
    %39 = arith.mulf %34, %38 : vector<1x48xf32>
    %c0_16 = arith.constant 0 : index
    %c0_17 = arith.constant 0 : index
    %40 = vector.load %arg6[%c0_16, %c0_17] : memref<16x48xf32, #tpu.memory_space<vmem>>, vector<1x48xf32>
    tpu.vector_store %arg6[%c0_16, %c0_17], %39 {strides = array<i32>} : memref<16x48xf32, #tpu.memory_space<vmem>>, vector<1x48xf32>,
    %41 = arith.truncf %39 : vector<1x48xf32> to vector<1x48xbf16>
    %cst_18 = arith.constant dense<0.000000e+00> : vector<1x512xf32>
    %42 = tpu.matmul %41, %3, %cst_18 {dimension_numbers = #tpu.dot_dimension_numbers<[1], [0], [0], [1], [0, 0, 1, 1], [], []>} : vector<1x48xbf16>, vector<48x512xbf16>, vector<1x512xf32> -> vector<1x512xf32>
    %c1 = arith.constant 1 : index
    %c0_19 = arith.constant 0 : index
    %43 = vector.load %arg5[%c1, %c0_19] : memref<16x512xf32, #tpu.memory_space<vmem>>, vector<1x512xf32>
    %44 = arith.addf %43, %42 : vector<1x512xf32>
    %45 = vector.extract_strided_slice %44 {offsets = [0, 0], sizes = [1, 48], strides = [1, 1]} : vector<1x512xf32> to vector<1x48xf32>
    %46 = arith.negf %45 : vector<1x48xf32>
    %47 = math.exp %46 : vector<1x48xf32>
    %cst_20 = arith.constant 1.000000e+00 : f32
    %48 = vector.broadcast %cst_20 : f32 to vector<1x48xf32>
    %49 = arith.addf %48, %47 : vector<1x48xf32>
    %50 = arith.divf %48, %49 : vector<1x48xf32>
    %51 = vector.extract_strided_slice %44 {offsets = [0, 128], sizes = [1, 48], strides = [1, 1]} : vector<1x512xf32> to vector<1x48xf32>
    %52 = arith.negf %51 : vector<1x48xf32>
    %53 = math.exp %52 : vector<1x48xf32>
    %cst_21 = arith.constant 1.000000e+00 : f32
    %54 = vector.broadcast %cst_21 : f32 to vector<1x48xf32>
    %55 = arith.addf %54, %53 : vector<1x48xf32>
    %56 = arith.divf %54, %55 : vector<1x48xf32>
    %57 = vector.extract_strided_slice %44 {offsets = [0, 256], sizes = [1, 48], strides = [1, 1]} : vector<1x512xf32> to vector<1x48xf32>
    %58 = math.tanh %57 : vector<1x48xf32>
    %59 = vector.extract_strided_slice %44 {offsets = [0, 384], sizes = [1, 48], strides = [1, 1]} : vector<1x512xf32> to vector<1x48xf32>
    %60 = arith.negf %59 : vector<1x48xf32>
    %61 = math.exp %60 : vector<1x48xf32>
    %cst_22 = arith.constant 1.000000e+00 : f32
    %62 = vector.broadcast %cst_22 : f32 to vector<1x48xf32>
    %63 = arith.addf %62, %61 : vector<1x48xf32>
    %64 = arith.divf %62, %63 : vector<1x48xf32>
    %65 = arith.mulf %56, %37 : vector<1x48xf32>
    %66 = arith.mulf %50, %58 : vector<1x48xf32>
    %67 = arith.addf %65, %66 : vector<1x48xf32>
    %68 = math.tanh %67 : vector<1x48xf32>
    %69 = arith.mulf %64, %68 : vector<1x48xf32>
    %c1_23 = arith.constant 1 : index
    %c0_24 = arith.constant 0 : index
    %70 = vector.load %arg6[%c1_23, %c0_24] : memref<16x48xf32, #tpu.memory_space<vmem>>, vector<1x48xf32>
    tpu.vector_store %arg6[%c1_23, %c0_24], %69 {strides = array<i32>} : memref<16x48xf32, #tpu.memory_space<vmem>>, vector<1x48xf32>,
    %71 = arith.truncf %69 : vector<1x48xf32> to vector<1x48xbf16>
    %cst_25 = arith.constant dense<0.000000e+00> : vector<1x512xf32>
    %72 = tpu.matmul %71, %3, %cst_25 {dimension_numbers = #tpu.dot_dimension_numbers<[1], [0], [0], [1], [0, 0, 1, 1], [], []>} : vector<1x48xbf16>, vector<48x512xbf16>, vector<1x512xf32> -> vector<1x512xf32>
    %c2 = arith.constant 2 : index
    %c0_26 = arith.constant 0 : index
    %73 = vector.load %arg5[%c2, %c0_26] : memref<16x512xf32, #tpu.memory_space<vmem>>, vector<1x512xf32>
    %74 = arith.addf %73, %72 : vector<1x512xf32>
    %75 = vector.extract_strided_slice %74 {offsets = [0, 0], sizes = [1, 48], strides = [1, 1]} : vector<1x512xf32> to vector<1x48xf32>
    %76 = arith.negf %75 : vector<1x48xf32>
    %77 = math.exp %76 : vector<1x48xf32>
    %cst_27 = arith.constant 1.000000e+00 : f32
    %78 = vector.broadcast %cst_27 : f32 to vector<1x48xf32>
    %79 = arith.addf %78, %77 : vector<1x48xf32>
    %80 = arith.divf %78, %79 : vector<1x48xf32>
    %81 = vector.extract_strided_slice %74 {offsets = [0, 128], sizes = [1, 48], strides = [1, 1]} : vector<1x512xf32> to vector<1x48xf32>
    %82 = arith.negf %81 : vector<1x48xf32>
    %83 = math.exp %82 : vector<1x48xf32>
    %cst_28 = arith.constant 1.000000e+00 : f32
    %84 = vector.broadcast %cst_28 : f32 to vector<1x48xf32>
    %85 = arith.addf %84, %83 : vector<1x48xf32>
    %86 = arith.divf %84, %85 : vector<1x48xf32>
    %87 = vector.extract_strided_slice %74 {offsets = [0, 256], sizes = [1, 48], strides = [1, 1]} : vector<1x512xf32> to vector<1x48xf32>
    %88 = math.tanh %87 : vector<1x48xf32>
    %89 = vector.extract_strided_slice %74 {offsets = [0, 384], sizes = [1, 48], strides = [1, 1]} : vector<1x512xf32> to vector<1x48xf32>
    %90 = arith.negf %89 : vector<1x48xf32>
    %91 = math.exp %90 : vector<1x48xf32>
    %cst_29 = arith.constant 1.000000e+00 : f32
    %92 = vector.broadcast %cst_29 : f32 to vector<1x48xf32>
    %93 = arith.addf %92, %91 : vector<1x48xf32>
    %94 = arith.divf %92, %93 : vector<1x48xf32>
    %95 = arith.mulf %86, %67 : vector<1x48xf32>
    %96 = arith.mulf %80, %88 : vector<1x48xf32>
    %97 = arith.addf %95, %96 : vector<1x48xf32>
    %98 = math.tanh %97 : vector<1x48xf32>
    %99 = arith.mulf %94, %98 : vector<1x48xf32>
    %c2_30 = arith.constant 2 : index
    %c0_31 = arith.constant 0 : index
    %100 = vector.load %arg6[%c2_30, %c0_31] : memref<16x48xf32, #tpu.memory_space<vmem>>, vector<1x48xf32>
    tpu.vector_store %arg6[%c2_30, %c0_31], %99 {strides = array<i32>} : memref<16x48xf32, #tpu.memory_space<vmem>>, vector<1x48xf32>,
    %101 = arith.truncf %99 : vector<1x48xf32> to vector<1x48xbf16>
    %cst_32 = arith.constant dense<0.000000e+00> : vector<1x512xf32>
    %102 = tpu.matmul %101, %3, %cst_32 {dimension_numbers = #tpu.dot_dimension_numbers<[1], [0], [0], [1], [0, 0, 1, 1], [], []>} : vector<1x48xbf16>, vector<48x512xbf16>, vector<1x512xf32> -> vector<1x512xf32>
    %c3 = arith.constant 3 : index
    %c0_33 = arith.constant 0 : index
    %103 = vector.load %arg5[%c3, %c0_33] : memref<16x512xf32, #tpu.memory_space<vmem>>, vector<1x512xf32>
    %104 = arith.addf %103, %102 : vector<1x512xf32>
    %105 = vector.extract_strided_slice %104 {offsets = [0, 0], sizes = [1, 48], strides = [1, 1]} : vector<1x512xf32> to vector<1x48xf32>
    %106 = arith.negf %105 : vector<1x48xf32>
    %107 = math.exp %106 : vector<1x48xf32>
    %cst_34 = arith.constant 1.000000e+00 : f32
    %108 = vector.broadcast %cst_34 : f32 to vector<1x48xf32>
    %109 = arith.addf %108, %107 : vector<1x48xf32>
    %110 = arith.divf %108, %109 : vector<1x48xf32>
    %111 = vector.extract_strided_slice %104 {offsets = [0, 128], sizes = [1, 48], strides = [1, 1]} : vector<1x512xf32> to vector<1x48xf32>
    %112 = arith.negf %111 : vector<1x48xf32>
    %113 = math.exp %112 : vector<1x48xf32>
    %cst_35 = arith.constant 1.000000e+00 : f32
    %114 = vector.broadcast %cst_35 : f32 to vector<1x48xf32>
    %115 = arith.addf %114, %113 : vector<1x48xf32>
    %116 = arith.divf %114, %115 : vector<1x48xf32>
    %117 = vector.extract_strided_slice %104 {offsets = [0, 256], sizes = [1, 48], strides = [1, 1]} : vector<1x512xf32> to vector<1x48xf32>
    %118 = math.tanh %117 : vector<1x48xf32>
    %119 = vector.extract_strided_slice %104 {offsets = [0, 384], sizes = [1, 48], strides = [1, 1]} : vector<1x512xf32> to vector<1x48xf32>
    %120 = arith.negf %119 : vector<1x48xf32>
    %121 = math.exp %120 : vector<1x48xf32>
    %cst_36 = arith.constant 1.000000e+00 : f32
    %122 = vector.broadcast %cst_36 : f32 to vector<1x48xf32>
    %123 = arith.addf %122, %121 : vector<1x48xf32>
    %124 = arith.divf %122, %123 : vector<1x48xf32>
    %125 = arith.mulf %116, %97 : vector<1x48xf32>
    %126 = arith.mulf %110, %118 : vector<1x48xf32>
    %127 = arith.addf %125, %126 : vector<1x48xf32>
    %128 = math.tanh %127 : vector<1x48xf32>
    %129 = arith.mulf %124, %128 : vector<1x48xf32>
    %c3_37 = arith.constant 3 : index
    %c0_38 = arith.constant 0 : index
    %130 = vector.load %arg6[%c3_37, %c0_38] : memref<16x48xf32, #tpu.memory_space<vmem>>, vector<1x48xf32>
    tpu.vector_store %arg6[%c3_37, %c0_38], %129 {strides = array<i32>} : memref<16x48xf32, #tpu.memory_space<vmem>>, vector<1x48xf32>,
    %131 = arith.truncf %129 : vector<1x48xf32> to vector<1x48xbf16>
    %cst_39 = arith.constant dense<0.000000e+00> : vector<1x512xf32>
    %132 = tpu.matmul %131, %3, %cst_39 {dimension_numbers = #tpu.dot_dimension_numbers<[1], [0], [0], [1], [0, 0, 1, 1], [], []>} : vector<1x48xbf16>, vector<48x512xbf16>, vector<1x512xf32> -> vector<1x512xf32>
    %c4 = arith.constant 4 : index
    %c0_40 = arith.constant 0 : index
    %133 = vector.load %arg5[%c4, %c0_40] : memref<16x512xf32, #tpu.memory_space<vmem>>, vector<1x512xf32>
    %134 = arith.addf %133, %132 : vector<1x512xf32>
    %135 = vector.extract_strided_slice %134 {offsets = [0, 0], sizes = [1, 48], strides = [1, 1]} : vector<1x512xf32> to vector<1x48xf32>
    %136 = arith.negf %135 : vector<1x48xf32>
    %137 = math.exp %136 : vector<1x48xf32>
    %cst_41 = arith.constant 1.000000e+00 : f32
    %138 = vector.broadcast %cst_41 : f32 to vector<1x48xf32>
    %139 = arith.addf %138, %137 : vector<1x48xf32>
    %140 = arith.divf %138, %139 : vector<1x48xf32>
    %141 = vector.extract_strided_slice %134 {offsets = [0, 128], sizes = [1, 48], strides = [1, 1]} : vector<1x512xf32> to vector<1x48xf32>
    %142 = arith.negf %141 : vector<1x48xf32>
    %143 = math.exp %142 : vector<1x48xf32>
    %cst_42 = arith.constant 1.000000e+00 : f32
    %144 = vector.broadcast %cst_42 : f32 to vector<1x48xf32>
    %145 = arith.addf %144, %143 : vector<1x48xf32>
    %146 = arith.divf %144, %145 : vector<1x48xf32>
    %147 = vector.extract_strided_slice %134 {offsets = [0, 256], sizes = [1, 48], strides = [1, 1]} : vector<1x512xf32> to vector<1x48xf32>
    %148 = math.tanh %147 : vector<1x48xf32>
    %149 = vector.extract_strided_slice %134 {offsets = [0, 384], sizes = [1, 48], strides = [1, 1]} : vector<1x512xf32> to vector<1x48xf32>
    %150 = arith.negf %149 : vector<1x48xf32>
    %151 = math.exp %150 : vector<1x48xf32>
    %cst_43 = arith.constant 1.000000e+00 : f32
    %152 = vector.broadcast %cst_43 : f32 to vector<1x48xf32>
    %153 = arith.addf %152, %151 : vector<1x48xf32>
    %154 = arith.divf %152, %153 : vector<1x48xf32>
    %155 = arith.mulf %146, %127 : vector<1x48xf32>
    %156 = arith.mulf %140, %148 : vector<1x48xf32>
    %157 = arith.addf %155, %156 : vector<1x48xf32>
    %158 = math.tanh %157 : vector<1x48xf32>
    %159 = arith.mulf %154, %158 : vector<1x48xf32>
    %c4_44 = arith.constant 4 : index
    %c0_45 = arith.constant 0 : index
    %160 = vector.load %arg6[%c4_44, %c0_45] : memref<16x48xf32, #tpu.memory_space<vmem>>, vector<1x48xf32>
    tpu.vector_store %arg6[%c4_44, %c0_45], %159 {strides = array<i32>} : memref<16x48xf32, #tpu.memory_space<vmem>>, vector<1x48xf32>,
    %161 = arith.truncf %159 : vector<1x48xf32> to vector<1x48xbf16>
    %cst_46 = arith.constant dense<0.000000e+00> : vector<1x512xf32>
    %162 = tpu.matmul %161, %3, %cst_46 {dimension_numbers = #tpu.dot_dimension_numbers<[1], [0], [0], [1], [0, 0, 1, 1], [], []>} : vector<1x48xbf16>, vector<48x512xbf16>, vector<1x512xf32> -> vector<1x512xf32>
    %c5 = arith.constant 5 : index
    %c0_47 = arith.constant 0 : index
    %163 = vector.load %arg5[%c5, %c0_47] : memref<16x512xf32, #tpu.memory_space<vmem>>, vector<1x512xf32>
    %164 = arith.addf %163, %162 : vector<1x512xf32>
    %165 = vector.extract_strided_slice %164 {offsets = [0, 0], sizes = [1, 48], strides = [1, 1]} : vector<1x512xf32> to vector<1x48xf32>
    %166 = arith.negf %165 : vector<1x48xf32>
    %167 = math.exp %166 : vector<1x48xf32>
    %cst_48 = arith.constant 1.000000e+00 : f32
    %168 = vector.broadcast %cst_48 : f32 to vector<1x48xf32>
    %169 = arith.addf %168, %167 : vector<1x48xf32>
    %170 = arith.divf %168, %169 : vector<1x48xf32>
    %171 = vector.extract_strided_slice %164 {offsets = [0, 128], sizes = [1, 48], strides = [1, 1]} : vector<1x512xf32> to vector<1x48xf32>
    %172 = arith.negf %171 : vector<1x48xf32>
    %173 = math.exp %172 : vector<1x48xf32>
    %cst_49 = arith.constant 1.000000e+00 : f32
    %174 = vector.broadcast %cst_49 : f32 to vector<1x48xf32>
    %175 = arith.addf %174, %173 : vector<1x48xf32>
    %176 = arith.divf %174, %175 : vector<1x48xf32>
    %177 = vector.extract_strided_slice %164 {offsets = [0, 256], sizes = [1, 48], strides = [1, 1]} : vector<1x512xf32> to vector<1x48xf32>
    %178 = math.tanh %177 : vector<1x48xf32>
    %179 = vector.extract_strided_slice %164 {offsets = [0, 384], sizes = [1, 48], strides = [1, 1]} : vector<1x512xf32> to vector<1x48xf32>
    %180 = arith.negf %179 : vector<1x48xf32>
    %181 = math.exp %180 : vector<1x48xf32>
    %cst_50 = arith.constant 1.000000e+00 : f32
    %182 = vector.broadcast %cst_50 : f32 to vector<1x48xf32>
    %183 = arith.addf %182, %181 : vector<1x48xf32>
    %184 = arith.divf %182, %183 : vector<1x48xf32>
    %185 = arith.mulf %176, %157 : vector<1x48xf32>
    %186 = arith.mulf %170, %178 : vector<1x48xf32>
    %187 = arith.addf %185, %186 : vector<1x48xf32>
    %188 = math.tanh %187 : vector<1x48xf32>
    %189 = arith.mulf %184, %188 : vector<1x48xf32>
    %c5_51 = arith.constant 5 : index
    %c0_52 = arith.constant 0 : index
    %190 = vector.load %arg6[%c5_51, %c0_52] : memref<16x48xf32, #tpu.memory_space<vmem>>, vector<1x48xf32>
    tpu.vector_store %arg6[%c5_51, %c0_52], %189 {strides = array<i32>} : memref<16x48xf32, #tpu.memory_space<vmem>>, vector<1x48xf32>,
    %191 = arith.truncf %189 : vector<1x48xf32> to vector<1x48xbf16>
    %cst_53 = arith.constant dense<0.000000e+00> : vector<1x512xf32>
    %192 = tpu.matmul %191, %3, %cst_53 {dimension_numbers = #tpu.dot_dimension_numbers<[1], [0], [0], [1], [0, 0, 1, 1], [], []>} : vector<1x48xbf16>, vector<48x512xbf16>, vector<1x512xf32> -> vector<1x512xf32>
    %c6 = arith.constant 6 : index
    %c0_54 = arith.constant 0 : index
    %193 = vector.load %arg5[%c6, %c0_54] : memref<16x512xf32, #tpu.memory_space<vmem>>, vector<1x512xf32>
    %194 = arith.addf %193, %192 : vector<1x512xf32>
    %195 = vector.extract_strided_slice %194 {offsets = [0, 0], sizes = [1, 48], strides = [1, 1]} : vector<1x512xf32> to vector<1x48xf32>
    %196 = arith.negf %195 : vector<1x48xf32>
    %197 = math.exp %196 : vector<1x48xf32>
    %cst_55 = arith.constant 1.000000e+00 : f32
    %198 = vector.broadcast %cst_55 : f32 to vector<1x48xf32>
    %199 = arith.addf %198, %197 : vector<1x48xf32>
    %200 = arith.divf %198, %199 : vector<1x48xf32>
    %201 = vector.extract_strided_slice %194 {offsets = [0, 128], sizes = [1, 48], strides = [1, 1]} : vector<1x512xf32> to vector<1x48xf32>
    %202 = arith.negf %201 : vector<1x48xf32>
    %203 = math.exp %202 : vector<1x48xf32>
    %cst_56 = arith.constant 1.000000e+00 : f32
    %204 = vector.broadcast %cst_56 : f32 to vector<1x48xf32>
    %205 = arith.addf %204, %203 : vector<1x48xf32>
    %206 = arith.divf %204, %205 : vector<1x48xf32>
    %207 = vector.extract_strided_slice %194 {offsets = [0, 256], sizes = [1, 48], strides = [1, 1]} : vector<1x512xf32> to vector<1x48xf32>
    %208 = math.tanh %207 : vector<1x48xf32>
    %209 = vector.extract_strided_slice %194 {offsets = [0, 384], sizes = [1, 48], strides = [1, 1]} : vector<1x512xf32> to vector<1x48xf32>
    %210 = arith.negf %209 : vector<1x48xf32>
    %211 = math.exp %210 : vector<1x48xf32>
    %cst_57 = arith.constant 1.000000e+00 : f32
    %212 = vector.broadcast %cst_57 : f32 to vector<1x48xf32>
    %213 = arith.addf %212, %211 : vector<1x48xf32>
    %214 = arith.divf %212, %213 : vector<1x48xf32>
    %215 = arith.mulf %206, %187 : vector<1x48xf32>
    %216 = arith.mulf %200, %208 : vector<1x48xf32>
    %217 = arith.addf %215, %216 : vector<1x48xf32>
    %218 = math.tanh %217 : vector<1x48xf32>
    %219 = arith.mulf %214, %218 : vector<1x48xf32>
    %c6_58 = arith.constant 6 : index
    %c0_59 = arith.constant 0 : index
    %220 = vector.load %arg6[%c6_58, %c0_59] : memref<16x48xf32, #tpu.memory_space<vmem>>, vector<1x48xf32>
    tpu.vector_store %arg6[%c6_58, %c0_59], %219 {strides = array<i32>} : memref<16x48xf32, #tpu.memory_space<vmem>>, vector<1x48xf32>,
    %221 = arith.truncf %219 : vector<1x48xf32> to vector<1x48xbf16>
    %cst_60 = arith.constant dense<0.000000e+00> : vector<1x512xf32>
    %222 = tpu.matmul %221, %3, %cst_60 {dimension_numbers = #tpu.dot_dimension_numbers<[1], [0], [0], [1], [0, 0, 1, 1], [], []>} : vector<1x48xbf16>, vector<48x512xbf16>, vector<1x512xf32> -> vector<1x512xf32>
    %c7 = arith.constant 7 : index
    %c0_61 = arith.constant 0 : index
    %223 = vector.load %arg5[%c7, %c0_61] : memref<16x512xf32, #tpu.memory_space<vmem>>, vector<1x512xf32>
    %224 = arith.addf %223, %222 : vector<1x512xf32>
    %225 = vector.extract_strided_slice %224 {offsets = [0, 0], sizes = [1, 48], strides = [1, 1]} : vector<1x512xf32> to vector<1x48xf32>
    %226 = arith.negf %225 : vector<1x48xf32>
    %227 = math.exp %226 : vector<1x48xf32>
    %cst_62 = arith.constant 1.000000e+00 : f32
    %228 = vector.broadcast %cst_62 : f32 to vector<1x48xf32>
    %229 = arith.addf %228, %227 : vector<1x48xf32>
    %230 = arith.divf %228, %229 : vector<1x48xf32>
    %231 = vector.extract_strided_slice %224 {offsets = [0, 128], sizes = [1, 48], strides = [1, 1]} : vector<1x512xf32> to vector<1x48xf32>
    %232 = arith.negf %231 : vector<1x48xf32>
    %233 = math.exp %232 : vector<1x48xf32>
    %cst_63 = arith.constant 1.000000e+00 : f32
    %234 = vector.broadcast %cst_63 : f32 to vector<1x48xf32>
    %235 = arith.addf %234, %233 : vector<1x48xf32>
    %236 = arith.divf %234, %235 : vector<1x48xf32>
    %237 = vector.extract_strided_slice %224 {offsets = [0, 256], sizes = [1, 48], strides = [1, 1]} : vector<1x512xf32> to vector<1x48xf32>
    %238 = math.tanh %237 : vector<1x48xf32>
    %239 = vector.extract_strided_slice %224 {offsets = [0, 384], sizes = [1, 48], strides = [1, 1]} : vector<1x512xf32> to vector<1x48xf32>
    %240 = arith.negf %239 : vector<1x48xf32>
    %241 = math.exp %240 : vector<1x48xf32>
    %cst_64 = arith.constant 1.000000e+00 : f32
    %242 = vector.broadcast %cst_64 : f32 to vector<1x48xf32>
    %243 = arith.addf %242, %241 : vector<1x48xf32>
    %244 = arith.divf %242, %243 : vector<1x48xf32>
    %245 = arith.mulf %236, %217 : vector<1x48xf32>
    %246 = arith.mulf %230, %238 : vector<1x48xf32>
    %247 = arith.addf %245, %246 : vector<1x48xf32>
    %248 = math.tanh %247 : vector<1x48xf32>
    %249 = arith.mulf %244, %248 : vector<1x48xf32>
    %c7_65 = arith.constant 7 : index
    %c0_66 = arith.constant 0 : index
    %250 = vector.load %arg6[%c7_65, %c0_66] : memref<16x48xf32, #tpu.memory_space<vmem>>, vector<1x48xf32>
    tpu.vector_store %arg6[%c7_65, %c0_66], %249 {strides = array<i32>} : memref<16x48xf32, #tpu.memory_space<vmem>>, vector<1x48xf32>,
    %251 = arith.truncf %249 : vector<1x48xf32> to vector<1x48xbf16>
    %cst_67 = arith.constant dense<0.000000e+00> : vector<1x512xf32>
    %252 = tpu.matmul %251, %3, %cst_67 {dimension_numbers = #tpu.dot_dimension_numbers<[1], [0], [0], [1], [0, 0, 1, 1], [], []>} : vector<1x48xbf16>, vector<48x512xbf16>, vector<1x512xf32> -> vector<1x512xf32>
    %c8_68 = arith.constant 8 : index
    %c0_69 = arith.constant 0 : index
    %253 = vector.load %arg5[%c8_68, %c0_69] : memref<16x512xf32, #tpu.memory_space<vmem>>, vector<1x512xf32>
    %254 = arith.addf %253, %252 : vector<1x512xf32>
    %255 = vector.extract_strided_slice %254 {offsets = [0, 0], sizes = [1, 48], strides = [1, 1]} : vector<1x512xf32> to vector<1x48xf32>
    %256 = arith.negf %255 : vector<1x48xf32>
    %257 = math.exp %256 : vector<1x48xf32>
    %cst_70 = arith.constant 1.000000e+00 : f32
    %258 = vector.broadcast %cst_70 : f32 to vector<1x48xf32>
    %259 = arith.addf %258, %257 : vector<1x48xf32>
    %260 = arith.divf %258, %259 : vector<1x48xf32>
    %261 = vector.extract_strided_slice %254 {offsets = [0, 128], sizes = [1, 48], strides = [1, 1]} : vector<1x512xf32> to vector<1x48xf32>
    %262 = arith.negf %261 : vector<1x48xf32>
    %263 = math.exp %262 : vector<1x48xf32>
    %cst_71 = arith.constant 1.000000e+00 : f32
    %264 = vector.broadcast %cst_71 : f32 to vector<1x48xf32>
    %265 = arith.addf %264, %263 : vector<1x48xf32>
    %266 = arith.divf %264, %265 : vector<1x48xf32>
    %267 = vector.extract_strided_slice %254 {offsets = [0, 256], sizes = [1, 48], strides = [1, 1]} : vector<1x512xf32> to vector<1x48xf32>
    %268 = math.tanh %267 : vector<1x48xf32>
    %269 = vector.extract_strided_slice %254 {offsets = [0, 384], sizes = [1, 48], strides = [1, 1]} : vector<1x512xf32> to vector<1x48xf32>
    %270 = arith.negf %269 : vector<1x48xf32>
    %271 = math.exp %270 : vector<1x48xf32>
    %cst_72 = arith.constant 1.000000e+00 : f32
    %272 = vector.broadcast %cst_72 : f32 to vector<1x48xf32>
    %273 = arith.addf %272, %271 : vector<1x48xf32>
    %274 = arith.divf %272, %273 : vector<1x48xf32>
    %275 = arith.mulf %266, %247 : vector<1x48xf32>
    %276 = arith.mulf %260, %268 : vector<1x48xf32>
    %277 = arith.addf %275, %276 : vector<1x48xf32>
    %278 = math.tanh %277 : vector<1x48xf32>
    %279 = arith.mulf %274, %278 : vector<1x48xf32>
    %c8_73 = arith.constant 8 : index
    %c0_74 = arith.constant 0 : index
    %280 = vector.load %arg6[%c8_73, %c0_74] : memref<16x48xf32, #tpu.memory_space<vmem>>, vector<1x48xf32>
    tpu.vector_store %arg6[%c8_73, %c0_74], %279 {strides = array<i32>} : memref<16x48xf32, #tpu.memory_space<vmem>>, vector<1x48xf32>,
    %281 = arith.truncf %279 : vector<1x48xf32> to vector<1x48xbf16>
    %cst_75 = arith.constant dense<0.000000e+00> : vector<1x512xf32>
    %282 = tpu.matmul %281, %3, %cst_75 {dimension_numbers = #tpu.dot_dimension_numbers<[1], [0], [0], [1], [0, 0, 1, 1], [], []>} : vector<1x48xbf16>, vector<48x512xbf16>, vector<1x512xf32> -> vector<1x512xf32>
    %c9 = arith.constant 9 : index
    %c0_76 = arith.constant 0 : index
    %283 = vector.load %arg5[%c9, %c0_76] : memref<16x512xf32, #tpu.memory_space<vmem>>, vector<1x512xf32>
    %284 = arith.addf %283, %282 : vector<1x512xf32>
    %285 = vector.extract_strided_slice %284 {offsets = [0, 0], sizes = [1, 48], strides = [1, 1]} : vector<1x512xf32> to vector<1x48xf32>
    %286 = arith.negf %285 : vector<1x48xf32>
    %287 = math.exp %286 : vector<1x48xf32>
    %cst_77 = arith.constant 1.000000e+00 : f32
    %288 = vector.broadcast %cst_77 : f32 to vector<1x48xf32>
    %289 = arith.addf %288, %287 : vector<1x48xf32>
    %290 = arith.divf %288, %289 : vector<1x48xf32>
    %291 = vector.extract_strided_slice %284 {offsets = [0, 128], sizes = [1, 48], strides = [1, 1]} : vector<1x512xf32> to vector<1x48xf32>
    %292 = arith.negf %291 : vector<1x48xf32>
    %293 = math.exp %292 : vector<1x48xf32>
    %cst_78 = arith.constant 1.000000e+00 : f32
    %294 = vector.broadcast %cst_78 : f32 to vector<1x48xf32>
    %295 = arith.addf %294, %293 : vector<1x48xf32>
    %296 = arith.divf %294, %295 : vector<1x48xf32>
    %297 = vector.extract_strided_slice %284 {offsets = [0, 256], sizes = [1, 48], strides = [1, 1]} : vector<1x512xf32> to vector<1x48xf32>
    %298 = math.tanh %297 : vector<1x48xf32>
    %299 = vector.extract_strided_slice %284 {offsets = [0, 384], sizes = [1, 48], strides = [1, 1]} : vector<1x512xf32> to vector<1x48xf32>
    %300 = arith.negf %299 : vector<1x48xf32>
    %301 = math.exp %300 : vector<1x48xf32>
    %cst_79 = arith.constant 1.000000e+00 : f32
    %302 = vector.broadcast %cst_79 : f32 to vector<1x48xf32>
    %303 = arith.addf %302, %301 : vector<1x48xf32>
    %304 = arith.divf %302, %303 : vector<1x48xf32>
    %305 = arith.mulf %296, %277 : vector<1x48xf32>
    %306 = arith.mulf %290, %298 : vector<1x48xf32>
    %307 = arith.addf %305, %306 : vector<1x48xf32>
    %308 = math.tanh %307 : vector<1x48xf32>
    %309 = arith.mulf %304, %308 : vector<1x48xf32>
    %c9_80 = arith.constant 9 : index
    %c0_81 = arith.constant 0 : index
    %310 = vector.load %arg6[%c9_80, %c0_81] : memref<16x48xf32, #tpu.memory_space<vmem>>, vector<1x48xf32>
    tpu.vector_store %arg6[%c9_80, %c0_81], %309 {strides = array<i32>} : memref<16x48xf32, #tpu.memory_space<vmem>>, vector<1x48xf32>,
    %311 = arith.truncf %309 : vector<1x48xf32> to vector<1x48xbf16>
    %cst_82 = arith.constant dense<0.000000e+00> : vector<1x512xf32>
    %312 = tpu.matmul %311, %3, %cst_82 {dimension_numbers = #tpu.dot_dimension_numbers<[1], [0], [0], [1], [0, 0, 1, 1], [], []>} : vector<1x48xbf16>, vector<48x512xbf16>, vector<1x512xf32> -> vector<1x512xf32>
    %c10 = arith.constant 10 : index
    %c0_83 = arith.constant 0 : index
    %313 = vector.load %arg5[%c10, %c0_83] : memref<16x512xf32, #tpu.memory_space<vmem>>, vector<1x512xf32>
    %314 = arith.addf %313, %312 : vector<1x512xf32>
    %315 = vector.extract_strided_slice %314 {offsets = [0, 0], sizes = [1, 48], strides = [1, 1]} : vector<1x512xf32> to vector<1x48xf32>
    %316 = arith.negf %315 : vector<1x48xf32>
    %317 = math.exp %316 : vector<1x48xf32>
    %cst_84 = arith.constant 1.000000e+00 : f32
    %318 = vector.broadcast %cst_84 : f32 to vector<1x48xf32>
    %319 = arith.addf %318, %317 : vector<1x48xf32>
    %320 = arith.divf %318, %319 : vector<1x48xf32>
    %321 = vector.extract_strided_slice %314 {offsets = [0, 128], sizes = [1, 48], strides = [1, 1]} : vector<1x512xf32> to vector<1x48xf32>
    %322 = arith.negf %321 : vector<1x48xf32>
    %323 = math.exp %322 : vector<1x48xf32>
    %cst_85 = arith.constant 1.000000e+00 : f32
    %324 = vector.broadcast %cst_85 : f32 to vector<1x48xf32>
    %325 = arith.addf %324, %323 : vector<1x48xf32>
    %326 = arith.divf %324, %325 : vector<1x48xf32>
    %327 = vector.extract_strided_slice %314 {offsets = [0, 256], sizes = [1, 48], strides = [1, 1]} : vector<1x512xf32> to vector<1x48xf32>
    %328 = math.tanh %327 : vector<1x48xf32>
    %329 = vector.extract_strided_slice %314 {offsets = [0, 384], sizes = [1, 48], strides = [1, 1]} : vector<1x512xf32> to vector<1x48xf32>
    %330 = arith.negf %329 : vector<1x48xf32>
    %331 = math.exp %330 : vector<1x48xf32>
    %cst_86 = arith.constant 1.000000e+00 : f32
    %332 = vector.broadcast %cst_86 : f32 to vector<1x48xf32>
    %333 = arith.addf %332, %331 : vector<1x48xf32>
    %334 = arith.divf %332, %333 : vector<1x48xf32>
    %335 = arith.mulf %326, %307 : vector<1x48xf32>
    %336 = arith.mulf %320, %328 : vector<1x48xf32>
    %337 = arith.addf %335, %336 : vector<1x48xf32>
    %338 = math.tanh %337 : vector<1x48xf32>
    %339 = arith.mulf %334, %338 : vector<1x48xf32>
    %c10_87 = arith.constant 10 : index
    %c0_88 = arith.constant 0 : index
    %340 = vector.load %arg6[%c10_87, %c0_88] : memref<16x48xf32, #tpu.memory_space<vmem>>, vector<1x48xf32>
    tpu.vector_store %arg6[%c10_87, %c0_88], %339 {strides = array<i32>} : memref<16x48xf32, #tpu.memory_space<vmem>>, vector<1x48xf32>,
    %341 = arith.truncf %339 : vector<1x48xf32> to vector<1x48xbf16>
    %cst_89 = arith.constant dense<0.000000e+00> : vector<1x512xf32>
    %342 = tpu.matmul %341, %3, %cst_89 {dimension_numbers = #tpu.dot_dimension_numbers<[1], [0], [0], [1], [0, 0, 1, 1], [], []>} : vector<1x48xbf16>, vector<48x512xbf16>, vector<1x512xf32> -> vector<1x512xf32>
    %c11 = arith.constant 11 : index
    %c0_90 = arith.constant 0 : index
    %343 = vector.load %arg5[%c11, %c0_90] : memref<16x512xf32, #tpu.memory_space<vmem>>, vector<1x512xf32>
    %344 = arith.addf %343, %342 : vector<1x512xf32>
    %345 = vector.extract_strided_slice %344 {offsets = [0, 0], sizes = [1, 48], strides = [1, 1]} : vector<1x512xf32> to vector<1x48xf32>
    %346 = arith.negf %345 : vector<1x48xf32>
    %347 = math.exp %346 : vector<1x48xf32>
    %cst_91 = arith.constant 1.000000e+00 : f32
    %348 = vector.broadcast %cst_91 : f32 to vector<1x48xf32>
    %349 = arith.addf %348, %347 : vector<1x48xf32>
    %350 = arith.divf %348, %349 : vector<1x48xf32>
    %351 = vector.extract_strided_slice %344 {offsets = [0, 128], sizes = [1, 48], strides = [1, 1]} : vector<1x512xf32> to vector<1x48xf32>
    %352 = arith.negf %351 : vector<1x48xf32>
    %353 = math.exp %352 : vector<1x48xf32>
    %cst_92 = arith.constant 1.000000e+00 : f32
    %354 = vector.broadcast %cst_92 : f32 to vector<1x48xf32>
    %355 = arith.addf %354, %353 : vector<1x48xf32>
    %356 = arith.divf %354, %355 : vector<1x48xf32>
    %357 = vector.extract_strided_slice %344 {offsets = [0, 256], sizes = [1, 48], strides = [1, 1]} : vector<1x512xf32> to vector<1x48xf32>
    %358 = math.tanh %357 : vector<1x48xf32>
    %359 = vector.extract_strided_slice %344 {offsets = [0, 384], sizes = [1, 48], strides = [1, 1]} : vector<1x512xf32> to vector<1x48xf32>
    %360 = arith.negf %359 : vector<1x48xf32>
    %361 = math.exp %360 : vector<1x48xf32>
    %cst_93 = arith.constant 1.000000e+00 : f32
    %362 = vector.broadcast %cst_93 : f32 to vector<1x48xf32>
    %363 = arith.addf %362, %361 : vector<1x48xf32>
    %364 = arith.divf %362, %363 : vector<1x48xf32>
    %365 = arith.mulf %356, %337 : vector<1x48xf32>
    %366 = arith.mulf %350, %358 : vector<1x48xf32>
    %367 = arith.addf %365, %366 : vector<1x48xf32>
    %368 = math.tanh %367 : vector<1x48xf32>
    %369 = arith.mulf %364, %368 : vector<1x48xf32>
    %c11_94 = arith.constant 11 : index
    %c0_95 = arith.constant 0 : index
    %370 = vector.load %arg6[%c11_94, %c0_95] : memref<16x48xf32, #tpu.memory_space<vmem>>, vector<1x48xf32>
    tpu.vector_store %arg6[%c11_94, %c0_95], %369 {strides = array<i32>} : memref<16x48xf32, #tpu.memory_space<vmem>>, vector<1x48xf32>,
    %371 = arith.truncf %369 : vector<1x48xf32> to vector<1x48xbf16>
    %cst_96 = arith.constant dense<0.000000e+00> : vector<1x512xf32>
    %372 = tpu.matmul %371, %3, %cst_96 {dimension_numbers = #tpu.dot_dimension_numbers<[1], [0], [0], [1], [0, 0, 1, 1], [], []>} : vector<1x48xbf16>, vector<48x512xbf16>, vector<1x512xf32> -> vector<1x512xf32>
    %c12 = arith.constant 12 : index
    %c0_97 = arith.constant 0 : index
    %373 = vector.load %arg5[%c12, %c0_97] : memref<16x512xf32, #tpu.memory_space<vmem>>, vector<1x512xf32>
    %374 = arith.addf %373, %372 : vector<1x512xf32>
    %375 = vector.extract_strided_slice %374 {offsets = [0, 0], sizes = [1, 48], strides = [1, 1]} : vector<1x512xf32> to vector<1x48xf32>
    %376 = arith.negf %375 : vector<1x48xf32>
    %377 = math.exp %376 : vector<1x48xf32>
    %cst_98 = arith.constant 1.000000e+00 : f32
    %378 = vector.broadcast %cst_98 : f32 to vector<1x48xf32>
    %379 = arith.addf %378, %377 : vector<1x48xf32>
    %380 = arith.divf %378, %379 : vector<1x48xf32>
    %381 = vector.extract_strided_slice %374 {offsets = [0, 128], sizes = [1, 48], strides = [1, 1]} : vector<1x512xf32> to vector<1x48xf32>
    %382 = arith.negf %381 : vector<1x48xf32>
    %383 = math.exp %382 : vector<1x48xf32>
    %cst_99 = arith.constant 1.000000e+00 : f32
    %384 = vector.broadcast %cst_99 : f32 to vector<1x48xf32>
    %385 = arith.addf %384, %383 : vector<1x48xf32>
    %386 = arith.divf %384, %385 : vector<1x48xf32>
    %387 = vector.extract_strided_slice %374 {offsets = [0, 256], sizes = [1, 48], strides = [1, 1]} : vector<1x512xf32> to vector<1x48xf32>
    %388 = math.tanh %387 : vector<1x48xf32>
    %389 = vector.extract_strided_slice %374 {offsets = [0, 384], sizes = [1, 48], strides = [1, 1]} : vector<1x512xf32> to vector<1x48xf32>
    %390 = arith.negf %389 : vector<1x48xf32>
    %391 = math.exp %390 : vector<1x48xf32>
    %cst_100 = arith.constant 1.000000e+00 : f32
    %392 = vector.broadcast %cst_100 : f32 to vector<1x48xf32>
    %393 = arith.addf %392, %391 : vector<1x48xf32>
    %394 = arith.divf %392, %393 : vector<1x48xf32>
    %395 = arith.mulf %386, %367 : vector<1x48xf32>
    %396 = arith.mulf %380, %388 : vector<1x48xf32>
    %397 = arith.addf %395, %396 : vector<1x48xf32>
    %398 = math.tanh %397 : vector<1x48xf32>
    %399 = arith.mulf %394, %398 : vector<1x48xf32>
    %c12_101 = arith.constant 12 : index
    %c0_102 = arith.constant 0 : index
    %400 = vector.load %arg6[%c12_101, %c0_102] : memref<16x48xf32, #tpu.memory_space<vmem>>, vector<1x48xf32>
    tpu.vector_store %arg6[%c12_101, %c0_102], %399 {strides = array<i32>} : memref<16x48xf32, #tpu.memory_space<vmem>>, vector<1x48xf32>,
    %401 = arith.truncf %399 : vector<1x48xf32> to vector<1x48xbf16>
    %cst_103 = arith.constant dense<0.000000e+00> : vector<1x512xf32>
    %402 = tpu.matmul %401, %3, %cst_103 {dimension_numbers = #tpu.dot_dimension_numbers<[1], [0], [0], [1], [0, 0, 1, 1], [], []>} : vector<1x48xbf16>, vector<48x512xbf16>, vector<1x512xf32> -> vector<1x512xf32>
    %c13 = arith.constant 13 : index
    %c0_104 = arith.constant 0 : index
    %403 = vector.load %arg5[%c13, %c0_104] : memref<16x512xf32, #tpu.memory_space<vmem>>, vector<1x512xf32>
    %404 = arith.addf %403, %402 : vector<1x512xf32>
    %405 = vector.extract_strided_slice %404 {offsets = [0, 0], sizes = [1, 48], strides = [1, 1]} : vector<1x512xf32> to vector<1x48xf32>
    %406 = arith.negf %405 : vector<1x48xf32>
    %407 = math.exp %406 : vector<1x48xf32>
    %cst_105 = arith.constant 1.000000e+00 : f32
    %408 = vector.broadcast %cst_105 : f32 to vector<1x48xf32>
    %409 = arith.addf %408, %407 : vector<1x48xf32>
    %410 = arith.divf %408, %409 : vector<1x48xf32>
    %411 = vector.extract_strided_slice %404 {offsets = [0, 128], sizes = [1, 48], strides = [1, 1]} : vector<1x512xf32> to vector<1x48xf32>
    %412 = arith.negf %411 : vector<1x48xf32>
    %413 = math.exp %412 : vector<1x48xf32>
    %cst_106 = arith.constant 1.000000e+00 : f32
    %414 = vector.broadcast %cst_106 : f32 to vector<1x48xf32>
    %415 = arith.addf %414, %413 : vector<1x48xf32>
    %416 = arith.divf %414, %415 : vector<1x48xf32>
    %417 = vector.extract_strided_slice %404 {offsets = [0, 256], sizes = [1, 48], strides = [1, 1]} : vector<1x512xf32> to vector<1x48xf32>
    %418 = math.tanh %417 : vector<1x48xf32>
    %419 = vector.extract_strided_slice %404 {offsets = [0, 384], sizes = [1, 48], strides = [1, 1]} : vector<1x512xf32> to vector<1x48xf32>
    %420 = arith.negf %419 : vector<1x48xf32>
    %421 = math.exp %420 : vector<1x48xf32>
    %cst_107 = arith.constant 1.000000e+00 : f32
    %422 = vector.broadcast %cst_107 : f32 to vector<1x48xf32>
    %423 = arith.addf %422, %421 : vector<1x48xf32>
    %424 = arith.divf %422, %423 : vector<1x48xf32>
    %425 = arith.mulf %416, %397 : vector<1x48xf32>
    %426 = arith.mulf %410, %418 : vector<1x48xf32>
    %427 = arith.addf %425, %426 : vector<1x48xf32>
    %428 = math.tanh %427 : vector<1x48xf32>
    %429 = arith.mulf %424, %428 : vector<1x48xf32>
    %c13_108 = arith.constant 13 : index
    %c0_109 = arith.constant 0 : index
    %430 = vector.load %arg6[%c13_108, %c0_109] : memref<16x48xf32, #tpu.memory_space<vmem>>, vector<1x48xf32>
    tpu.vector_store %arg6[%c13_108, %c0_109], %429 {strides = array<i32>} : memref<16x48xf32, #tpu.memory_space<vmem>>, vector<1x48xf32>,
    %431 = arith.truncf %429 : vector<1x48xf32> to vector<1x48xbf16>
    %cst_110 = arith.constant dense<0.000000e+00> : vector<1x512xf32>
    %432 = tpu.matmul %431, %3, %cst_110 {dimension_numbers = #tpu.dot_dimension_numbers<[1], [0], [0], [1], [0, 0, 1, 1], [], []>} : vector<1x48xbf16>, vector<48x512xbf16>, vector<1x512xf32> -> vector<1x512xf32>
    %c14 = arith.constant 14 : index
    %c0_111 = arith.constant 0 : index
    %433 = vector.load %arg5[%c14, %c0_111] : memref<16x512xf32, #tpu.memory_space<vmem>>, vector<1x512xf32>
    %434 = arith.addf %433, %432 : vector<1x512xf32>
    %435 = vector.extract_strided_slice %434 {offsets = [0, 0], sizes = [1, 48], strides = [1, 1]} : vector<1x512xf32> to vector<1x48xf32>
    %436 = arith.negf %435 : vector<1x48xf32>
    %437 = math.exp %436 : vector<1x48xf32>
    %cst_112 = arith.constant 1.000000e+00 : f32
    %438 = vector.broadcast %cst_112 : f32 to vector<1x48xf32>
    %439 = arith.addf %438, %437 : vector<1x48xf32>
    %440 = arith.divf %438, %439 : vector<1x48xf32>
    %441 = vector.extract_strided_slice %434 {offsets = [0, 128], sizes = [1, 48], strides = [1, 1]} : vector<1x512xf32> to vector<1x48xf32>
    %442 = arith.negf %441 : vector<1x48xf32>
    %443 = math.exp %442 : vector<1x48xf32>
    %cst_113 = arith.constant 1.000000e+00 : f32
    %444 = vector.broadcast %cst_113 : f32 to vector<1x48xf32>
    %445 = arith.addf %444, %443 : vector<1x48xf32>
    %446 = arith.divf %444, %445 : vector<1x48xf32>
    %447 = vector.extract_strided_slice %434 {offsets = [0, 256], sizes = [1, 48], strides = [1, 1]} : vector<1x512xf32> to vector<1x48xf32>
    %448 = math.tanh %447 : vector<1x48xf32>
    %449 = vector.extract_strided_slice %434 {offsets = [0, 384], sizes = [1, 48], strides = [1, 1]} : vector<1x512xf32> to vector<1x48xf32>
    %450 = arith.negf %449 : vector<1x48xf32>
    %451 = math.exp %450 : vector<1x48xf32>
    %cst_114 = arith.constant 1.000000e+00 : f32
    %452 = vector.broadcast %cst_114 : f32 to vector<1x48xf32>
    %453 = arith.addf %452, %451 : vector<1x48xf32>
    %454 = arith.divf %452, %453 : vector<1x48xf32>
    %455 = arith.mulf %446, %427 : vector<1x48xf32>
    %456 = arith.mulf %440, %448 : vector<1x48xf32>
    %457 = arith.addf %455, %456 : vector<1x48xf32>
    %458 = math.tanh %457 : vector<1x48xf32>
    %459 = arith.mulf %454, %458 : vector<1x48xf32>
    %c14_115 = arith.constant 14 : index
    %c0_116 = arith.constant 0 : index
    %460 = vector.load %arg6[%c14_115, %c0_116] : memref<16x48xf32, #tpu.memory_space<vmem>>, vector<1x48xf32>
    tpu.vector_store %arg6[%c14_115, %c0_116], %459 {strides = array<i32>} : memref<16x48xf32, #tpu.memory_space<vmem>>, vector<1x48xf32>,
    %461 = arith.truncf %459 : vector<1x48xf32> to vector<1x48xbf16>
    %cst_117 = arith.constant dense<0.000000e+00> : vector<1x512xf32>
    %462 = tpu.matmul %461, %3, %cst_117 {dimension_numbers = #tpu.dot_dimension_numbers<[1], [0], [0], [1], [0, 0, 1, 1], [], []>} : vector<1x48xbf16>, vector<48x512xbf16>, vector<1x512xf32> -> vector<1x512xf32>
    %c15 = arith.constant 15 : index
    %c0_118 = arith.constant 0 : index
    %463 = vector.load %arg5[%c15, %c0_118] : memref<16x512xf32, #tpu.memory_space<vmem>>, vector<1x512xf32>
    %464 = arith.addf %463, %462 : vector<1x512xf32>
    %465 = vector.extract_strided_slice %464 {offsets = [0, 0], sizes = [1, 48], strides = [1, 1]} : vector<1x512xf32> to vector<1x48xf32>
    %466 = arith.negf %465 : vector<1x48xf32>
    %467 = math.exp %466 : vector<1x48xf32>
    %cst_119 = arith.constant 1.000000e+00 : f32
    %468 = vector.broadcast %cst_119 : f32 to vector<1x48xf32>
    %469 = arith.addf %468, %467 : vector<1x48xf32>
    %470 = arith.divf %468, %469 : vector<1x48xf32>
    %471 = vector.extract_strided_slice %464 {offsets = [0, 128], sizes = [1, 48], strides = [1, 1]} : vector<1x512xf32> to vector<1x48xf32>
    %472 = arith.negf %471 : vector<1x48xf32>
    %473 = math.exp %472 : vector<1x48xf32>
    %cst_120 = arith.constant 1.000000e+00 : f32
    %474 = vector.broadcast %cst_120 : f32 to vector<1x48xf32>
    %475 = arith.addf %474, %473 : vector<1x48xf32>
    %476 = arith.divf %474, %475 : vector<1x48xf32>
    %477 = vector.extract_strided_slice %464 {offsets = [0, 256], sizes = [1, 48], strides = [1, 1]} : vector<1x512xf32> to vector<1x48xf32>
    %478 = math.tanh %477 : vector<1x48xf32>
    %479 = vector.extract_strided_slice %464 {offsets = [0, 384], sizes = [1, 48], strides = [1, 1]} : vector<1x512xf32> to vector<1x48xf32>
    %480 = arith.negf %479 : vector<1x48xf32>
    %481 = math.exp %480 : vector<1x48xf32>
    %cst_121 = arith.constant 1.000000e+00 : f32
    %482 = vector.broadcast %cst_121 : f32 to vector<1x48xf32>
    %483 = arith.addf %482, %481 : vector<1x48xf32>
    %484 = arith.divf %482, %483 : vector<1x48xf32>
    %485 = arith.mulf %476, %457 : vector<1x48xf32>
    %486 = arith.mulf %470, %478 : vector<1x48xf32>
    %487 = arith.addf %485, %486 : vector<1x48xf32>
    %488 = math.tanh %487 : vector<1x48xf32>
    %489 = arith.mulf %484, %488 : vector<1x48xf32>
    %c15_122 = arith.constant 15 : index
    %c0_123 = arith.constant 0 : index
    %490 = vector.load %arg6[%c15_122, %c0_123] : memref<16x48xf32, #tpu.memory_space<vmem>>, vector<1x48xf32>
    tpu.vector_store %arg6[%c15_122, %c0_123], %489 {strides = array<i32>} : memref<16x48xf32, #tpu.memory_space<vmem>>, vector<1x48xf32>,
    %c0_124 = arith.constant 0 : index
    %c0_125 = arith.constant 0 : index
    %491 = vector.load %arg6[%c0_124, %c0_125] : memref<16x48xf32, #tpu.memory_space<vmem>>, vector<16x48xf32>
    %c0_126 = arith.constant 0 : index
    %c0_127 = arith.constant 0 : index
    %492 = vector.load %arg3[%c0_126, %c0_127] : memref<56x128xf32, #tpu.memory_space<vmem>>, vector<48x12xf32>
    %c48 = arith.constant 48 : index
    %c0_128 = arith.constant 0 : index
    %493 = vector.load %arg3[%c48, %c0_128] : memref<56x128xf32, #tpu.memory_space<vmem>>, vector<1x12xf32>
    %c49 = arith.constant 49 : index
    %c0_129 = arith.constant 0 : index
    %494 = vector.load %arg3[%c49, %c0_129] : memref<56x128xf32, #tpu.memory_space<vmem>>, vector<1x12xf32>
    %c50 = arith.constant 50 : index
    %c0_130 = arith.constant 0 : index
    %495 = vector.load %arg3[%c50, %c0_130] : memref<56x128xf32, #tpu.memory_space<vmem>>, vector<1x1xf32>
    %cst_131 = arith.constant 0.000000e+00 : f32
    %496 = vector.broadcast %cst_131 : f32 to vector<16x48xf32>
    %497 = arith.maximumf %491, %496 : vector<16x48xf32>
    %cst_132 = arith.constant dense<0.000000e+00> : vector<16x12xf32>
    %498 = tpu.matmul %497, %492, %cst_132 {dimension_numbers = #tpu.dot_dimension_numbers<[1], [0], [0], [1], [0, 0, 1, 1], [], []>} : vector<16x48xf32>, vector<48x12xf32>, vector<16x12xf32> -> vector<16x12xf32>
    %499 = vector.broadcast %493 : vector<1x12xf32> to vector<16x12xf32>
    %500 = arith.addf %498, %499 : vector<16x12xf32>
    %cst_133 = arith.constant 0.000000e+00 : f32
    %501 = vector.broadcast %cst_133 : f32 to vector<16x12xf32>
    %502 = arith.maximumf %500, %501 : vector<16x12xf32>
    %503 = vector.broadcast %494 : vector<1x12xf32> to vector<16x12xf32>
    %504 = arith.mulf %502, %503 : vector<16x12xf32>
    %cst_134 = arith.constant dense<0.000000e+00> : vector<16xf32>
    %505 = vector.multi_reduction <add>, %504, %cst_134 [1] : vector<16x12xf32> to vector<16xf32>
    %506 = vector.shape_cast %505 : vector<16xf32> to vector<16x1xf32>
    %507 = vector.broadcast %495 : vector<1x1xf32> to vector<16x1xf32>
    %508 = arith.addf %506, %507 : vector<16x1xf32>
    %c0_135 = arith.constant 0 : index
    %c0_136 = arith.constant 0 : index
    %509 = vector.load %arg4[%c0_135, %c0_136] : memref<16x1xf32, #tpu.memory_space<vmem>>, vector<16x1xf32>
    tpu.vector_store %arg4[%c0_135, %c0_136], %508 {strides = array<i32>} : memref<16x1xf32, #tpu.memory_space<vmem>>, vector<16x1xf32>,
    return
  }
}

</mosaic_0001>

<llo_original>
// kernel: tpu_custom_call.1
$region0: #{tpu_custom_call.1}
  #allocation0 [shape = 'u32[]', space=smem, size = 0x4, offset = 0x4, fixed_abs, tag = 'smem constant byte address 0x4 - core index']
  #allocation1 [shape = 'u32[144,128]{1,0:T(1,128)}', space=vmem, size = 0x12000, scoped, tag = 'internal scratch']
  #allocation2 [shape = 'f32[16,512]{1,0:T(8,128)}', space=vmem, size = 0x8000, scoped, tag = 'scratch operand']
  #allocation3 [shape = 'f32[16,48]{1,0:T(8,128)}', space=vmem, size = 0x2000, scoped, tag = 'scratch operand']
  %s0 = inlined_call_operand.vmem [shape: f32[16,4], index: 0, kind: input, shape index: {}]
  %s1 = inlined_call_operand.hbm [shape: bf16[56,512], index: 1, kind: input, shape index: {}]
  %s2 = inlined_call_operand.vmem [shape: f32[1,512], index: 2, kind: input, shape index: {}]
  %s3 = inlined_call_operand.hbm [shape: f32[56,128], index: 3, kind: input, shape index: {}]
  %s4 = inlined_call_operand.vmem [shape: f32[16,1], index: 4, kind: output, shape index: {}]
  %s5 = sld [smem:[#allocation0]]
  $region34: #{tpu_custom_call.1} parent=0
    _
  %s7 = ssub.s32 1, %s5
  %s8 = scalar_select 0, %s7, %s5
  $region1: #{tpu_custom_call.1} parent=0
    #allocation4 [shape = 'u8[57344]{0}', space=vmem, size = 0xe000, scoped, tag = 'input window, operand 1, single buffered']
    #allocation5 [shape = 's32[1]{0}', space=sflag, size = 0x4, scoped, tag = 'scoped memory for tpu_custom_call.1']
    #allocation6 [shape = 'u8[28672]{0}', space=vmem, size = 0x7000, scoped, tag = 'input window, operand 3, single buffered']
    #allocation7 [shape = 's32[1]{0}', space=sflag, size = 0x4, scoped, tag = 'scoped memory for tpu_custom_call.1']
    %9 = vsyncpa [#allocation5], 0
    %10 = vsyncpa [#allocation7], 0
    // Predicated region
    $region2: #{tpu_custom_call.1} parent=1 // pred_check
      _
    $region3: #{tpu_custom_call.1} parent=1 // pred_check_branch
      %12 = sbr.rel (0) target = $region5
    $region4: #{tpu_custom_call.1} parent=1 // pred_region
      _
    $region5: #{tpu_custom_call.1} parent=1 // pred_fallthru
      _
    // Predicated region
    $region6: #{tpu_custom_call.1} parent=1 // pred_check
      _
    $region7: #{tpu_custom_call.1} parent=1 // pred_check_branch
      %14 = sbr.rel (0) target = $region9
    $region8: #{tpu_custom_call.1} parent=1 // pred_region
      %s16 = ssub.s32 1792, 1792
      %17 = vsyncadd [#allocation5], %s16
      %s18 = sshll.u32 [#allocation4], 4
      %s19 = int_to_ptr.vmem [resolvable:$true] %s18
      %24 = dma.hbm_to_vmem [thread:$0]  %s1, 1792, %s19, [#allocation5], 256, 256, 16
    $region9: #{tpu_custom_call.1} parent=1 // pred_fallthru
      _
    // Predicated region
    $region10: #{tpu_custom_call.1} parent=1 // pred_check
      _
    $region11: #{tpu_custom_call.1} parent=1 // pred_check_branch
      %26 = sbr.rel (0) target = $region13
    $region12: #{tpu_custom_call.1} parent=1 // pred_region
      _
    $region13: #{tpu_custom_call.1} parent=1 // pred_fallthru
      _
    // Predicated region
    $region14: #{tpu_custom_call.1} parent=1 // pred_check
      _
    $region15: #{tpu_custom_call.1} parent=1 // pred_check_branch
      %28 = sbr.rel (0) target = $region17
    $region16: #{tpu_custom_call.1} parent=1 // pred_region
      %s30 = ssub.s32 896, 896
      %31 = vsyncadd [#allocation7], %s30
      %s32 = sshll.u32 [#allocation6], 4
      %s33 = int_to_ptr.vmem [resolvable:$true] %s32
      %38 = dma.hbm_to_vmem [thread:$0]  %s3, 896, %s33, [#allocation7], 128, 128, 8
    $region17: #{tpu_custom_call.1} parent=1 // pred_fallthru
      _
    // Predicated region
    $region18: #{tpu_custom_call.1} parent=1 // pred_check
      _
    $region19: #{tpu_custom_call.1} parent=1 // pred_check_branch
      %40 = sbr.rel (0) target = $region21
    $region20: #{tpu_custom_call.1} parent=1 // pred_region
      %41 = dma.done [#allocation5], 1792
    $region21: #{tpu_custom_call.1} parent=1 // pred_fallthru
      _
    // Predicated region
    $region22: #{tpu_custom_call.1} parent=1 // pred_check
      _
    $region23: #{tpu_custom_call.1} parent=1 // pred_check_branch
      %43 = sbr.rel (0) target = $region25
    $region24: #{tpu_custom_call.1} parent=1 // pred_region
      %44 = dma.done [#allocation7], 896
    $region25: #{tpu_custom_call.1} parent=1 // pred_fallthru
      _
    %v46 = vld [vmem:[%s0] sm:$0xff]
    %v47 = vld [vmem:[%s0 + $0x8] sm:$0xff]
    %v48 = vpack.c.bf16 %v47, %v46
    %v49 = vld [vmem:[#allocation4] sm:$0x33]
    %v50 = vld [vmem:[#allocation4 + $0x8] sm:$0x33]
    %v51 = vld [vmem:[#allocation4 + $0x10] sm:$0xff]
    %v52 = vld [vmem:[#allocation4 + $0x18] sm:$0xff]
    %v53 = vld [vmem:[#allocation4 + $0x20] sm:$0xff]
    %v54 = vld [vmem:[#allocation4 + $0x28] sm:$0xff]
    %v55 = vld [vmem:[#allocation4 + $0x30] sm:$0xff]
    %v56 = vld [vmem:[#allocation4 + $0x38] sm:$0xff]
    %v57 = vld [vmem:[#allocation4 + $0x40] sm:$0xff]
    %v58 = vld [vmem:[#allocation4 + $0x48] sm:$0xff]
    %v59 = vld [vmem:[#allocation4 + $0x50] sm:$0xff]
    %v60 = vld [vmem:[#allocation4 + $0x58] sm:$0xff]
    %v61 = vld [vmem:[#allocation4 + $0x60] sm:$0xff]
    %v62 = vld [vmem:[#allocation4 + $0x68] sm:$0xff]
    %v63 = vld [vmem:[%s2] sm:$0xf]
    %v65 = vlaneseq
    %v66 = vshrl.u32 %v65, 7
    %v67 = vsub.s32 0, %v66
    %v68 = vrot.slane %v63, %v67
    %v69 = vlaneseq
    %v70 = vshrl.u32 %v69, 7
    %v71 = vsub.s32 1, %v70
    %v72 = vrot.slane %v63, %v71
    %v73 = vlaneseq
    %v74 = vshrl.u32 %v73, 7
    %v75 = vsub.s32 2, %v74
    %v76 = vrot.slane %v63, %v75
    %v77 = vlaneseq
    %v78 = vshrl.u32 %v77, 7
    %v79 = vsub.s32 3, %v78
    %v80 = vrot.slane %v63, %v79
    %v87 = vunpack.c.l.b16 %v49
    %v88 = vunpack.c.h.b16 %v49
    %v89 = vunpack.c.l.b16 %v50
    %v90 = vunpack.c.h.b16 %v50
    %v91 = vpack.c.b16 %v87, %v87
    %v92 = vpack.c.b16 %v88, %v88
    %v93 = vpack.c.b16 %v89, %v89
    %v94 = vpack.c.b16 %v90, %v90
    %vm95 = vcmask 31744
    %v97 = vsel %vm95, %v48, 0
    %vm99 = vcmask 1041408
    %v101 = vsel %vm99, %v91, 0
    %v104 = vsel %vm99, %v92, 0
    %v107 = vsel %vm99, %v93, 0
    %v110 = vsel %vm99, %v94, 0
    %112 = vmatprep.subr.bf16.mxu0 %v104
    %113 = vmatpush1.bf16.msra.mxu0 %v101
    %114 = vmatprep.subr.bf16.mxu0 0
    %115 = vmatpush1.bf16.msra.mxu0 0
    %116 = vmatprep.subr.bf16.mxu0 0
    %117 = vmatpush1.bf16.msra.mxu0 0
    %118 = vmatprep.subr.bf16.mxu0 0
    %119 = vmatpush1.bf16.msra.mxu0 0
    %120 = vmatprep.subr.bf16.mxu0 0
    %121 = vmatpush1.bf16.msra.mxu0 0
    %122 = vmatprep.subr.bf16.mxu0 0
    %123 = vmatpush1.bf16.msra.mxu0 0
    %124 = vmatprep.subr.bf16.mxu0 0
    %125 = vmatpush1.bf16.msra.mxu0 0
    %126 = vmatprep.subr.bf16.mxu0 0
    %127 = vmatpush1.bf16.msra.mxu0 0
    %128 = vmatprep.subr.bf16.mxu0 0
    %129 = vmatpush1.bf16.msra.mxu0 0
    %130 = vmatprep.subr.bf16.mxu0 0
    %131 = vmatpush1.bf16.msra.mxu0 0
    %132 = vmatprep.subr.bf16.mxu0 0
    %133 = vmatpush1.bf16.msra.mxu0 0
    %134 = vmatprep.subr.bf16.mxu0 0
    %135 = vmatpush1.bf16.msra.mxu0 0
    %136 = vmatprep.subr.bf16.mxu0 0
    %137 = vmatpush1.bf16.msra.mxu0 0
    %138 = vmatprep.subr.bf16.mxu0 0
    %139 = vmatpush1.bf16.msra.mxu0 0
    %140 = vmatprep.subr.bf16.mxu0 0
    %141 = vmatpush1.bf16.msra.mxu0 0
    %142 = vmatprep.subr.bf16.mxu0 0
    %143 = vmatpush1.bf16.msra.mxu0 0
    %144 = vmatprep.mubr.bf16.mxu0 0
    %145 = vmatmul.mubr.bf16.gmra.mrb[0].mxu0 %v97
    %v146 = vpop.f32.mrb[0].mxu0
    %v147 = vadd.f32 %v68, %v146
    %v148 = vpop.f32.mrb[0].mxu0
    %v149 = vadd.f32 %v72, %v148
    %v150 = vpop.f32.mrb[0].mxu0
    %v151 = vadd.f32 %v68, %v150
    %v152 = vpop.f32.mrb[0].mxu0
    %v153 = vadd.f32 %v72, %v152
    %154 = vdwg.mxu0
    %155 = vmatprep.subr.bf16.mxu0 %v110
    %156 = vmatpush1.bf16.msra.mxu0 %v107
    %157 = vmatprep.subr.bf16.mxu0 0
    %158 = vmatpush1.bf16.msra.mxu0 0
    %159 = vmatprep.subr.bf16.mxu0 0
    %160 = vmatpush1.bf16.msra.mxu0 0
    %161 = vmatprep.subr.bf16.mxu0 0
    %162 = vmatpush1.bf16.msra.mxu0 0
    %163 = vmatprep.subr.bf16.mxu0 0
    %164 = vmatpush1.bf16.msra.mxu0 0
    %165 = vmatprep.subr.bf16.mxu0 0
    %166 = vmatpush1.bf16.msra.mxu0 0
    %167 = vmatprep.subr.bf16.mxu0 0
    %168 = vmatpush1.bf16.msra.mxu0 0
    %169 = vmatprep.subr.bf16.mxu0 0
    %170 = vmatpush1.bf16.msra.mxu0 0
    %171 = vmatprep.subr.bf16.mxu0 0
    %172 = vmatpush1.bf16.msra.mxu0 0
    %173 = vmatprep.subr.bf16.mxu0 0
    %174 = vmatpush1.bf16.msra.mxu0 0
    %175 = vmatprep.subr.bf16.mxu0 0
    %176 = vmatpush1.bf16.msra.mxu0 0
    %177 = vmatprep.subr.bf16.mxu0 0
    %178 = vmatpush1.bf16.msra.mxu0 0
    %179 = vmatprep.subr.bf16.mxu0 0
    %180 = vmatpush1.bf16.msra.mxu0 0
    %181 = vmatprep.subr.bf16.mxu0 0
    %182 = vmatpush1.bf16.msra.mxu0 0
    %183 = vmatprep.subr.bf16.mxu0 0
    %184 = vmatpush1.bf16.msra.mxu0 0
    %185 = vmatprep.subr.bf16.mxu0 0
    %186 = vmatpush1.bf16.msra.mxu0 0
    %187 = vmatprep.mubr.bf16.mxu0 0
    %188 = vmatmul.mubr.bf16.gmra.mrb[0].mxu0 %v97
    %v189 = vpop.f32.mrb[0].mxu0
    %v190 = vadd.f32 %v76, %v189
    %v191 = vpop.f32.mrb[0].mxu0
    %v192 = vadd.f32 %v80, %v191
    %v193 = vpop.f32.mrb[0].mxu0
    %v194 = vadd.f32 %v76, %v193
    %v195 = vpop.f32.mrb[0].mxu0
    %v196 = vadd.f32 %v80, %v195
    %197 = vdwg.mxu0
    %198 = vst [vmem:[#allocation2] sm:$0xff] %v147
    %199 = vst [vmem:[#allocation2 + $0x8] sm:$0xff] %v149
    %200 = vst [vmem:[#allocation2 + $0x10] sm:$0xff] %v190
    %201 = vst [vmem:[#allocation2 + $0x18] sm:$0xff] %v192
    %202 = vst [vmem:[#allocation2 + $0x20] sm:$0xff] %v151
    %203 = vst [vmem:[#allocation2 + $0x28] sm:$0xff] %v153
    %204 = vst [vmem:[#allocation2 + $0x30] sm:$0xff] %v194
    %205 = vst [vmem:[#allocation2 + $0x38] sm:$0xff] %v196
    %v218 = vunpack.c.l.b16 %v51
    %v219 = vunpack.c.h.b16 %v51
    %v220 = vunpack.c.l.b16 %v52
    %v221 = vunpack.c.h.b16 %v52
    %v222 = vunpack.c.l.b16 %v53
    %v223 = vunpack.c.h.b16 %v53
    %v224 = vunpack.c.l.b16 %v54
    %v225 = vunpack.c.h.b16 %v54
    %v226 = vunpack.c.l.b16 %v55
    %v227 = vunpack.c.h.b16 %v55
    %v228 = vunpack.c.l.b16 %v56
    %v229 = vunpack.c.h.b16 %v56
    %v230 = vunpack.c.l.b16 %v57
    %v231 = vunpack.c.h.b16 %v57
    %v232 = vunpack.c.l.b16 %v58
    %v233 = vunpack.c.h.b16 %v58
    %v234 = vunpack.c.l.b16 %v59
    %v235 = vunpack.c.h.b16 %v59
    %v236 = vunpack.c.l.b16 %v60
    %v237 = vunpack.c.h.b16 %v60
    %v238 = vunpack.c.l.b16 %v61
    %v239 = vunpack.c.h.b16 %v61
    %v240 = vunpack.c.l.b16 %v62
    %v241 = vunpack.c.h.b16 %v62
    %v242 = vpack.c.b16 %v222, %v218
    %v243 = vpack.c.b16 %v223, %v219
    %v244 = vpack.c.b16 %v224, %v220
    %v245 = vpack.c.b16 %v225, %v221
    %v246 = vpack.c.b16 %v230, %v226
    %v247 = vpack.c.b16 %v231, %v227
    %v248 = vpack.c.b16 %v232, %v228
    %v249 = vpack.c.b16 %v233, %v229
    %v250 = vpack.c.b16 %v238, %v234
    %v251 = vpack.c.b16 %v239, %v235
    %v252 = vpack.c.b16 %v240, %v236
    %v253 = vpack.c.b16 %v241, %v237
    %vm266 = vcmask 392192
    %v268 = vsel %vm266, 0, 0
    %270 = vmatprep.subr.bf16.mxu0 %v243
    %271 = vmatpush1.bf16.msra.mxu0 %v242
    %272 = vmatprep.subr.bf16.mxu0 %v247
    %273 = vmatpush1.bf16.msra.mxu0 %v246
    %274 = vmatprep.subr.bf16.mxu0 %v251
    %275 = vmatpush1.bf16.msra.mxu0 %v250
    %276 = vmatprep.subr.bf16.mxu0 0
    %277 = vmatpush1.bf16.msra.mxu0 0
    %278 = vmatprep.subr.bf16.mxu0 0
    %279 = vmatpush1.bf16.msra.mxu0 0
    %280 = vmatprep.subr.bf16.mxu0 0
    %281 = vmatpush1.bf16.msra.mxu0 0
    %282 = vmatprep.subr.bf16.mxu0 0
    %283 = vmatpush1.bf16.msra.mxu0 0
    %284 = vmatprep.subr.bf16.mxu0 0
    %285 = vmatpush1.bf16.msra.mxu0 0
    %286 = vmatprep.subr.bf16.mxu0 0
    %287 = vmatpush1.bf16.msra.mxu0 0
    %288 = vmatprep.subr.bf16.mxu0 0
    %289 = vmatpush1.bf16.msra.mxu0 0
    %290 = vmatprep.subr.bf16.mxu0 0
    %291 = vmatpush1.bf16.msra.mxu0 0
    %292 = vmatprep.subr.bf16.mxu0 0
    %293 = vmatpush1.bf16.msra.mxu0 0
    %294 = vmatprep.subr.bf16.mxu0 0
    %295 = vmatpush1.bf16.msra.mxu0 0
    %296 = vmatprep.subr.bf16.mxu0 0
    %297 = vmatpush1.bf16.msra.mxu0 0
    %298 = vmatprep.subr.bf16.mxu0 0
    %299 = vmatpush1.bf16.msra.mxu0 0
    %300 = vmatprep.subr.bf16.mxu0 0
    %301 = vmatpush1.bf16.msra.mxu0 0
    %302 = vmatprep.mubr.bf16.mxu0 0
    %303 = vmatmul.mubr.bf16.gmra.mrb[0].mxu0 %v268
    %v304 = vpop.f32.mrb[0].mxu0
    %v305 = vadd.f32 0.0, %v304
    %v306 = vpop.f32.mrb[0].mxu0
    %v307 = vadd.f32 0.0, %v306
    %v308 = vpop.f32.mrb[0].mxu0
    %v309 = vpop.f32.mrb[0].mxu0
    %310 = vdwg.mxu0
    %311 = vmatprep.subr.bf16.mxu0 %v245
    %312 = vmatpush1.bf16.msra.mxu0 %v244
    %313 = vmatprep.subr.bf16.mxu0 %v249
    %314 = vmatpush1.bf16.msra.mxu0 %v248
    %315 = vmatprep.subr.bf16.mxu0 %v253
    %316 = vmatpush1.bf16.msra.mxu0 %v252
    %317 = vmatprep.subr.bf16.mxu0 0
    %318 = vmatpush1.bf16.msra.mxu0 0
    %319 = vmatprep.subr.bf16.mxu0 0
    %320 = vmatpush1.bf16.msra.mxu0 0
    %321 = vmatprep.subr.bf16.mxu0 0
    %322 = vmatpush1.bf16.msra.mxu0 0
    %323 = vmatprep.subr.bf16.mxu0 0
    %324 = vmatpush1.bf16.msra.mxu0 0
    %325 = vmatprep.subr.bf16.mxu0 0
    %326 = vmatpush1.bf16.msra.mxu0 0
    %327 = vmatprep.subr.bf16.mxu0 0
    %328 = vmatpush1.bf16.msra.mxu0 0
    %329 = vmatprep.subr.bf16.mxu0 0
    %330 = vmatpush1.bf16.msra.mxu0 0
    %331 = vmatprep.subr.bf16.mxu0 0
    %332 = vmatpush1.bf16.msra.mxu0 0
    %333 = vmatprep.subr.bf16.mxu0 0
    %334 = vmatpush1.bf16.msra.mxu0 0
    %335 = vmatprep.subr.bf16.mxu0 0
    %336 = vmatpush1.bf16.msra.mxu0 0
    %337 = vmatprep.subr.bf16.mxu0 0
    %338 = vmatpush1.bf16.msra.mxu0 0
    %339 = vmatprep.subr.bf16.mxu0 0
    %340 = vmatpush1.bf16.msra.mxu0 0
    %341 = vmatprep.subr.bf16.mxu0 0
    %342 = vmatpush1.bf16.msra.mxu0 0
    %343 = vmatprep.mubr.bf16.mxu0 0
    %344 = vmatmul.mubr.bf16.gmra.mrb[0].mxu0 %v268
    %v345 = vpop.f32.mrb[0].mxu0
    %v346 = vadd.f32 0.0, %v345
    %v347 = vpop.f32.mrb[0].mxu0
    %v348 = vadd.f32 0.0, %v347
    %v349 = vpop.f32.mrb[0].mxu0
    %v350 = vpop.f32.mrb[0].mxu0
    %351 = vdwg.mxu0
    %v352 = vld [vmem:[#allocation2] ss:$8 sm:$0xf]
    %v357 = vcombine.low %v305, %v307
    %v358 = vcombine.low %v346, %v348
    %v360 = vunpack.c.l.s4 1966171168
    %v361 = vunpack.c.0.s8 %v360
    %v362 = vlaneseq
    %v363 = vshrl.u32 %v362, 7
    %v364 = vsub.s32 %v361, %v363
    %v365 = vrot.slane %v357, %v364
    %v367 = vunpack.c.l.s4 1966171168
    %v368 = vunpack.c.0.s8 %v367
    %v369 = vlaneseq
    %v370 = vshrl.u32 %v369, 7
    %v371 = vsub.s32 %v368, %v370
    %v372 = vrot.slane %v358, %v371
    %v373 = vcombine.low %v365, %v372
    %v375 = vunpack.c.l.s4 1966171168
    %v376 = vunpack.c.0.s8 %v375
    %v377 = vlaneseq
    %v378 = vshrl.u32 %v377, 7
    %v379 = vsub.s32 %v376, %v378
    %v380 = vrot.slane %v373, %v379
    %v382 = vadd.f32 %v352, %v380
    %v383 = vxor.u32 %v382, 2147483648
    %v384 = vmul.f32 %v383, 1.442695
    %v385 = vpow.pop %v384
    %v386 = vadd.f32 %v385, 1.0
    %v387 = vrcp.pop %v386
    %v388 = vmul.f32 1.0, %v387
    %v390 = vrot.slane %v382, 1
    %v392 = vxor.u32 %v390, 2147483648
    %v393 = vmul.f32 %v392, 1.442695
    %v394 = vpow.pop %v393
    %v395 = vadd.f32 %v394, 1.0
    %v396 = vrcp.pop %v395
    %v397 = vmul.f32 1.0, %v396
    %v398 = vrot.slane %v382, 2
    %v400 = vtanh.pop %v398
    %v401 = vrot.slane %v382, 3
    %v403 = vxor.u32 %v401, 2147483648
    %v404 = vmul.f32 %v403, 1.442695
    %v405 = vpow.pop %v404
    %v406 = vadd.f32 %v405, 1.0
    %v407 = vrcp.pop %v406
    %v408 = vmul.f32 1.0, %v407
    %v409 = vmul.f32 %v397, 0.0
    %v410 = vmul.f32 %v388, %v400
    %v411 = vadd.f32 %v409, %v410
    %v412 = vtanh.pop %v411
    %v413 = vmul.f32 %v408, %v412
    %vm414 = vcmask 385024
    %415 = vst.msk [vmem:[#allocation3] sm:$0x1] %vm414, %v413
    %v416 = vpack.c.bf16 %v413, %v413
    %v418 = vsel %vm266, %v416, 0
    %420 = vmatprep.subr.bf16.mxu0 %v243
    %421 = vmatpush1.bf16.msra.mxu0 %v242
    %422 = vmatprep.subr.bf16.mxu0 %v247
    %423 = vmatpush1.bf16.msra.mxu0 %v246
    %424 = vmatprep.subr.bf16.mxu0 %v251
    %425 = vmatpush1.bf16.msra.mxu0 %v250
    %426 = vmatprep.subr.bf16.mxu0 0
    %427 = vmatpush1.bf16.msra.mxu0 0
    %428 = vmatprep.subr.bf16.mxu0 0
    %429 = vmatpush1.bf16.msra.mxu0 0
    %430 = vmatprep.subr.bf16.mxu0 0
    %431 = vmatpush1.bf16.msra.mxu0 0
    %432 = vmatprep.subr.bf16.mxu0 0
    %433 = vmatpush1.bf16.msra.mxu0 0
    %434 = vmatprep.subr.bf16.mxu0 0
    %435 = vmatpush1.bf16.msra.mxu0 0
    %436 = vmatprep.subr.bf16.mxu0 0
    %437 = vmatpush1.bf16.msra.mxu0 0
    %438 = vmatprep.subr.bf16.mxu0 0
    %439 = vmatpush1.bf16.msra.mxu0 0
    %440 = vmatprep.subr.bf16.mxu0 0
    %441 = vmatpush1.bf16.msra.mxu0 0
    %442 = vmatprep.subr.bf16.mxu0 0
    %443 = vmatpush1.bf16.msra.mxu0 0
    %444 = vmatprep.subr.bf16.mxu0 0
    %445 = vmatpush1.bf16.msra.mxu0 0
    %446 = vmatprep.subr.bf16.mxu0 0
    %447 = vmatpush1.bf16.msra.mxu0 0
    %448 = vmatprep.subr.bf16.mxu0 0
    %449 = vmatpush1.bf16.msra.mxu0 0
    %450 = vmatprep.subr.bf16.mxu0 0
    %451 = vmatpush1.bf16.msra.mxu0 0
    %452 = vmatprep.mubr.bf16.mxu0 0
    %453 = vmatmul.mubr.bf16.gmra.mrb[0].mxu0 %v418
    %v454 = vpop.f32.mrb[0].mxu0
    %v455 = vadd.f32 0.0, %v454
    %v456 = vpop.f32.mrb[0].mxu0
    %v457 = vadd.f32 0.0, %v456
    %v458 = vpop.f32.mrb[0].mxu0
    %v459 = vpop.f32.mrb[0].mxu0
    %460 = vdwg.mxu0
    %461 = vmatprep.subr.bf16.mxu0 %v245
    %462 = vmatpush1.bf16.msra.mxu0 %v244
    %463 = vmatprep.subr.bf16.mxu0 %v249
    %464 = vmatpush1.bf16.msra.mxu0 %v248
    %465 = vmatprep.subr.bf16.mxu0 %v253
    %466 = vmatpush1.bf16.msra.mxu0 %v252
    %467 = vmatprep.subr.bf16.mxu0 0
    %468 = vmatpush1.bf16.msra.mxu0 0
    %469 = vmatprep.subr.bf16.mxu0 0
    %470 = vmatpush1.bf16.msra.mxu0 0
    %471 = vmatprep.subr.bf16.mxu0 0
    %472 = vmatpush1.bf16.msra.mxu0 0
    %473 = vmatprep.subr.bf16.mxu0 0
    %474 = vmatpush1.bf16.msra.mxu0 0
    %475 = vmatprep.subr.bf16.mxu0 0
    %476 = vmatpush1.bf16.msra.mxu0 0
    %477 = vmatprep.subr.bf16.mxu0 0
    %478 = vmatpush1.bf16.msra.mxu0 0
    %479 = vmatprep.subr.bf16.mxu0 0
    %480 = vmatpush1.bf16.msra.mxu0 0
    %481 = vmatprep.subr.bf16.mxu0 0
    %482 = vmatpush1.bf16.msra.mxu0 0
    %483 = vmatprep.subr.bf16.mxu0 0
    %484 = vmatpush1.bf16.msra.mxu0 0
    %485 = vmatprep.subr.bf16.mxu0 0
    %486 = vmatpush1.bf16.msra.mxu0 0
    %487 = vmatprep.subr.bf16.mxu0 0
    %488 = vmatpush1.bf16.msra.mxu0 0
    %489 = vmatprep.subr.bf16.mxu0 0
    %490 = vmatpush1.bf16.msra.mxu0 0
    %491 = vmatprep.subr.bf16.mxu0 0
    %492 = vmatpush1.bf16.msra.mxu0 0
    %493 = vmatprep.mubr.bf16.mxu0 0
    %494 = vmatmul.mubr.bf16.gmra.mrb[0].mxu0 %v418
    %v495 = vpop.f32.mrb[0].mxu0
    %v496 = vadd.f32 0.0, %v495
    %v497 = vpop.f32.mrb[0].mxu0
    %v498 = vadd.f32 0.0, %v497
    %v499 = vpop.f32.mrb[0].mxu0
    %v500 = vpop.f32.mrb[0].mxu0
    %501 = vdwg.mxu0
    %s502 = scalar_lea.vmem [#allocation2], 1
    %v503 = vld [vmem:[%s502] ss:$8 sm:$0xf]
    %v508 = vcombine.low %v455, %v457
    %v509 = vcombine.low %v496, %v498
    %v511 = vunpack.c.l.s4 1966171168
    %v512 = vunpack.c.0.s8 %v511
    %v513 = vlaneseq
    %v514 = vshrl.u32 %v513, 7
    %v515 = vsub.s32 %v512, %v514
    %v516 = vrot.slane %v508, %v515
    %v518 = vunpack.c.l.s4 1966171168
    %v519 = vunpack.c.0.s8 %v518
    %v520 = vlaneseq
    %v521 = vshrl.u32 %v520, 7
    %v522 = vsub.s32 %v519, %v521
    %v523 = vrot.slane %v509, %v522
    %v524 = vcombine.low %v516, %v523
    %v526 = vunpack.c.l.s4 1966171168
    %v527 = vunpack.c.0.s8 %v526
    %v528 = vlaneseq
    %v529 = vshrl.u32 %v528, 7
    %v530 = vsub.s32 %v527, %v529
    %v531 = vrot.slane %v524, %v530
    %v533 = vadd.f32 %v503, %v531
    %v534 = vxor.u32 %v533, 2147483648
    %v535 = vmul.f32 %v534, 1.442695
    %v536 = vpow.pop %v535
    %v537 = vadd.f32 %v536, 1.0
    %v538 = vrcp.pop %v537
    %v539 = vmul.f32 1.0, %v538
    %v541 = vrot.slane %v533, 1
    %v543 = vxor.u32 %v541, 2147483648
    %v544 = vmul.f32 %v543, 1.442695
    %v545 = vpow.pop %v544
    %v546 = vadd.f32 %v545, 1.0
    %v547 = vrcp.pop %v546
    %v548 = vmul.f32 1.0, %v547
    %v549 = vrot.slane %v533, 2
    %v551 = vtanh.pop %v549
    %v552 = vrot.slane %v533, 3
    %v554 = vxor.u32 %v552, 2147483648
    %v555 = vmul.f32 %v554, 1.442695
    %v556 = vpow.pop %v555
    %v557 = vadd.f32 %v556, 1.0
    %v558 = vrcp.pop %v557
    %v559 = vmul.f32 1.0, %v558
    %v560 = vmul.f32 %v548, %v411
    %v561 = vmul.f32 %v539, %v551
    %v562 = vadd.f32 %v560, %v561
    %v563 = vtanh.pop %v562
    %v564 = vmul.f32 %v559, %v563
    %565 = vst.msk [vmem:[#allocation3 + $0x1] sm:$0x1] %vm414, %v564
    %v566 = vpack.c.bf16 %v564, %v564
    %v568 = vsel %vm266, %v566, 0
    %570 = vmatprep.subr.bf16.mxu0 %v243
    %571 = vmatpush1.bf16.msra.mxu0 %v242
    %572 = vmatprep.subr.bf16.mxu0 %v247
    %573 = vmatpush1.bf16.msra.mxu0 %v246
    %574 = vmatprep.subr.bf16.mxu0 %v251
    %575 = vmatpush1.bf16.msra.mxu0 %v250
    %576 = vmatprep.subr.bf16.mxu0 0
    %577 = vmatpush1.bf16.msra.mxu0 0
    %578 = vmatprep.subr.bf16.mxu0 0
    %579 = vmatpush1.bf16.msra.mxu0 0
    %580 = vmatprep.subr.bf16.mxu0 0
    %581 = vmatpush1.bf16.msra.mxu0 0
    %582 = vmatprep.subr.bf16.mxu0 0
    %583 = vmatpush1.bf16.msra.mxu0 0
    %584 = vmatprep.subr.bf16.mxu0 0
    %585 = vmatpush1.bf16.msra.mxu0 0
    %586 = vmatprep.subr.bf16.mxu0 0
    %587 = vmatpush1.bf16.msra.mxu0 0
    %588 = vmatprep.subr.bf16.mxu0 0
    %589 = vmatpush1.bf16.msra.mxu0 0
    %590 = vmatprep.subr.bf16.mxu0 0
    %591 = vmatpush1.bf16.msra.mxu0 0
    %592 = vmatprep.subr.bf16.mxu0 0
    %593 = vmatpush1.bf16.msra.mxu0 0
    %594 = vmatprep.subr.bf16.mxu0 0
    %595 = vmatpush1.bf16.msra.mxu0 0
    %596 = vmatprep.subr.bf16.mxu0 0
    %597 = vmatpush1.bf16.msra.mxu0 0
    %598 = vmatprep.subr.bf16.mxu0 0
    %599 = vmatpush1.bf16.msra.mxu0 0
    %600 = vmatprep.subr.bf16.mxu0 0
    %601 = vmatpush1.bf16.msra.mxu0 0
    %602 = vmatprep.mubr.bf16.mxu0 0
    %603 = vmatmul.mubr.bf16.gmra.mrb[0].mxu0 %v568
    %v604 = vpop.f32.mrb[0].mxu0
    %v605 = vadd.f32 0.0, %v604
    %v606 = vpop.f32.mrb[0].mxu0
    %v607 = vadd.f32 0.0, %v606
    %v608 = vpop.f32.mrb[0].mxu0
    %v609 = vpop.f32.mrb[0].mxu0
    %610 = vdwg.mxu0
    %611 = vmatprep.subr.bf16.mxu0 %v245
    %612 = vmatpush1.bf16.msra.mxu0 %v244
    %613 = vmatprep.subr.bf16.mxu0 %v249
    %614 = vmatpush1.bf16.msra.mxu0 %v248
    %615 = vmatprep.subr.bf16.mxu0 %v253
    %616 = vmatpush1.bf16.msra.mxu0 %v252
    %617 = vmatprep.subr.bf16.mxu0 0
    %618 = vmatpush1.bf16.msra.mxu0 0
    %619 = vmatprep.subr.bf16.mxu0 0
    %620 = vmatpush1.bf16.msra.mxu0 0
    %621 = vmatprep.subr.bf16.mxu0 0
    %622 = vmatpush1.bf16.msra.mxu0 0
    %623 = vmatprep.subr.bf16.mxu0 0
    %624 = vmatpush1.bf16.msra.mxu0 0
    %625 = vmatprep.subr.bf16.mxu0 0
    %626 = vmatpush1.bf16.msra.mxu0 0
    %627 = vmatprep.subr.bf16.mxu0 0
    %628 = vmatpush1.bf16.msra.mxu0 0
    %629 = vmatprep.subr.bf16.mxu0 0
    %630 = vmatpush1.bf16.msra.mxu0 0
    %631 = vmatprep.subr.bf16.mxu0 0
    %632 = vmatpush1.bf16.msra.mxu0 0
    %633 = vmatprep.subr.bf16.mxu0 0
    %634 = vmatpush1.bf16.msra.mxu0 0
    %635 = vmatprep.subr.bf16.mxu0 0
    %636 = vmatpush1.bf16.msra.mxu0 0
    %637 = vmatprep.subr.bf16.mxu0 0
    %638 = vmatpush1.bf16.msra.mxu0 0
    %639 = vmatprep.subr.bf16.mxu0 0
    %640 = vmatpush1.bf16.msra.mxu0 0
    %641 = vmatprep.subr.bf16.mxu0 0
    %642 = vmatpush1.bf16.msra.mxu0 0
    %643 = vmatprep.mubr.bf16.mxu0 0
    %644 = vmatmul.mubr.bf16.gmra.mrb[0].mxu0 %v568
    %v645 = vpop.f32.mrb[0].mxu0
    %v646 = vadd.f32 0.0, %v645
    %v647 = vpop.f32.mrb[0].mxu0
    %v648 = vadd.f32 0.0, %v647
    %v649 = vpop.f32.mrb[0].mxu0
    %v650 = vpop.f32.mrb[0].mxu0
    %651 = vdwg.mxu0
    %s652 = scalar_lea.vmem [#allocation2], 2
    %v653 = vld [vmem:[%s652] ss:$8 sm:$0xf]
    %v658 = vcombine.low %v605, %v607
    %v659 = vcombine.low %v646, %v648
    %v661 = vunpack.c.l.s4 1966171168
    %v662 = vunpack.c.0.s8 %v661
    %v663 = vlaneseq
    %v664 = vshrl.u32 %v663, 7
    %v665 = vsub.s32 %v662, %v664
    %v666 = vrot.slane %v658, %v665
    %v668 = vunpack.c.l.s4 1966171168
    %v669 = vunpack.c.0.s8 %v668
    %v670 = vlaneseq
    %v671 = vshrl.u32 %v670, 7
    %v672 = vsub.s32 %v669, %v671
    %v673 = vrot.slane %v659, %v672
    %v674 = vcombine.low %v666, %v673
    %v676 = vunpack.c.l.s4 1966171168
    %v677 = vunpack.c.0.s8 %v676
    %v678 = vlaneseq
    %v679 = vshrl.u32 %v678, 7
    %v680 = vsub.s32 %v677, %v679
    %v681 = vrot.slane %v674, %v680
    %v683 = vadd.f32 %v653, %v681
    %v684 = vxor.u32 %v683, 2147483648
    %v685 = vmul.f32 %v684, 1.442695
    %v686 = vpow.pop %v685
    %v687 = vadd.f32 %v686, 1.0
    %v688 = vrcp.pop %v687
    %v689 = vmul.f32 1.0, %v688
    %v691 = vrot.slane %v683, 1
    %v693 = vxor.u32 %v691, 2147483648
    %v694 = vmul.f32 %v693, 1.442695
    %v695 = vpow.pop %v694
    %v696 = vadd.f32 %v695, 1.0
    %v697 = vrcp.pop %v696
    %v698 = vmul.f32 1.0, %v697
    %v699 = vrot.slane %v683, 2
    %v701 = vtanh.pop %v699
    %v702 = vrot.slane %v683, 3
    %v704 = vxor.u32 %v702, 2147483648
    %v705 = vmul.f32 %v704, 1.442695
    %v706 = vpow.pop %v705
    %v707 = vadd.f32 %v706, 1.0
    %v708 = vrcp.pop %v707
    %v709 = vmul.f32 1.0, %v708
    %v710 = vmul.f32 %v698, %v562
    %v711 = vmul.f32 %v689, %v701
    %v712 = vadd.f32 %v710, %v711
    %v713 = vtanh.pop %v712
    %v714 = vmul.f32 %v709, %v713
    %715 = vst.msk [vmem:[#allocation3 + $0x2] sm:$0x1] %vm414, %v714
    %v716 = vpack.c.bf16 %v714, %v714
    %v718 = vsel %vm266, %v716, 0
    %720 = vmatprep.subr.bf16.mxu0 %v243
    %721 = vmatpush1.bf16.msra.mxu0 %v242
    %722 = vmatprep.subr.bf16.mxu0 %v247
    %723 = vmatpush1.bf16.msra.mxu0 %v246
    %724 = vmatprep.subr.bf16.mxu0 %v251
    %725 = vmatpush1.bf16.msra.mxu0 %v250
    %726 = vmatprep.subr.bf16.mxu0 0
    %727 = vmatpush1.bf16.msra.mxu0 0
    %728 = vmatprep.subr.bf16.mxu0 0
    %729 = vmatpush1.bf16.msra.mxu0 0
    %730 = vmatprep.subr.bf16.mxu0 0
    %731 = vmatpush1.bf16.msra.mxu0 0
    %732 = vmatprep.subr.bf16.mxu0 0
    %733 = vmatpush1.bf16.msra.mxu0 0
    %734 = vmatprep.subr.bf16.mxu0 0
    %735 = vmatpush1.bf16.msra.mxu0 0
    %736 = vmatprep.subr.bf16.mxu0 0
    %737 = vmatpush1.bf16.msra.mxu0 0
    %738 = vmatprep.subr.bf16.mxu0 0
    %739 = vmatpush1.bf16.msra.mxu0 0
    %740 = vmatprep.subr.bf16.mxu0 0
    %741 = vmatpush1.bf16.msra.mxu0 0
    %742 = vmatprep.subr.bf16.mxu0 0
    %743 = vmatpush1.bf16.msra.mxu0 0
    %744 = vmatprep.subr.bf16.mxu0 0
    %745 = vmatpush1.bf16.msra.mxu0 0
    %746 = vmatprep.subr.bf16.mxu0 0
    %747 = vmatpush1.bf16.msra.mxu0 0
    %748 = vmatprep.subr.bf16.mxu0 0
    %749 = vmatpush1.bf16.msra.mxu0 0
    %750 = vmatprep.subr.bf16.mxu0 0
    %751 = vmatpush1.bf16.msra.mxu0 0
    %752 = vmatprep.mubr.bf16.mxu0 0
    %753 = vmatmul.mubr.bf16.gmra.mrb[0].mxu0 %v718
    %v754 = vpop.f32.mrb[0].mxu0
    %v755 = vadd.f32 0.0, %v754
    %v756 = vpop.f32.mrb[0].mxu0
    %v757 = vadd.f32 0.0, %v756
    %v758 = vpop.f32.mrb[0].mxu0
    %v759 = vpop.f32.mrb[0].mxu0
    %760 = vdwg.mxu0
    %761 = vmatprep.subr.bf16.mxu0 %v245
    %762 = vmatpush1.bf16.msra.mxu0 %v244
    %763 = vmatprep.subr.bf16.mxu0 %v249
    %764 = vmatpush1.bf16.msra.mxu0 %v248
    %765 = vmatprep.subr.bf16.mxu0 %v253
    %766 = vmatpush1.bf16.msra.mxu0 %v252
    %767 = vmatprep.subr.bf16.mxu0 0
    %768 = vmatpush1.bf16.msra.mxu0 0
    %769 = vmatprep.subr.bf16.mxu0 0
    %770 = vmatpush1.bf16.msra.mxu0 0
    %771 = vmatprep.subr.bf16.mxu0 0
    %772 = vmatpush1.bf16.msra.mxu0 0
    %773 = vmatprep.subr.bf16.mxu0 0
    %774 = vmatpush1.bf16.msra.mxu0 0
    %775 = vmatprep.subr.bf16.mxu0 0
    %776 = vmatpush1.bf16.msra.mxu0 0
    %777 = vmatprep.subr.bf16.mxu0 0
    %778 = vmatpush1.bf16.msra.mxu0 0
    %779 = vmatprep.subr.bf16.mxu0 0
    %780 = vmatpush1.bf16.msra.mxu0 0
    %781 = vmatprep.subr.bf16.mxu0 0
    %782 = vmatpush1.bf16.msra.mxu0 0
    %783 = vmatprep.subr.bf16.mxu0 0
    %784 = vmatpush1.bf16.msra.mxu0 0
    %785 = vmatprep.subr.bf16.mxu0 0
    %786 = vmatpush1.bf16.msra.mxu0 0
    %787 = vmatprep.subr.bf16.mxu0 0
    %788 = vmatpush1.bf16.msra.mxu0 0
    %789 = vmatprep.subr.bf16.mxu0 0
    %790 = vmatpush1.bf16.msra.mxu0 0
    %791 = vmatprep.subr.bf16.mxu0 0
    %792 = vmatpush1.bf16.msra.mxu0 0
    %793 = vmatprep.mubr.bf16.mxu0 0
    %794 = vmatmul.mubr.bf16.gmra.mrb[0].mxu0 %v718
    %v795 = vpop.f32.mrb[0].mxu0
    %v796 = vadd.f32 0.0, %v795
    %v797 = vpop.f32.mrb[0].mxu0
    %v798 = vadd.f32 0.0, %v797
    %v799 = vpop.f32.mrb[0].mxu0
    %v800 = vpop.f32.mrb[0].mxu0
    %801 = vdwg.mxu0
    %s802 = scalar_lea.vmem [#allocation2], 3
    %v803 = vld [vmem:[%s802] ss:$8 sm:$0xf]
    %v808 = vcombine.low %v755, %v757
    %v809 = vcombine.low %v796, %v798
    %v811 = vunpack.c.l.s4 1966171168
    %v812 = vunpack.c.0.s8 %v811
    %v813 = vlaneseq
    %v814 = vshrl.u32 %v813, 7
    %v815 = vsub.s32 %v812, %v814
    %v816 = vrot.slane %v808, %v815
    %v818 = vunpack.c.l.s4 1966171168
    %v819 = vunpack.c.0.s8 %v818
    %v820 = vlaneseq
    %v821 = vshrl.u32 %v820, 7
    %v822 = vsub.s32 %v819, %v821
    %v823 = vrot.slane %v809, %v822
    %v824 = vcombine.low %v816, %v823
    %v826 = vunpack.c.l.s4 1966171168
    %v827 = vunpack.c.0.s8 %v826
    %v828 = vlaneseq
    %v829 = vshrl.u32 %v828, 7
    %v830 = vsub.s32 %v827, %v829
    %v831 = vrot.slane %v824, %v830
    %v833 = vadd.f32 %v803, %v831
    %v834 = vxor.u32 %v833, 2147483648
    %v835 = vmul.f32 %v834, 1.442695
    %v836 = vpow.pop %v835
    %v837 = vadd.f32 %v836, 1.0
    %v838 = vrcp.pop %v837
    %v839 = vmul.f32 1.0, %v838
    %v841 = vrot.slane %v833, 1
    %v843 = vxor.u32 %v841, 2147483648
    %v844 = vmul.f32 %v843, 1.442695
    %v845 = vpow.pop %v844
    %v846 = vadd.f32 %v845, 1.0
    %v847 = vrcp.pop %v846
    %v848 = vmul.f32 1.0, %v847
    %v849 = vrot.slane %v833, 2
    %v851 = vtanh.pop %v849
    %v852 = vrot.slane %v833, 3
    %v854 = vxor.u32 %v852, 2147483648
    %v855 = vmul.f32 %v854, 1.442695
    %v856 = vpow.pop %v855
    %v857 = vadd.f32 %v856, 1.0
    %v858 = vrcp.pop %v857
    %v859 = vmul.f32 1.0, %v858
    %v860 = vmul.f32 %v848, %v712
    %v861 = vmul.f32 %v839, %v851
    %v862 = vadd.f32 %v860, %v861
    %v863 = vtanh.pop %v862
    %v864 = vmul.f32 %v859, %v863
    %865 = vst.msk [vmem:[#allocation3 + $0x3] sm:$0x1] %vm414, %v864
    %v866 = vpack.c.bf16 %v864, %v864
    %v868 = vsel %vm266, %v866, 0
    %870 = vmatprep.subr.bf16.mxu0 %v243
    %871 = vmatpush1.bf16.msra.mxu0 %v242
    %872 = vmatprep.subr.bf16.mxu0 %v247
    %873 = vmatpush1.bf16.msra.mxu0 %v246
    %874 = vmatprep.subr.bf16.mxu0 %v251
    %875 = vmatpush1.bf16.msra.mxu0 %v250
    %876 = vmatprep.subr.bf16.mxu0 0
    %877 = vmatpush1.bf16.msra.mxu0 0
    %878 = vmatprep.subr.bf16.mxu0 0
    %879 = vmatpush1.bf16.msra.mxu0 0
    %880 = vmatprep.subr.bf16.mxu0 0
    %881 = vmatpush1.bf16.msra.mxu0 0
    %882 = vmatprep.subr.bf16.mxu0 0
    %883 = vmatpush1.bf16.msra.mxu0 0
    %884 = vmatprep.subr.bf16.mxu0 0
    %885 = vmatpush1.bf16.msra.mxu0 0
    %886 = vmatprep.subr.bf16.mxu0 0
    %887 = vmatpush1.bf16.msra.mxu0 0
    %888 = vmatprep.subr.bf16.mxu0 0
    %889 = vmatpush1.bf16.msra.mxu0 0
    %890 = vmatprep.subr.bf16.mxu0 0
    %891 = vmatpush1.bf16.msra.mxu0 0
    %892 = vmatprep.subr.bf16.mxu0 0
    %893 = vmatpush1.bf16.msra.mxu0 0
    %894 = vmatprep.subr.bf16.mxu0 0
    %895 = vmatpush1.bf16.msra.mxu0 0
    %896 = vmatprep.subr.bf16.mxu0 0
    %897 = vmatpush1.bf16.msra.mxu0 0
    %898 = vmatprep.subr.bf16.mxu0 0
    %899 = vmatpush1.bf16.msra.mxu0 0
    %900 = vmatprep.subr.bf16.mxu0 0
    %901 = vmatpush1.bf16.msra.mxu0 0
    %902 = vmatprep.mubr.bf16.mxu0 0
    %903 = vmatmul.mubr.bf16.gmra.mrb[0].mxu0 %v868
    %v904 = vpop.f32.mrb[0].mxu0
    %v905 = vadd.f32 0.0, %v904
    %v906 = vpop.f32.mrb[0].mxu0
    %v907 = vadd.f32 0.0, %v906
    %v908 = vpop.f32.mrb[0].mxu0
    %v909 = vpop.f32.mrb[0].mxu0
    %910 = vdwg.mxu0
    %911 = vmatprep.subr.bf16.mxu0 %v245
    %912 = vmatpush1.bf16.msra.mxu0 %v244
    %913 = vmatprep.subr.bf16.mxu0 %v249
    %914 = vmatpush1.bf16.msra.mxu0 %v248
    %915 = vmatprep.subr.bf16.mxu0 %v253
    %916 = vmatpush1.bf16.msra.mxu0 %v252
    %917 = vmatprep.subr.bf16.mxu0 0
    %918 = vmatpush1.bf16.msra.mxu0 0
    %919 = vmatprep.subr.bf16.mxu0 0
    %920 = vmatpush1.bf16.msra.mxu0 0
    %921 = vmatprep.subr.bf16.mxu0 0
    %922 = vmatpush1.bf16.msra.mxu0 0
    %923 = vmatprep.subr.bf16.mxu0 0
    %924 = vmatpush1.bf16.msra.mxu0 0
    %925 = vmatprep.subr.bf16.mxu0 0
    %926 = vmatpush1.bf16.msra.mxu0 0
    %927 = vmatprep.subr.bf16.mxu0 0
    %928 = vmatpush1.bf16.msra.mxu0 0
    %929 = vmatprep.subr.bf16.mxu0 0
    %930 = vmatpush1.bf16.msra.mxu0 0
    %931 = vmatprep.subr.bf16.mxu0 0
    %932 = vmatpush1.bf16.msra.mxu0 0
    %933 = vmatprep.subr.bf16.mxu0 0
    %934 = vmatpush1.bf16.msra.mxu0 0
    %935 = vmatprep.subr.bf16.mxu0 0
    %936 = vmatpush1.bf16.msra.mxu0 0
    %937 = vmatprep.subr.bf16.mxu0 0
    %938 = vmatpush1.bf16.msra.mxu0 0
    %939 = vmatprep.subr.bf16.mxu0 0
    %940 = vmatpush1.bf16.msra.mxu0 0
    %941 = vmatprep.subr.bf16.mxu0 0
    %942 = vmatpush1.bf16.msra.mxu0 0
    %943 = vmatprep.mubr.bf16.mxu0 0
    %944 = vmatmul.mubr.bf16.gmra.mrb[0].mxu0 %v868
    %v945 = vpop.f32.mrb[0].mxu0
    %v946 = vadd.f32 0.0, %v945
    %v947 = vpop.f32.mrb[0].mxu0
    %v948 = vadd.f32 0.0, %v947
    %v949 = vpop.f32.mrb[0].mxu0
    %v950 = vpop.f32.mrb[0].mxu0
    %951 = vdwg.mxu0
    %s952 = scalar_lea.vmem [#allocation2], 4
    %v953 = vld [vmem:[%s952] ss:$8 sm:$0xf]
    %v958 = vcombine.low %v905, %v907
    %v959 = vcombine.low %v946, %v948
    %v961 = vunpack.c.l.s4 1966171168
    %v962 = vunpack.c.0.s8 %v961
    %v963 = vlaneseq
    %v964 = vshrl.u32 %v963, 7
    %v965 = vsub.s32 %v962, %v964
    %v966 = vrot.slane %v958, %v965
    %v968 = vunpack.c.l.s4 1966171168
    %v969 = vunpack.c.0.s8 %v968
    %v970 = vlaneseq
    %v971 = vshrl.u32 %v970, 7
    %v972 = vsub.s32 %v969, %v971
    %v973 = vrot.slane %v959, %v972
    %v974 = vcombine.low %v966, %v973
    %v976 = vunpack.c.l.s4 1966171168
    %v977 = vunpack.c.0.s8 %v976
    %v978 = vlaneseq
    %v979 = vshrl.u32 %v978, 7
    %v980 = vsub.s32 %v977, %v979
    %v981 = vrot.slane %v974, %v980
    %v983 = vadd.f32 %v953, %v981
    %v984 = vxor.u32 %v983, 2147483648
    %v985 = vmul.f32 %v984, 1.442695
    %v986 = vpow.pop %v985
    %v987 = vadd.f32 %v986, 1.0
    %v988 = vrcp.pop %v987
    %v989 = vmul.f32 1.0, %v988
    %v991 = vrot.slane %v983, 1
    %v993 = vxor.u32 %v991, 2147483648
    %v994 = vmul.f32 %v993, 1.442695
    %v995 = vpow.pop %v994
    %v996 = vadd.f32 %v995, 1.0
    %v997 = vrcp.pop %v996
    %v998 = vmul.f32 1.0, %v997
    %v999 = vrot.slane %v983, 2
    %v1001 = vtanh.pop %v999
    %v1002 = vrot.slane %v983, 3
    %v1004 = vxor.u32 %v1002, 2147483648
    %v1005 = vmul.f32 %v1004, 1.442695
    %v1006 = vpow.pop %v1005
    %v1007 = vadd.f32 %v1006, 1.0
    %v1008 = vrcp.pop %v1007
    %v1009 = vmul.f32 1.0, %v1008
    %v1010 = vmul.f32 %v998, %v862
    %v1011 = vmul.f32 %v989, %v1001
    %v1012 = vadd.f32 %v1010, %v1011
    %v1013 = vtanh.pop %v1012
    %v1014 = vmul.f32 %v1009, %v1013
    %1015 = vst.msk [vmem:[#allocation3 + $0x4] sm:$0x1] %vm414, %v1014
    %v1016 = vpack.c.bf16 %v1014, %v1014
    %v1018 = vsel %vm266, %v1016, 0
    %1020 = vmatprep.subr.bf16.mxu0 %v243
    %1021 = vmatpush1.bf16.msra.mxu0 %v242
    %1022 = vmatprep.subr.bf16.mxu0 %v247
    %1023 = vmatpush1.bf16.msra.mxu0 %v246
    %1024 = vmatprep.subr.bf16.mxu0 %v251
    %1025 = vmatpush1.bf16.msra.mxu0 %v250
    %1026 = vmatprep.subr.bf16.mxu0 0
    %1027 = vmatpush1.bf16.msra.mxu0 0
    %1028 = vmatprep.subr.bf16.mxu0 0
    %1029 = vmatpush1.bf16.msra.mxu0 0
    %1030 = vmatprep.subr.bf16.mxu0 0
    %1031 = vmatpush1.bf16.msra.mxu0 0
    %1032 = vmatprep.subr.bf16.mxu0 0
    %1033 = vmatpush1.bf16.msra.mxu0 0
    %1034 = vmatprep.subr.bf16.mxu0 0
    %1035 = vmatpush1.bf16.msra.mxu0 0
    %1036 = vmatprep.subr.bf16.mxu0 0
    %1037 = vmatpush1.bf16.msra.mxu0 0
    %1038 = vmatprep.subr.bf16.mxu0 0
    %1039 = vmatpush1.bf16.msra.mxu0 0
    %1040 = vmatprep.subr.bf16.mxu0 0
    %1041 = vmatpush1.bf16.msra.mxu0 0
    %1042 = vmatprep.subr.bf16.mxu0 0
    %1043 = vmatpush1.bf16.msra.mxu0 0
    %1044 = vmatprep.subr.bf16.mxu0 0
    %1045 = vmatpush1.bf16.msra.mxu0 0
    %1046 = vmatprep.subr.bf16.mxu0 0
    %1047 = vmatpush1.bf16.msra.mxu0 0
    %1048 = vmatprep.subr.bf16.mxu0 0
    %1049 = vmatpush1.bf16.msra.mxu0 0
    %1050 = vmatprep.subr.bf16.mxu0 0
    %1051 = vmatpush1.bf16.msra.mxu0 0
    %1052 = vmatprep.mubr.bf16.mxu0 0
    %1053 = vmatmul.mubr.bf16.gmra.mrb[0].mxu0 %v1018
    %v1054 = vpop.f32.mrb[0].mxu0
    %v1055 = vadd.f32 0.0, %v1054
    %v1056 = vpop.f32.mrb[0].mxu0
    %v1057 = vadd.f32 0.0, %v1056
    %v1058 = vpop.f32.mrb[0].mxu0
    %v1059 = vpop.f32.mrb[0].mxu0
    %1060 = vdwg.mxu0
    %1061 = vmatprep.subr.bf16.mxu0 %v245
    %1062 = vmatpush1.bf16.msra.mxu0 %v244
    %1063 = vmatprep.subr.bf16.mxu0 %v249
    %1064 = vmatpush1.bf16.msra.mxu0 %v248
    %1065 = vmatprep.subr.bf16.mxu0 %v253
    %1066 = vmatpush1.bf16.msra.mxu0 %v252
    %1067 = vmatprep.subr.bf16.mxu0 0
    %1068 = vmatpush1.bf16.msra.mxu0 0
    %1069 = vmatprep.subr.bf16.mxu0 0
    %1070 = vmatpush1.bf16.msra.mxu0 0
    %1071 = vmatprep.subr.bf16.mxu0 0
    %1072 = vmatpush1.bf16.msra.mxu0 0
    %1073 = vmatprep.subr.bf16.mxu0 0
    %1074 = vmatpush1.bf16.msra.mxu0 0
    %1075 = vmatprep.subr.bf16.mxu0 0
    %1076 = vmatpush1.bf16.msra.mxu0 0
    %1077 = vmatprep.subr.bf16.mxu0 0
    %1078 = vmatpush1.bf16.msra.mxu0 0
    %1079 = vmatprep.subr.bf16.mxu0 0
    %1080 = vmatpush1.bf16.msra.mxu0 0
    %1081 = vmatprep.subr.bf16.mxu0 0
    %1082 = vmatpush1.bf16.msra.mxu0 0
    %1083 = vmatprep.subr.bf16.mxu0 0
    %1084 = vmatpush1.bf16.msra.mxu0 0
    %1085 = vmatprep.subr.bf16.mxu0 0
    %1086 = vmatpush1.bf16.msra.mxu0 0
    %1087 = vmatprep.subr.bf16.mxu0 0
    %1088 = vmatpush1.bf16.msra.mxu0 0
    %1089 = vmatprep.subr.bf16.mxu0 0
    %1090 = vmatpush1.bf16.msra.mxu0 0
    %1091 = vmatprep.subr.bf16.mxu0 0
    %1092 = vmatpush1.bf16.msra.mxu0 0
    %1093 = vmatprep.mubr.bf16.mxu0 0
    %1094 = vmatmul.mubr.bf16.gmra.mrb[0].mxu0 %v1018
    %v1095 = vpop.f32.mrb[0].mxu0
    %v1096 = vadd.f32 0.0, %v1095
    %v1097 = vpop.f32.mrb[0].mxu0
    %v1098 = vadd.f32 0.0, %v1097
    %v1099 = vpop.f32.mrb[0].mxu0
    %v1100 = vpop.f32.mrb[0].mxu0
    %1101 = vdwg.mxu0
    %s1102 = scalar_lea.vmem [#allocation2], 5
    %v1103 = vld [vmem:[%s1102] ss:$8 sm:$0xf]
    %v1108 = vcombine.low %v1055, %v1057
    %v1109 = vcombine.low %v1096, %v1098
    %v1111 = vunpack.c.l.s4 1966171168
    %v1112 = vunpack.c.0.s8 %v1111
    %v1113 = vlaneseq
    %v1114 = vshrl.u32 %v1113, 7
    %v1115 = vsub.s32 %v1112, %v1114
    %v1116 = vrot.slane %v1108, %v1115
    %v1118 = vunpack.c.l.s4 1966171168
    %v1119 = vunpack.c.0.s8 %v1118
    %v1120 = vlaneseq
    %v1121 = vshrl.u32 %v1120, 7
    %v1122 = vsub.s32 %v1119, %v1121
    %v1123 = vrot.slane %v1109, %v1122
    %v1124 = vcombine.low %v1116, %v1123
    %v1126 = vunpack.c.l.s4 1966171168
    %v1127 = vunpack.c.0.s8 %v1126
    %v1128 = vlaneseq
    %v1129 = vshrl.u32 %v1128, 7
    %v1130 = vsub.s32 %v1127, %v1129
    %v1131 = vrot.slane %v1124, %v1130
    %v1133 = vadd.f32 %v1103, %v1131
    %v1134 = vxor.u32 %v1133, 2147483648
    %v1135 = vmul.f32 %v1134, 1.442695
    %v1136 = vpow.pop %v1135
    %v1137 = vadd.f32 %v1136, 1.0
    %v1138 = vrcp.pop %v1137
    %v1139 = vmul.f32 1.0, %v1138
    %v1141 = vrot.slane %v1133, 1
    %v1143 = vxor.u32 %v1141, 2147483648
    %v1144 = vmul.f32 %v1143, 1.442695
    %v1145 = vpow.pop %v1144
    %v1146 = vadd.f32 %v1145, 1.0
    %v1147 = vrcp.pop %v1146
    %v1148 = vmul.f32 1.0, %v1147
    %v1149 = vrot.slane %v1133, 2
    %v1151 = vtanh.pop %v1149
    %v1152 = vrot.slane %v1133, 3
    %v1154 = vxor.u32 %v1152, 2147483648
    %v1155 = vmul.f32 %v1154, 1.442695
    %v1156 = vpow.pop %v1155
    %v1157 = vadd.f32 %v1156, 1.0
    %v1158 = vrcp.pop %v1157
    %v1159 = vmul.f32 1.0, %v1158
    %v1160 = vmul.f32 %v1148, %v1012
    %v1161 = vmul.f32 %v1139, %v1151
    %v1162 = vadd.f32 %v1160, %v1161
    %v1163 = vtanh.pop %v1162
    %v1164 = vmul.f32 %v1159, %v1163
    %1165 = vst.msk [vmem:[#allocation3 + $0x5] sm:$0x1] %vm414, %v1164
    %v1166 = vpack.c.bf16 %v1164, %v1164
    %v1168 = vsel %vm266, %v1166, 0
    %1170 = vmatprep.subr.bf16.mxu0 %v243
    %1171 = vmatpush1.bf16.msra.mxu0 %v242
    %1172 = vmatprep.subr.bf16.mxu0 %v247
    %1173 = vmatpush1.bf16.msra.mxu0 %v246
    %1174 = vmatprep.subr.bf16.mxu0 %v251
    %1175 = vmatpush1.bf16.msra.mxu0 %v250
    %1176 = vmatprep.subr.bf16.mxu0 0
    %1177 = vmatpush1.bf16.msra.mxu0 0
    %1178 = vmatprep.subr.bf16.mxu0 0
    %1179 = vmatpush1.bf16.msra.mxu0 0
    %1180 = vmatprep.subr.bf16.mxu0 0
    %1181 = vmatpush1.bf16.msra.mxu0 0
    %1182 = vmatprep.subr.bf16.mxu0 0
    %1183 = vmatpush1.bf16.msra.mxu0 0
    %1184 = vmatprep.subr.bf16.mxu0 0
    %1185 = vmatpush1.bf16.msra.mxu0 0
    %1186 = vmatprep.subr.bf16.mxu0 0
    %1187 = vmatpush1.bf16.msra.mxu0 0
    %1188 = vmatprep.subr.bf16.mxu0 0
    %1189 = vmatpush1.bf16.msra.mxu0 0
    %1190 = vmatprep.subr.bf16.mxu0 0
    %1191 = vmatpush1.bf16.msra.mxu0 0
    %1192 = vmatprep.subr.bf16.mxu0 0
    %1193 = vmatpush1.bf16.msra.mxu0 0
    %1194 = vmatprep.subr.bf16.mxu0 0
    %1195 = vmatpush1.bf16.msra.mxu0 0
    %1196 = vmatprep.subr.bf16.mxu0 0
    %1197 = vmatpush1.bf16.msra.mxu0 0
    %1198 = vmatprep.subr.bf16.mxu0 0
    %1199 = vmatpush1.bf16.msra.mxu0 0
    %1200 = vmatprep.subr.bf16.mxu0 0
    %1201 = vmatpush1.bf16.msra.mxu0 0
    %1202 = vmatprep.mubr.bf16.mxu0 0
    %1203 = vmatmul.mubr.bf16.gmra.mrb[0].mxu0 %v1168
    %v1204 = vpop.f32.mrb[0].mxu0
    %v1205 = vadd.f32 0.0, %v1204
    %v1206 = vpop.f32.mrb[0].mxu0
    %v1207 = vadd.f32 0.0, %v1206
    %v1208 = vpop.f32.mrb[0].mxu0
    %v1209 = vpop.f32.mrb[0].mxu0
    %1210 = vdwg.mxu0
    %1211 = vmatprep.subr.bf16.mxu0 %v245
    %1212 = vmatpush1.bf16.msra.mxu0 %v244
    %1213 = vmatprep.subr.bf16.mxu0 %v249
    %1214 = vmatpush1.bf16.msra.mxu0 %v248
    %1215 = vmatprep.subr.bf16.mxu0 %v253
    %1216 = vmatpush1.bf16.msra.mxu0 %v252
    %1217 = vmatprep.subr.bf16.mxu0 0
    %1218 = vmatpush1.bf16.msra.mxu0 0
    %1219 = vmatprep.subr.bf16.mxu0 0
    %1220 = vmatpush1.bf16.msra.mxu0 0
    %1221 = vmatprep.subr.bf16.mxu0 0
    %1222 = vmatpush1.bf16.msra.mxu0 0
    %1223 = vmatprep.subr.bf16.mxu0 0
    %1224 = vmatpush1.bf16.msra.mxu0 0
    %1225 = vmatprep.subr.bf16.mxu0 0
    %1226 = vmatpush1.bf16.msra.mxu0 0
    %1227 = vmatprep.subr.bf16.mxu0 0
    %1228 = vmatpush1.bf16.msra.mxu0 0
    %1229 = vmatprep.subr.bf16.mxu0 0
    %1230 = vmatpush1.bf16.msra.mxu0 0
    %1231 = vmatprep.subr.bf16.mxu0 0
    %1232 = vmatpush1.bf16.msra.mxu0 0
    %1233 = vmatprep.subr.bf16.mxu0 0
    %1234 = vmatpush1.bf16.msra.mxu0 0
    %1235 = vmatprep.subr.bf16.mxu0 0
    %1236 = vmatpush1.bf16.msra.mxu0 0
    %1237 = vmatprep.subr.bf16.mxu0 0
    %1238 = vmatpush1.bf16.msra.mxu0 0
    %1239 = vmatprep.subr.bf16.mxu0 0
    %1240 = vmatpush1.bf16.msra.mxu0 0
    %1241 = vmatprep.subr.bf16.mxu0 0
    %1242 = vmatpush1.bf16.msra.mxu0 0
    %1243 = vmatprep.mubr.bf16.mxu0 0
    %1244 = vmatmul.mubr.bf16.gmra.mrb[0].mxu0 %v1168
    %v1245 = vpop.f32.mrb[0].mxu0
    %v1246 = vadd.f32 0.0, %v1245
    %v1247 = vpop.f32.mrb[0].mxu0
    %v1248 = vadd.f32 0.0, %v1247
    %v1249 = vpop.f32.mrb[0].mxu0
    %v1250 = vpop.f32.mrb[0].mxu0
    %1251 = vdwg.mxu0
    %s1252 = scalar_lea.vmem [#allocation2], 6
    %v1253 = vld [vmem:[%s1252] ss:$8 sm:$0xf]
    %v1258 = vcombine.low %v1205, %v1207
    %v1259 = vcombine.low %v1246, %v1248
    %v1261 = vunpack.c.l.s4 1966171168
    %v1262 = vunpack.c.0.s8 %v1261
    %v1263 = vlaneseq
    %v1264 = vshrl.u32 %v1263, 7
    %v1265 = vsub.s32 %v1262, %v1264
    %v1266 = vrot.slane %v1258, %v1265
    %v1268 = vunpack.c.l.s4 1966171168
    %v1269 = vunpack.c.0.s8 %v1268
    %v1270 = vlaneseq
    %v1271 = vshrl.u32 %v1270, 7
    %v1272 = vsub.s32 %v1269, %v1271
    %v1273 = vrot.slane %v1259, %v1272
    %v1274 = vcombine.low %v1266, %v1273
    %v1276 = vunpack.c.l.s4 1966171168
    %v1277 = vunpack.c.0.s8 %v1276
    %v1278 = vlaneseq
    %v1279 = vshrl.u32 %v1278, 7
    %v1280 = vsub.s32 %v1277, %v1279
    %v1281 = vrot.slane %v1274, %v1280
    %v1283 = vadd.f32 %v1253, %v1281
    %v1284 = vxor.u32 %v1283, 2147483648
    %v1285 = vmul.f32 %v1284, 1.442695
    %v1286 = vpow.pop %v1285
    %v1287 = vadd.f32 %v1286, 1.0
    %v1288 = vrcp.pop %v1287
    %v1289 = vmul.f32 1.0, %v1288
    %v1291 = vrot.slane %v1283, 1
    %v1293 = vxor.u32 %v1291, 2147483648
    %v1294 = vmul.f32 %v1293, 1.442695
    %v1295 = vpow.pop %v1294
    %v1296 = vadd.f32 %v1295, 1.0
    %v1297 = vrcp.pop %v1296
    %v1298 = vmul.f32 1.0, %v1297
    %v1299 = vrot.slane %v1283, 2
    %v1301 = vtanh.pop %v1299
    %v1302 = vrot.slane %v1283, 3
    %v1304 = vxor.u32 %v1302, 2147483648
    %v1305 = vmul.f32 %v1304, 1.442695
    %v1306 = vpow.pop %v1305
    %v1307 = vadd.f32 %v1306, 1.0
    %v1308 = vrcp.pop %v1307
    %v1309 = vmul.f32 1.0, %v1308
    %v1310 = vmul.f32 %v1298, %v1162
    %v1311 = vmul.f32 %v1289, %v1301
    %v1312 = vadd.f32 %v1310, %v1311
    %v1313 = vtanh.pop %v1312
    %v1314 = vmul.f32 %v1309, %v1313
    %1315 = vst.msk [vmem:[#allocation3 + $0x6] sm:$0x1] %vm414, %v1314
    %v1316 = vpack.c.bf16 %v1314, %v1314
    %v1318 = vsel %vm266, %v1316, 0
    %1320 = vmatprep.subr.bf16.mxu0 %v243
    %1321 = vmatpush1.bf16.msra.mxu0 %v242
    %1322 = vmatprep.subr.bf16.mxu0 %v247
    %1323 = vmatpush1.bf16.msra.mxu0 %v246
    %1324 = vmatprep.subr.bf16.mxu0 %v251
    %1325 = vmatpush1.bf16.msra.mxu0 %v250
    %1326 = vmatprep.subr.bf16.mxu0 0
    %1327 = vmatpush1.bf16.msra.mxu0 0
    %1328 = vmatprep.subr.bf16.mxu0 0
    %1329 = vmatpush1.bf16.msra.mxu0 0
    %1330 = vmatprep.subr.bf16.mxu0 0
    %1331 = vmatpush1.bf16.msra.mxu0 0
    %1332 = vmatprep.subr.bf16.mxu0 0
    %1333 = vmatpush1.bf16.msra.mxu0 0
    %1334 = vmatprep.subr.bf16.mxu0 0
    %1335 = vmatpush1.bf16.msra.mxu0 0
    %1336 = vmatprep.subr.bf16.mxu0 0
    %1337 = vmatpush1.bf16.msra.mxu0 0
    %1338 = vmatprep.subr.bf16.mxu0 0
    %1339 = vmatpush1.bf16.msra.mxu0 0
    %1340 = vmatprep.subr.bf16.mxu0 0
    %1341 = vmatpush1.bf16.msra.mxu0 0
    %1342 = vmatprep.subr.bf16.mxu0 0
    %1343 = vmatpush1.bf16.msra.mxu0 0
    %1344 = vmatprep.subr.bf16.mxu0 0
    %1345 = vmatpush1.bf16.msra.mxu0 0
    %1346 = vmatprep.subr.bf16.mxu0 0
    %1347 = vmatpush1.bf16.msra.mxu0 0
    %1348 = vmatprep.subr.bf16.mxu0 0
    %1349 = vmatpush1.bf16.msra.mxu0 0
    %1350 = vmatprep.subr.bf16.mxu0 0
    %1351 = vmatpush1.bf16.msra.mxu0 0
    %1352 = vmatprep.mubr.bf16.mxu0 0
    %1353 = vmatmul.mubr.bf16.gmra.mrb[0].mxu0 %v1318
    %v1354 = vpop.f32.mrb[0].mxu0
    %v1355 = vadd.f32 0.0, %v1354
    %v1356 = vpop.f32.mrb[0].mxu0
    %v1357 = vadd.f32 0.0, %v1356
    %v1358 = vpop.f32.mrb[0].mxu0
    %v1359 = vpop.f32.mrb[0].mxu0
    %1360 = vdwg.mxu0
    %1361 = vmatprep.subr.bf16.mxu0 %v245
    %1362 = vmatpush1.bf16.msra.mxu0 %v244
    %1363 = vmatprep.subr.bf16.mxu0 %v249
    %1364 = vmatpush1.bf16.msra.mxu0 %v248
    %1365 = vmatprep.subr.bf16.mxu0 %v253
    %1366 = vmatpush1.bf16.msra.mxu0 %v252
    %1367 = vmatprep.subr.bf16.mxu0 0
    %1368 = vmatpush1.bf16.msra.mxu0 0
    %1369 = vmatprep.subr.bf16.mxu0 0
    %1370 = vmatpush1.bf16.msra.mxu0 0
    %1371 = vmatprep.subr.bf16.mxu0 0
    %1372 = vmatpush1.bf16.msra.mxu0 0
    %1373 = vmatprep.subr.bf16.mxu0 0
    %1374 = vmatpush1.bf16.msra.mxu0 0
    %1375 = vmatprep.subr.bf16.mxu0 0
    %1376 = vmatpush1.bf16.msra.mxu0 0
    %1377 = vmatprep.subr.bf16.mxu0 0
    %1378 = vmatpush1.bf16.msra.mxu0 0
    %1379 = vmatprep.subr.bf16.mxu0 0
    %1380 = vmatpush1.bf16.msra.mxu0 0
    %1381 = vmatprep.subr.bf16.mxu0 0
    %1382 = vmatpush1.bf16.msra.mxu0 0
    %1383 = vmatprep.subr.bf16.mxu0 0
    %1384 = vmatpush1.bf16.msra.mxu0 0
    %1385 = vmatprep.subr.bf16.mxu0 0
    %1386 = vmatpush1.bf16.msra.mxu0 0
    %1387 = vmatprep.subr.bf16.mxu0 0
    %1388 = vmatpush1.bf16.msra.mxu0 0
    %1389 = vmatprep.subr.bf16.mxu0 0
    %1390 = vmatpush1.bf16.msra.mxu0 0
    %1391 = vmatprep.subr.bf16.mxu0 0
    %1392 = vmatpush1.bf16.msra.mxu0 0
    %1393 = vmatprep.mubr.bf16.mxu0 0
    %1394 = vmatmul.mubr.bf16.gmra.mrb[0].mxu0 %v1318
    %v1395 = vpop.f32.mrb[0].mxu0
    %v1396 = vadd.f32 0.0, %v1395
    %v1397 = vpop.f32.mrb[0].mxu0
    %v1398 = vadd.f32 0.0, %v1397
    %v1399 = vpop.f32.mrb[0].mxu0
    %v1400 = vpop.f32.mrb[0].mxu0
    %1401 = vdwg.mxu0
    %s1402 = scalar_lea.vmem [#allocation2], 7
    %v1403 = vld [vmem:[%s1402] ss:$8 sm:$0xf]
    %v1408 = vcombine.low %v1355, %v1357
    %v1409 = vcombine.low %v1396, %v1398
    %v1411 = vunpack.c.l.s4 1966171168
    %v1412 = vunpack.c.0.s8 %v1411
    %v1413 = vlaneseq
    %v1414 = vshrl.u32 %v1413, 7
    %v1415 = vsub.s32 %v1412, %v1414
    %v1416 = vrot.slane %v1408, %v1415
    %v1418 = vunpack.c.l.s4 1966171168
    %v1419 = vunpack.c.0.s8 %v1418
    %v1420 = vlaneseq
    %v1421 = vshrl.u32 %v1420, 7
    %v1422 = vsub.s32 %v1419, %v1421
    %v1423 = vrot.slane %v1409, %v1422
    %v1424 = vcombine.low %v1416, %v1423
    %v1426 = vunpack.c.l.s4 1966171168
    %v1427 = vunpack.c.0.s8 %v1426
    %v1428 = vlaneseq
    %v1429 = vshrl.u32 %v1428, 7
    %v1430 = vsub.s32 %v1427, %v1429
    %v1431 = vrot.slane %v1424, %v1430
    %v1433 = vadd.f32 %v1403, %v1431
    %v1434 = vxor.u32 %v1433, 2147483648
    %v1435 = vmul.f32 %v1434, 1.442695
    %v1436 = vpow.pop %v1435
    %v1437 = vadd.f32 %v1436, 1.0
    %v1438 = vrcp.pop %v1437
    %v1439 = vmul.f32 1.0, %v1438
    %v1441 = vrot.slane %v1433, 1
    %v1443 = vxor.u32 %v1441, 2147483648
    %v1444 = vmul.f32 %v1443, 1.442695
    %v1445 = vpow.pop %v1444
    %v1446 = vadd.f32 %v1445, 1.0
    %v1447 = vrcp.pop %v1446
    %v1448 = vmul.f32 1.0, %v1447
    %v1449 = vrot.slane %v1433, 2
    %v1451 = vtanh.pop %v1449
    %v1452 = vrot.slane %v1433, 3
    %v1454 = vxor.u32 %v1452, 2147483648
    %v1455 = vmul.f32 %v1454, 1.442695
    %v1456 = vpow.pop %v1455
    %v1457 = vadd.f32 %v1456, 1.0
    %v1458 = vrcp.pop %v1457
    %v1459 = vmul.f32 1.0, %v1458
    %v1460 = vmul.f32 %v1448, %v1312
    %v1461 = vmul.f32 %v1439, %v1451
    %v1462 = vadd.f32 %v1460, %v1461
    %v1463 = vtanh.pop %v1462
    %v1464 = vmul.f32 %v1459, %v1463
    %1465 = vst.msk [vmem:[#allocation3 + $0x7] sm:$0x1] %vm414, %v1464
    %v1466 = vpack.c.bf16 %v1464, %v1464
    %v1468 = vsel %vm266, %v1466, 0
    %1470 = vmatprep.subr.bf16.mxu0 %v243
    %1471 = vmatpush1.bf16.msra.mxu0 %v242
    %1472 = vmatprep.subr.bf16.mxu0 %v247
    %1473 = vmatpush1.bf16.msra.mxu0 %v246
    %1474 = vmatprep.subr.bf16.mxu0 %v251
    %1475 = vmatpush1.bf16.msra.mxu0 %v250
    %1476 = vmatprep.subr.bf16.mxu0 0
    %1477 = vmatpush1.bf16.msra.mxu0 0
    %1478 = vmatprep.subr.bf16.mxu0 0
    %1479 = vmatpush1.bf16.msra.mxu0 0
    %1480 = vmatprep.subr.bf16.mxu0 0
    %1481 = vmatpush1.bf16.msra.mxu0 0
    %1482 = vmatprep.subr.bf16.mxu0 0
    %1483 = vmatpush1.bf16.msra.mxu0 0
    %1484 = vmatprep.subr.bf16.mxu0 0
    %1485 = vmatpush1.bf16.msra.mxu0 0
    %1486 = vmatprep.subr.bf16.mxu0 0
    %1487 = vmatpush1.bf16.msra.mxu0 0
    %1488 = vmatprep.subr.bf16.mxu0 0
    %1489 = vmatpush1.bf16.msra.mxu0 0
    %1490 = vmatprep.subr.bf16.mxu0 0
    %1491 = vmatpush1.bf16.msra.mxu0 0
    %1492 = vmatprep.subr.bf16.mxu0 0
    %1493 = vmatpush1.bf16.msra.mxu0 0
    %1494 = vmatprep.subr.bf16.mxu0 0
    %1495 = vmatpush1.bf16.msra.mxu0 0
    %1496 = vmatprep.subr.bf16.mxu0 0
    %1497 = vmatpush1.bf16.msra.mxu0 0
    %1498 = vmatprep.subr.bf16.mxu0 0
    %1499 = vmatpush1.bf16.msra.mxu0 0
    %1500 = vmatprep.subr.bf16.mxu0 0
    %1501 = vmatpush1.bf16.msra.mxu0 0
    %1502 = vmatprep.mubr.bf16.mxu0 0
    %1503 = vmatmul.mubr.bf16.gmra.mrb[0].mxu0 %v1468
    %v1504 = vpop.f32.mrb[0].mxu0
    %v1505 = vadd.f32 0.0, %v1504
    %v1506 = vpop.f32.mrb[0].mxu0
    %v1507 = vadd.f32 0.0, %v1506
    %v1508 = vpop.f32.mrb[0].mxu0
    %v1509 = vpop.f32.mrb[0].mxu0
    %1510 = vdwg.mxu0
    %1511 = vmatprep.subr.bf16.mxu0 %v245
    %1512 = vmatpush1.bf16.msra.mxu0 %v244
    %1513 = vmatprep.subr.bf16.mxu0 %v249
    %1514 = vmatpush1.bf16.msra.mxu0 %v248
    %1515 = vmatprep.subr.bf16.mxu0 %v253
    %1516 = vmatpush1.bf16.msra.mxu0 %v252
    %1517 = vmatprep.subr.bf16.mxu0 0
    %1518 = vmatpush1.bf16.msra.mxu0 0
    %1519 = vmatprep.subr.bf16.mxu0 0
    %1520 = vmatpush1.bf16.msra.mxu0 0
    %1521 = vmatprep.subr.bf16.mxu0 0
    %1522 = vmatpush1.bf16.msra.mxu0 0
    %1523 = vmatprep.subr.bf16.mxu0 0
    %1524 = vmatpush1.bf16.msra.mxu0 0
    %1525 = vmatprep.subr.bf16.mxu0 0
    %1526 = vmatpush1.bf16.msra.mxu0 0
    %1527 = vmatprep.subr.bf16.mxu0 0
    %1528 = vmatpush1.bf16.msra.mxu0 0
    %1529 = vmatprep.subr.bf16.mxu0 0
    %1530 = vmatpush1.bf16.msra.mxu0 0
    %1531 = vmatprep.subr.bf16.mxu0 0
    %1532 = vmatpush1.bf16.msra.mxu0 0
    %1533 = vmatprep.subr.bf16.mxu0 0
    %1534 = vmatpush1.bf16.msra.mxu0 0
    %1535 = vmatprep.subr.bf16.mxu0 0
    %1536 = vmatpush1.bf16.msra.mxu0 0
    %1537 = vmatprep.subr.bf16.mxu0 0
    %1538 = vmatpush1.bf16.msra.mxu0 0
    %1539 = vmatprep.subr.bf16.mxu0 0
    %1540 = vmatpush1.bf16.msra.mxu0 0
    %1541 = vmatprep.subr.bf16.mxu0 0
    %1542 = vmatpush1.bf16.msra.mxu0 0
    %1543 = vmatprep.mubr.bf16.mxu0 0
    %1544 = vmatmul.mubr.bf16.gmra.mrb[0].mxu0 %v1468
    %v1545 = vpop.f32.mrb[0].mxu0
    %v1546 = vadd.f32 0.0, %v1545
    %v1547 = vpop.f32.mrb[0].mxu0
    %v1548 = vadd.f32 0.0, %v1547
    %v1549 = vpop.f32.mrb[0].mxu0
    %v1550 = vpop.f32.mrb[0].mxu0
    %1551 = vdwg.mxu0
    %s1552 = scalar_lea.vmem [#allocation2], 32
    %v1553 = vld [vmem:[%s1552] ss:$8 sm:$0xf]
    %v1558 = vcombine.low %v1505, %v1507
    %v1559 = vcombine.low %v1546, %v1548
    %v1561 = vunpack.c.l.s4 1966171168
    %v1562 = vunpack.c.0.s8 %v1561
    %v1563 = vlaneseq
    %v1564 = vshrl.u32 %v1563, 7
    %v1565 = vsub.s32 %v1562, %v1564
    %v1566 = vrot.slane %v1558, %v1565
    %v1568 = vunpack.c.l.s4 1966171168
    %v1569 = vunpack.c.0.s8 %v1568
    %v1570 = vlaneseq
    %v1571 = vshrl.u32 %v1570, 7
    %v1572 = vsub.s32 %v1569, %v1571
    %v1573 = vrot.slane %v1559, %v1572
    %v1574 = vcombine.low %v1566, %v1573
    %v1576 = vunpack.c.l.s4 1966171168
    %v1577 = vunpack.c.0.s8 %v1576
    %v1578 = vlaneseq
    %v1579 = vshrl.u32 %v1578, 7
    %v1580 = vsub.s32 %v1577, %v1579
    %v1581 = vrot.slane %v1574, %v1580
    %v1583 = vadd.f32 %v1553, %v1581
    %v1584 = vxor.u32 %v1583, 2147483648
    %v1585 = vmul.f32 %v1584, 1.442695
    %v1586 = vpow.pop %v1585
    %v1587 = vadd.f32 %v1586, 1.0
    %v1588 = vrcp.pop %v1587
    %v1589 = vmul.f32 1.0, %v1588
    %v1591 = vrot.slane %v1583, 1
    %v1593 = vxor.u32 %v1591, 2147483648
    %v1594 = vmul.f32 %v1593, 1.442695
    %v1595 = vpow.pop %v1594
    %v1596 = vadd.f32 %v1595, 1.0
    %v1597 = vrcp.pop %v1596
    %v1598 = vmul.f32 1.0, %v1597
    %v1599 = vrot.slane %v1583, 2
    %v1601 = vtanh.pop %v1599
    %v1602 = vrot.slane %v1583, 3
    %v1604 = vxor.u32 %v1602, 2147483648
    %v1605 = vmul.f32 %v1604, 1.442695
    %v1606 = vpow.pop %v1605
    %v1607 = vadd.f32 %v1606, 1.0
    %v1608 = vrcp.pop %v1607
    %v1609 = vmul.f32 1.0, %v1608
    %v1610 = vmul.f32 %v1598, %v1462
    %v1611 = vmul.f32 %v1589, %v1601
    %v1612 = vadd.f32 %v1610, %v1611
    %v1613 = vtanh.pop %v1612
    %v1614 = vmul.f32 %v1609, %v1613
    %1615 = vst.msk [vmem:[#allocation3 + $0x8] sm:$0x1] %vm414, %v1614
    %v1616 = vpack.c.bf16 %v1614, %v1614
    %v1618 = vsel %vm266, %v1616, 0
    %1620 = vmatprep.subr.bf16.mxu0 %v243
    %1621 = vmatpush1.bf16.msra.mxu0 %v242
    %1622 = vmatprep.subr.bf16.mxu0 %v247
    %1623 = vmatpush1.bf16.msra.mxu0 %v246
    %1624 = vmatprep.subr.bf16.mxu0 %v251
    %1625 = vmatpush1.bf16.msra.mxu0 %v250
    %1626 = vmatprep.subr.bf16.mxu0 0
    %1627 = vmatpush1.bf16.msra.mxu0 0
    %1628 = vmatprep.subr.bf16.mxu0 0
    %1629 = vmatpush1.bf16.msra.mxu0 0
    %1630 = vmatprep.subr.bf16.mxu0 0
    %1631 = vmatpush1.bf16.msra.mxu0 0
    %1632 = vmatprep.subr.bf16.mxu0 0
    %1633 = vmatpush1.bf16.msra.mxu0 0
    %1634 = vmatprep.subr.bf16.mxu0 0
    %1635 = vmatpush1.bf16.msra.mxu0 0
    %1636 = vmatprep.subr.bf16.mxu0 0
    %1637 = vmatpush1.bf16.msra.mxu0 0
    %1638 = vmatprep.subr.bf16.mxu0 0
    %1639 = vmatpush1.bf16.msra.mxu0 0
    %1640 = vmatprep.subr.bf16.mxu0 0
    %1641 = vmatpush1.bf16.msra.mxu0 0
    %1642 = vmatprep.subr.bf16.mxu0 0
    %1643 = vmatpush1.bf16.msra.mxu0 0
    %1644 = vmatprep.subr.bf16.mxu0 0
    %1645 = vmatpush1.bf16.msra.mxu0 0
    %1646 = vmatprep.subr.bf16.mxu0 0
    %1647 = vmatpush1.bf16.msra.mxu0 0
    %1648 = vmatprep.subr.bf16.mxu0 0
    %1649 = vmatpush1.bf16.msra.mxu0 0
    %1650 = vmatprep.subr.bf16.mxu0 0
    %1651 = vmatpush1.bf16.msra.mxu0 0
    %1652 = vmatprep.mubr.bf16.mxu0 0
    %1653 = vmatmul.mubr.bf16.gmra.mrb[0].mxu0 %v1618
    %v1654 = vpop.f32.mrb[0].mxu0
    %v1655 = vadd.f32 0.0, %v1654
    %v1656 = vpop.f32.mrb[0].mxu0
    %v1657 = vadd.f32 0.0, %v1656
    %v1658 = vpop.f32.mrb[0].mxu0
    %v1659 = vpop.f32.mrb[0].mxu0
    %1660 = vdwg.mxu0
    %1661 = vmatprep.subr.bf16.mxu0 %v245
    %1662 = vmatpush1.bf16.msra.mxu0 %v244
    %1663 = vmatprep.subr.bf16.mxu0 %v249
    %1664 = vmatpush1.bf16.msra.mxu0 %v248
    %1665 = vmatprep.subr.bf16.mxu0 %v253
    %1666 = vmatpush1.bf16.msra.mxu0 %v252
    %1667 = vmatprep.subr.bf16.mxu0 0
    %1668 = vmatpush1.bf16.msra.mxu0 0
    %1669 = vmatprep.subr.bf16.mxu0 0
    %1670 = vmatpush1.bf16.msra.mxu0 0
    %1671 = vmatprep.subr.bf16.mxu0 0
    %1672 = vmatpush1.bf16.msra.mxu0 0
    %1673 = vmatprep.subr.bf16.mxu0 0
    %1674 = vmatpush1.bf16.msra.mxu0 0
    %1675 = vmatprep.subr.bf16.mxu0 0
    %1676 = vmatpush1.bf16.msra.mxu0 0
    %1677 = vmatprep.subr.bf16.mxu0 0
    %1678 = vmatpush1.bf16.msra.mxu0 0
    %1679 = vmatprep.subr.bf16.mxu0 0
    %1680 = vmatpush1.bf16.msra.mxu0 0
    %1681 = vmatprep.subr.bf16.mxu0 0
    %1682 = vmatpush1.bf16.msra.mxu0 0
    %1683 = vmatprep.subr.bf16.mxu0 0
    %1684 = vmatpush1.bf16.msra.mxu0 0
    %1685 = vmatprep.subr.bf16.mxu0 0
    %1686 = vmatpush1.bf16.msra.mxu0 0
    %1687 = vmatprep.subr.bf16.mxu0 0
    %1688 = vmatpush1.bf16.msra.mxu0 0
    %1689 = vmatprep.subr.bf16.mxu0 0
    %1690 = vmatpush1.bf16.msra.mxu0 0
    %1691 = vmatprep.subr.bf16.mxu0 0
    %1692 = vmatpush1.bf16.msra.mxu0 0
    %1693 = vmatprep.mubr.bf16.mxu0 0
    %1694 = vmatmul.mubr.bf16.gmra.mrb[0].mxu0 %v1618
    %v1695 = vpop.f32.mrb[0].mxu0
    %v1696 = vadd.f32 0.0, %v1695
    %v1697 = vpop.f32.mrb[0].mxu0
    %v1698 = vadd.f32 0.0, %v1697
    %v1699 = vpop.f32.mrb[0].mxu0
    %v1700 = vpop.f32.mrb[0].mxu0
    %1701 = vdwg.mxu0
    %s1702 = scalar_lea.vmem [#allocation2], 33
    %v1703 = vld [vmem:[%s1702] ss:$8 sm:$0xf]
    %v1708 = vcombine.low %v1655, %v1657
    %v1709 = vcombine.low %v1696, %v1698
    %v1711 = vunpack.c.l.s4 1966171168
    %v1712 = vunpack.c.0.s8 %v1711
    %v1713 = vlaneseq
    %v1714 = vshrl.u32 %v1713, 7
    %v1715 = vsub.s32 %v1712, %v1714
    %v1716 = vrot.slane %v1708, %v1715
    %v1718 = vunpack.c.l.s4 1966171168
    %v1719 = vunpack.c.0.s8 %v1718
    %v1720 = vlaneseq
    %v1721 = vshrl.u32 %v1720, 7
    %v1722 = vsub.s32 %v1719, %v1721
    %v1723 = vrot.slane %v1709, %v1722
    %v1724 = vcombine.low %v1716, %v1723
    %v1726 = vunpack.c.l.s4 1966171168
    %v1727 = vunpack.c.0.s8 %v1726
    %v1728 = vlaneseq
    %v1729 = vshrl.u32 %v1728, 7
    %v1730 = vsub.s32 %v1727, %v1729
    %v1731 = vrot.slane %v1724, %v1730
    %v1733 = vadd.f32 %v1703, %v1731
    %v1734 = vxor.u32 %v1733, 2147483648
    %v1735 = vmul.f32 %v1734, 1.442695
    %v1736 = vpow.pop %v1735
    %v1737 = vadd.f32 %v1736, 1.0
    %v1738 = vrcp.pop %v1737
    %v1739 = vmul.f32 1.0, %v1738
    %v1741 = vrot.slane %v1733, 1
    %v1743 = vxor.u32 %v1741, 2147483648
    %v1744 = vmul.f32 %v1743, 1.442695
    %v1745 = vpow.pop %v1744
    %v1746 = vadd.f32 %v1745, 1.0
    %v1747 = vrcp.pop %v1746
    %v1748 = vmul.f32 1.0, %v1747
    %v1749 = vrot.slane %v1733, 2
    %v1751 = vtanh.pop %v1749
    %v1752 = vrot.slane %v1733, 3
    %v1754 = vxor.u32 %v1752, 2147483648
    %v1755 = vmul.f32 %v1754, 1.442695
    %v1756 = vpow.pop %v1755
    %v1757 = vadd.f32 %v1756, 1.0
    %v1758 = vrcp.pop %v1757
    %v1759 = vmul.f32 1.0, %v1758
    %v1760 = vmul.f32 %v1748, %v1612
    %v1761 = vmul.f32 %v1739, %v1751
    %v1762 = vadd.f32 %v1760, %v1761
    %v1763 = vtanh.pop %v1762
    %v1764 = vmul.f32 %v1759, %v1763
    %1765 = vst.msk [vmem:[#allocation3 + $0x9] sm:$0x1] %vm414, %v1764
    %v1766 = vpack.c.bf16 %v1764, %v1764
    %v1768 = vsel %vm266, %v1766, 0
    %1770 = vmatprep.subr.bf16.mxu0 %v243
    %1771 = vmatpush1.bf16.msra.mxu0 %v242
    %1772 = vmatprep.subr.bf16.mxu0 %v247
    %1773 = vmatpush1.bf16.msra.mxu0 %v246
    %1774 = vmatprep.subr.bf16.mxu0 %v251
    %1775 = vmatpush1.bf16.msra.mxu0 %v250
    %1776 = vmatprep.subr.bf16.mxu0 0
    %1777 = vmatpush1.bf16.msra.mxu0 0
    %1778 = vmatprep.subr.bf16.mxu0 0
    %1779 = vmatpush1.bf16.msra.mxu0 0
    %1780 = vmatprep.subr.bf16.mxu0 0
    %1781 = vmatpush1.bf16.msra.mxu0 0
    %1782 = vmatprep.subr.bf16.mxu0 0
    %1783 = vmatpush1.bf16.msra.mxu0 0
    %1784 = vmatprep.subr.bf16.mxu0 0
    %1785 = vmatpush1.bf16.msra.mxu0 0
    %1786 = vmatprep.subr.bf16.mxu0 0
    %1787 = vmatpush1.bf16.msra.mxu0 0
    %1788 = vmatprep.subr.bf16.mxu0 0
    %1789 = vmatpush1.bf16.msra.mxu0 0
    %1790 = vmatprep.subr.bf16.mxu0 0
    %1791 = vmatpush1.bf16.msra.mxu0 0
    %1792 = vmatprep.subr.bf16.mxu0 0
    %1793 = vmatpush1.bf16.msra.mxu0 0
    %1794 = vmatprep.subr.bf16.mxu0 0
    %1795 = vmatpush1.bf16.msra.mxu0 0
    %1796 = vmatprep.subr.bf16.mxu0 0
    %1797 = vmatpush1.bf16.msra.mxu0 0
    %1798 = vmatprep.subr.bf16.mxu0 0
    %1799 = vmatpush1.bf16.msra.mxu0 0
    %1800 = vmatprep.subr.bf16.mxu0 0
    %1801 = vmatpush1.bf16.msra.mxu0 0
    %1802 = vmatprep.mubr.bf16.mxu0 0
    %1803 = vmatmul.mubr.bf16.gmra.mrb[0].mxu0 %v1768
    %v1804 = vpop.f32.mrb[0].mxu0
    %v1805 = vadd.f32 0.0, %v1804
    %v1806 = vpop.f32.mrb[0].mxu0
    %v1807 = vadd.f32 0.0, %v1806
    %v1808 = vpop.f32.mrb[0].mxu0
    %v1809 = vpop.f32.mrb[0].mxu0
    %1810 = vdwg.mxu0
    %1811 = vmatprep.subr.bf16.mxu0 %v245
    %1812 = vmatpush1.bf16.msra.mxu0 %v244
    %1813 = vmatprep.subr.bf16.mxu0 %v249
    %1814 = vmatpush1.bf16.msra.mxu0 %v248
    %1815 = vmatprep.subr.bf16.mxu0 %v253
    %1816 = vmatpush1.bf16.msra.mxu0 %v252
    %1817 = vmatprep.subr.bf16.mxu0 0
    %1818 = vmatpush1.bf16.msra.mxu0 0
    %1819 = vmatprep.subr.bf16.mxu0 0
    %1820 = vmatpush1.bf16.msra.mxu0 0
    %1821 = vmatprep.subr.bf16.mxu0 0
    %1822 = vmatpush1.bf16.msra.mxu0 0
    %1823 = vmatprep.subr.bf16.mxu0 0
    %1824 = vmatpush1.bf16.msra.mxu0 0
    %1825 = vmatprep.subr.bf16.mxu0 0
    %1826 = vmatpush1.bf16.msra.mxu0 0
    %1827 = vmatprep.subr.bf16.mxu0 0
    %1828 = vmatpush1.bf16.msra.mxu0 0
    %1829 = vmatprep.subr.bf16.mxu0 0
    %1830 = vmatpush1.bf16.msra.mxu0 0
    %1831 = vmatprep.subr.bf16.mxu0 0
    %1832 = vmatpush1.bf16.msra.mxu0 0
    %1833 = vmatprep.subr.bf16.mxu0 0
    %1834 = vmatpush1.bf16.msra.mxu0 0
    %1835 = vmatprep.subr.bf16.mxu0 0
    %1836 = vmatpush1.bf16.msra.mxu0 0
    %1837 = vmatprep.subr.bf16.mxu0 0
    %1838 = vmatpush1.bf16.msra.mxu0 0
    %1839 = vmatprep.subr.bf16.mxu0 0
    %1840 = vmatpush1.bf16.msra.mxu0 0
    %1841 = vmatprep.subr.bf16.mxu0 0
    %1842 = vmatpush1.bf16.msra.mxu0 0
    %1843 = vmatprep.mubr.bf16.mxu0 0
    %1844 = vmatmul.mubr.bf16.gmra.mrb[0].mxu0 %v1768
    %v1845 = vpop.f32.mrb[0].mxu0
    %v1846 = vadd.f32 0.0, %v1845
    %v1847 = vpop.f32.mrb[0].mxu0
    %v1848 = vadd.f32 0.0, %v1847
    %v1849 = vpop.f32.mrb[0].mxu0
    %v1850 = vpop.f32.mrb[0].mxu0
    %1851 = vdwg.mxu0
    %s1852 = scalar_lea.vmem [#allocation2], 34
    %v1853 = vld [vmem:[%s1852] ss:$8 sm:$0xf]
    %v1858 = vcombine.low %v1805, %v1807
    %v1859 = vcombine.low %v1846, %v1848
    %v1861 = vunpack.c.l.s4 1966171168
    %v1862 = vunpack.c.0.s8 %v1861
    %v1863 = vlaneseq
    %v1864 = vshrl.u32 %v1863, 7
    %v1865 = vsub.s32 %v1862, %v1864
    %v1866 = vrot.slane %v1858, %v1865
    %v1868 = vunpack.c.l.s4 1966171168
    %v1869 = vunpack.c.0.s8 %v1868
    %v1870 = vlaneseq
    %v1871 = vshrl.u32 %v1870, 7
    %v1872 = vsub.s32 %v1869, %v1871
    %v1873 = vrot.slane %v1859, %v1872
    %v1874 = vcombine.low %v1866, %v1873
    %v1876 = vunpack.c.l.s4 1966171168
    %v1877 = vunpack.c.0.s8 %v1876
    %v1878 = vlaneseq
    %v1879 = vshrl.u32 %v1878, 7
    %v1880 = vsub.s32 %v1877, %v1879
    %v1881 = vrot.slane %v1874, %v1880
    %v1883 = vadd.f32 %v1853, %v1881
    %v1884 = vxor.u32 %v1883, 2147483648
    %v1885 = vmul.f32 %v1884, 1.442695
    %v1886 = vpow.pop %v1885
    %v1887 = vadd.f32 %v1886, 1.0
    %v1888 = vrcp.pop %v1887
    %v1889 = vmul.f32 1.0, %v1888
    %v1891 = vrot.slane %v1883, 1
    %v1893 = vxor.u32 %v1891, 2147483648
    %v1894 = vmul.f32 %v1893, 1.442695
    %v1895 = vpow.pop %v1894
    %v1896 = vadd.f32 %v1895, 1.0
    %v1897 = vrcp.pop %v1896
    %v1898 = vmul.f32 1.0, %v1897
    %v1899 = vrot.slane %v1883, 2
    %v1901 = vtanh.pop %v1899
    %v1902 = vrot.slane %v1883, 3
    %v1904 = vxor.u32 %v1902, 2147483648
    %v1905 = vmul.f32 %v1904, 1.442695
    %v1906 = vpow.pop %v1905
    %v1907 = vadd.f32 %v1906, 1.0
    %v1908 = vrcp.pop %v1907
    %v1909 = vmul.f32 1.0, %v1908
    %v1910 = vmul.f32 %v1898, %v1762
    %v1911 = vmul.f32 %v1889, %v1901
    %v1912 = vadd.f32 %v1910, %v1911
    %v1913 = vtanh.pop %v1912
    %v1914 = vmul.f32 %v1909, %v1913
    %1915 = vst.msk [vmem:[#allocation3 + $0xa] sm:$0x1] %vm414, %v1914
    %v1916 = vpack.c.bf16 %v1914, %v1914
    %v1918 = vsel %vm266, %v1916, 0
    %1920 = vmatprep.subr.bf16.mxu0 %v243
    %1921 = vmatpush1.bf16.msra.mxu0 %v242
    %1922 = vmatprep.subr.bf16.mxu0 %v247
    %1923 = vmatpush1.bf16.msra.mxu0 %v246
    %1924 = vmatprep.subr.bf16.mxu0 %v251
    %1925 = vmatpush1.bf16.msra.mxu0 %v250
    %1926 = vmatprep.subr.bf16.mxu0 0
    %1927 = vmatpush1.bf16.msra.mxu0 0
    %1928 = vmatprep.subr.bf16.mxu0 0
    %1929 = vmatpush1.bf16.msra.mxu0 0
    %1930 = vmatprep.subr.bf16.mxu0 0
    %1931 = vmatpush1.bf16.msra.mxu0 0
    %1932 = vmatprep.subr.bf16.mxu0 0
    %1933 = vmatpush1.bf16.msra.mxu0 0
    %1934 = vmatprep.subr.bf16.mxu0 0
    %1935 = vmatpush1.bf16.msra.mxu0 0
    %1936 = vmatprep.subr.bf16.mxu0 0
    %1937 = vmatpush1.bf16.msra.mxu0 0
    %1938 = vmatprep.subr.bf16.mxu0 0
    %1939 = vmatpush1.bf16.msra.mxu0 0
    %1940 = vmatprep.subr.bf16.mxu0 0
    %1941 = vmatpush1.bf16.msra.mxu0 0
    %1942 = vmatprep.subr.bf16.mxu0 0
    %1943 = vmatpush1.bf16.msra.mxu0 0
    %1944 = vmatprep.subr.bf16.mxu0 0
    %1945 = vmatpush1.bf16.msra.mxu0 0
    %1946 = vmatprep.subr.bf16.mxu0 0
    %1947 = vmatpush1.bf16.msra.mxu0 0
    %1948 = vmatprep.subr.bf16.mxu0 0
    %1949 = vmatpush1.bf16.msra.mxu0 0
    %1950 = vmatprep.subr.bf16.mxu0 0
    %1951 = vmatpush1.bf16.msra.mxu0 0
    %1952 = vmatprep.mubr.bf16.mxu0 0
    %1953 = vmatmul.mubr.bf16.gmra.mrb[0].mxu0 %v1918
    %v1954 = vpop.f32.mrb[0].mxu0
    %v1955 = vadd.f32 0.0, %v1954
    %v1956 = vpop.f32.mrb[0].mxu0
    %v1957 = vadd.f32 0.0, %v1956
    %v1958 = vpop.f32.mrb[0].mxu0
    %v1959 = vpop.f32.mrb[0].mxu0
    %1960 = vdwg.mxu0
    %1961 = vmatprep.subr.bf16.mxu0 %v245
    %1962 = vmatpush1.bf16.msra.mxu0 %v244
    %1963 = vmatprep.subr.bf16.mxu0 %v249
    %1964 = vmatpush1.bf16.msra.mxu0 %v248
    %1965 = vmatprep.subr.bf16.mxu0 %v253
    %1966 = vmatpush1.bf16.msra.mxu0 %v252
    %1967 = vmatprep.subr.bf16.mxu0 0
    %1968 = vmatpush1.bf16.msra.mxu0 0
    %1969 = vmatprep.subr.bf16.mxu0 0
    %1970 = vmatpush1.bf16.msra.mxu0 0
    %1971 = vmatprep.subr.bf16.mxu0 0
    %1972 = vmatpush1.bf16.msra.mxu0 0
    %1973 = vmatprep.subr.bf16.mxu0 0
    %1974 = vmatpush1.bf16.msra.mxu0 0
    %1975 = vmatprep.subr.bf16.mxu0 0
    %1976 = vmatpush1.bf16.msra.mxu0 0
    %1977 = vmatprep.subr.bf16.mxu0 0
    %1978 = vmatpush1.bf16.msra.mxu0 0
    %1979 = vmatprep.subr.bf16.mxu0 0
    %1980 = vmatpush1.bf16.msra.mxu0 0
    %1981 = vmatprep.subr.bf16.mxu0 0
    %1982 = vmatpush1.bf16.msra.mxu0 0
    %1983 = vmatprep.subr.bf16.mxu0 0
    %1984 = vmatpush1.bf16.msra.mxu0 0
    %1985 = vmatprep.subr.bf16.mxu0 0
    %1986 = vmatpush1.bf16.msra.mxu0 0
    %1987 = vmatprep.subr.bf16.mxu0 0
    %1988 = vmatpush1.bf16.msra.mxu0 0
    %1989 = vmatprep.subr.bf16.mxu0 0
    %1990 = vmatpush1.bf16.msra.mxu0 0
    %1991 = vmatprep.subr.bf16.mxu0 0
    %1992 = vmatpush1.bf16.msra.mxu0 0
    %1993 = vmatprep.mubr.bf16.mxu0 0
    %1994 = vmatmul.mubr.bf16.gmra.mrb[0].mxu0 %v1918
    %v1995 = vpop.f32.mrb[0].mxu0
    %v1996 = vadd.f32 0.0, %v1995
    %v1997 = vpop.f32.mrb[0].mxu0
    %v1998 = vadd.f32 0.0, %v1997
    %v1999 = vpop.f32.mrb[0].mxu0
    %v2000 = vpop.f32.mrb[0].mxu0
    %2001 = vdwg.mxu0
    %s2002 = scalar_lea.vmem [#allocation2], 35
    %v2003 = vld [vmem:[%s2002] ss:$8 sm:$0xf]
    %v2008 = vcombine.low %v1955, %v1957
    %v2009 = vcombine.low %v1996, %v1998
    %v2011 = vunpack.c.l.s4 1966171168
    %v2012 = vunpack.c.0.s8 %v2011
    %v2013 = vlaneseq
    %v2014 = vshrl.u32 %v2013, 7
    %v2015 = vsub.s32 %v2012, %v2014
    %v2016 = vrot.slane %v2008, %v2015
    %v2018 = vunpack.c.l.s4 1966171168
    %v2019 = vunpack.c.0.s8 %v2018
    %v2020 = vlaneseq
    %v2021 = vshrl.u32 %v2020, 7
    %v2022 = vsub.s32 %v2019, %v2021
    %v2023 = vrot.slane %v2009, %v2022
    %v2024 = vcombine.low %v2016, %v2023
    %v2026 = vunpack.c.l.s4 1966171168
    %v2027 = vunpack.c.0.s8 %v2026
    %v2028 = vlaneseq
    %v2029 = vshrl.u32 %v2028, 7
    %v2030 = vsub.s32 %v2027, %v2029
    %v2031 = vrot.slane %v2024, %v2030
    %v2033 = vadd.f32 %v2003, %v2031
    %v2034 = vxor.u32 %v2033, 2147483648
    %v2035 = vmul.f32 %v2034, 1.442695
    %v2036 = vpow.pop %v2035
    %v2037 = vadd.f32 %v2036, 1.0
    %v2038 = vrcp.pop %v2037
    %v2039 = vmul.f32 1.0, %v2038
    %v2041 = vrot.slane %v2033, 1
    %v2043 = vxor.u32 %v2041, 2147483648
    %v2044 = vmul.f32 %v2043, 1.442695
    %v2045 = vpow.pop %v2044
    %v2046 = vadd.f32 %v2045, 1.0
    %v2047 = vrcp.pop %v2046
    %v2048 = vmul.f32 1.0, %v2047
    %v2049 = vrot.slane %v2033, 2
    %v2051 = vtanh.pop %v2049
    %v2052 = vrot.slane %v2033, 3
    %v2054 = vxor.u32 %v2052, 2147483648
    %v2055 = vmul.f32 %v2054, 1.442695
    %v2056 = vpow.pop %v2055
    %v2057 = vadd.f32 %v2056, 1.0
    %v2058 = vrcp.pop %v2057
    %v2059 = vmul.f32 1.0, %v2058
    %v2060 = vmul.f32 %v2048, %v1912
    %v2061 = vmul.f32 %v2039, %v2051
    %v2062 = vadd.f32 %v2060, %v2061
    %v2063 = vtanh.pop %v2062
    %v2064 = vmul.f32 %v2059, %v2063
    %2065 = vst.msk [vmem:[#allocation3 + $0xb] sm:$0x1] %vm414, %v2064
    %v2066 = vpack.c.bf16 %v2064, %v2064
    %v2068 = vsel %vm266, %v2066, 0
    %2070 = vmatprep.subr.bf16.mxu0 %v243
    %2071 = vmatpush1.bf16.msra.mxu0 %v242
    %2072 = vmatprep.subr.bf16.mxu0 %v247
    %2073 = vmatpush1.bf16.msra.mxu0 %v246
    %2074 = vmatprep.subr.bf16.mxu0 %v251
    %2075 = vmatpush1.bf16.msra.mxu0 %v250
    %2076 = vmatprep.subr.bf16.mxu0 0
    %2077 = vmatpush1.bf16.msra.mxu0 0
    %2078 = vmatprep.subr.bf16.mxu0 0
    %2079 = vmatpush1.bf16.msra.mxu0 0
    %2080 = vmatprep.subr.bf16.mxu0 0
    %2081 = vmatpush1.bf16.msra.mxu0 0
    %2082 = vmatprep.subr.bf16.mxu0 0
    %2083 = vmatpush1.bf16.msra.mxu0 0
    %2084 = vmatprep.subr.bf16.mxu0 0
    %2085 = vmatpush1.bf16.msra.mxu0 0
    %2086 = vmatprep.subr.bf16.mxu0 0
    %2087 = vmatpush1.bf16.msra.mxu0 0
    %2088 = vmatprep.subr.bf16.mxu0 0
    %2089 = vmatpush1.bf16.msra.mxu0 0
    %2090 = vmatprep.subr.bf16.mxu0 0
    %2091 = vmatpush1.bf16.msra.mxu0 0
    %2092 = vmatprep.subr.bf16.mxu0 0
    %2093 = vmatpush1.bf16.msra.mxu0 0
    %2094 = vmatprep.subr.bf16.mxu0 0
    %2095 = vmatpush1.bf16.msra.mxu0 0
    %2096 = vmatprep.subr.bf16.mxu0 0
    %2097 = vmatpush1.bf16.msra.mxu0 0
    %2098 = vmatprep.subr.bf16.mxu0 0
    %2099 = vmatpush1.bf16.msra.mxu0 0
    %2100 = vmatprep.subr.bf16.mxu0 0
    %2101 = vmatpush1.bf16.msra.mxu0 0
    %2102 = vmatprep.mubr.bf16.mxu0 0
    %2103 = vmatmul.mubr.bf16.gmra.mrb[0].mxu0 %v2068
    %v2104 = vpop.f32.mrb[0].mxu0
    %v2105 = vadd.f32 0.0, %v2104
    %v2106 = vpop.f32.mrb[0].mxu0
    %v2107 = vadd.f32 0.0, %v2106
    %v2108 = vpop.f32.mrb[0].mxu0
    %v2109 = vpop.f32.mrb[0].mxu0
    %2110 = vdwg.mxu0
    %2111 = vmatprep.subr.bf16.mxu0 %v245
    %2112 = vmatpush1.bf16.msra.mxu0 %v244
    %2113 = vmatprep.subr.bf16.mxu0 %v249
    %2114 = vmatpush1.bf16.msra.mxu0 %v248
    %2115 = vmatprep.subr.bf16.mxu0 %v253
    %2116 = vmatpush1.bf16.msra.mxu0 %v252
    %2117 = vmatprep.subr.bf16.mxu0 0
    %2118 = vmatpush1.bf16.msra.mxu0 0
    %2119 = vmatprep.subr.bf16.mxu0 0
    %2120 = vmatpush1.bf16.msra.mxu0 0
    %2121 = vmatprep.subr.bf16.mxu0 0
    %2122 = vmatpush1.bf16.msra.mxu0 0
    %2123 = vmatprep.subr.bf16.mxu0 0
    %2124 = vmatpush1.bf16.msra.mxu0 0
    %2125 = vmatprep.subr.bf16.mxu0 0
    %2126 = vmatpush1.bf16.msra.mxu0 0
    %2127 = vmatprep.subr.bf16.mxu0 0
    %2128 = vmatpush1.bf16.msra.mxu0 0
    %2129 = vmatprep.subr.bf16.mxu0 0
    %2130 = vmatpush1.bf16.msra.mxu0 0
    %2131 = vmatprep.subr.bf16.mxu0 0
    %2132 = vmatpush1.bf16.msra.mxu0 0
    %2133 = vmatprep.subr.bf16.mxu0 0
    %2134 = vmatpush1.bf16.msra.mxu0 0
    %2135 = vmatprep.subr.bf16.mxu0 0
    %2136 = vmatpush1.bf16.msra.mxu0 0
    %2137 = vmatprep.subr.bf16.mxu0 0
    %2138 = vmatpush1.bf16.msra.mxu0 0
    %2139 = vmatprep.subr.bf16.mxu0 0
    %2140 = vmatpush1.bf16.msra.mxu0 0
    %2141 = vmatprep.subr.bf16.mxu0 0
    %2142 = vmatpush1.bf16.msra.mxu0 0
    %2143 = vmatprep.mubr.bf16.mxu0 0
    %2144 = vmatmul.mubr.bf16.gmra.mrb[0].mxu0 %v2068
    %v2145 = vpop.f32.mrb[0].mxu0
    %v2146 = vadd.f32 0.0, %v2145
    %v2147 = vpop.f32.mrb[0].mxu0
    %v2148 = vadd.f32 0.0, %v2147
    %v2149 = vpop.f32.mrb[0].mxu0
    %v2150 = vpop.f32.mrb[0].mxu0
    %2151 = vdwg.mxu0
    %s2152 = scalar_lea.vmem [#allocation2], 36
    %v2153 = vld [vmem:[%s2152] ss:$8 sm:$0xf]
    %v2158 = vcombine.low %v2105, %v2107
    %v2159 = vcombine.low %v2146, %v2148
    %v2161 = vunpack.c.l.s4 1966171168
    %v2162 = vunpack.c.0.s8 %v2161
    %v2163 = vlaneseq
    %v2164 = vshrl.u32 %v2163, 7
    %v2165 = vsub.s32 %v2162, %v2164
    %v2166 = vrot.slane %v2158, %v2165
    %v2168 = vunpack.c.l.s4 1966171168
    %v2169 = vunpack.c.0.s8 %v2168
    %v2170 = vlaneseq
    %v2171 = vshrl.u32 %v2170, 7
    %v2172 = vsub.s32 %v2169, %v2171
    %v2173 = vrot.slane %v2159, %v2172
    %v2174 = vcombine.low %v2166, %v2173
    %v2176 = vunpack.c.l.s4 1966171168
    %v2177 = vunpack.c.0.s8 %v2176
    %v2178 = vlaneseq
    %v2179 = vshrl.u32 %v2178, 7
    %v2180 = vsub.s32 %v2177, %v2179
    %v2181 = vrot.slane %v2174, %v2180
    %v2183 = vadd.f32 %v2153, %v2181
    %v2184 = vxor.u32 %v2183, 2147483648
    %v2185 = vmul.f32 %v2184, 1.442695
    %v2186 = vpow.pop %v2185
    %v2187 = vadd.f32 %v2186, 1.0
    %v2188 = vrcp.pop %v2187
    %v2189 = vmul.f32 1.0, %v2188
    %v2191 = vrot.slane %v2183, 1
    %v2193 = vxor.u32 %v2191, 2147483648
    %v2194 = vmul.f32 %v2193, 1.442695
    %v2195 = vpow.pop %v2194
    %v2196 = vadd.f32 %v2195, 1.0
    %v2197 = vrcp.pop %v2196
    %v2198 = vmul.f32 1.0, %v2197
    %v2199 = vrot.slane %v2183, 2
    %v2201 = vtanh.pop %v2199
    %v2202 = vrot.slane %v2183, 3
    %v2204 = vxor.u32 %v2202, 2147483648
    %v2205 = vmul.f32 %v2204, 1.442695
    %v2206 = vpow.pop %v2205
    %v2207 = vadd.f32 %v2206, 1.0
    %v2208 = vrcp.pop %v2207
    %v2209 = vmul.f32 1.0, %v2208
    %v2210 = vmul.f32 %v2198, %v2062
    %v2211 = vmul.f32 %v2189, %v2201
    %v2212 = vadd.f32 %v2210, %v2211
    %v2213 = vtanh.pop %v2212
    %v2214 = vmul.f32 %v2209, %v2213
    %2215 = vst.msk [vmem:[#allocation3 + $0xc] sm:$0x1] %vm414, %v2214
    %v2216 = vpack.c.bf16 %v2214, %v2214
    %v2218 = vsel %vm266, %v2216, 0
    %2220 = vmatprep.subr.bf16.mxu0 %v243
    %2221 = vmatpush1.bf16.msra.mxu0 %v242
    %2222 = vmatprep.subr.bf16.mxu0 %v247
    %2223 = vmatpush1.bf16.msra.mxu0 %v246
    %2224 = vmatprep.subr.bf16.mxu0 %v251
    %2225 = vmatpush1.bf16.msra.mxu0 %v250
    %2226 = vmatprep.subr.bf16.mxu0 0
    %2227 = vmatpush1.bf16.msra.mxu0 0
    %2228 = vmatprep.subr.bf16.mxu0 0
    %2229 = vmatpush1.bf16.msra.mxu0 0
    %2230 = vmatprep.subr.bf16.mxu0 0
    %2231 = vmatpush1.bf16.msra.mxu0 0
    %2232 = vmatprep.subr.bf16.mxu0 0
    %2233 = vmatpush1.bf16.msra.mxu0 0
    %2234 = vmatprep.subr.bf16.mxu0 0
    %2235 = vmatpush1.bf16.msra.mxu0 0
    %2236 = vmatprep.subr.bf16.mxu0 0
    %2237 = vmatpush1.bf16.msra.mxu0 0
    %2238 = vmatprep.subr.bf16.mxu0 0
    %2239 = vmatpush1.bf16.msra.mxu0 0
    %2240 = vmatprep.subr.bf16.mxu0 0
    %2241 = vmatpush1.bf16.msra.mxu0 0
    %2242 = vmatprep.subr.bf16.mxu0 0
    %2243 = vmatpush1.bf16.msra.mxu0 0
    %2244 = vmatprep.subr.bf16.mxu0 0
    %2245 = vmatpush1.bf16.msra.mxu0 0
    %2246 = vmatprep.subr.bf16.mxu0 0
    %2247 = vmatpush1.bf16.msra.mxu0 0
    %2248 = vmatprep.subr.bf16.mxu0 0
    %2249 = vmatpush1.bf16.msra.mxu0 0
    %2250 = vmatprep.subr.bf16.mxu0 0
    %2251 = vmatpush1.bf16.msra.mxu0 0
    %2252 = vmatprep.mubr.bf16.mxu0 0
    %2253 = vmatmul.mubr.bf16.gmra.mrb[0].mxu0 %v2218
    %v2254 = vpop.f32.mrb[0].mxu0
    %v2255 = vadd.f32 0.0, %v2254
    %v2256 = vpop.f32.mrb[0].mxu0
    %v2257 = vadd.f32 0.0, %v2256
    %v2258 = vpop.f32.mrb[0].mxu0
    %v2259 = vpop.f32.mrb[0].mxu0
    %2260 = vdwg.mxu0
    %2261 = vmatprep.subr.bf16.mxu0 %v245
    %2262 = vmatpush1.bf16.msra.mxu0 %v244
    %2263 = vmatprep.subr.bf16.mxu0 %v249
    %2264 = vmatpush1.bf16.msra.mxu0 %v248
    %2265 = vmatprep.subr.bf16.mxu0 %v253
    %2266 = vmatpush1.bf16.msra.mxu0 %v252
    %2267 = vmatprep.subr.bf16.mxu0 0
    %2268 = vmatpush1.bf16.msra.mxu0 0
    %2269 = vmatprep.subr.bf16.mxu0 0
    %2270 = vmatpush1.bf16.msra.mxu0 0
    %2271 = vmatprep.subr.bf16.mxu0 0
    %2272 = vmatpush1.bf16.msra.mxu0 0
    %2273 = vmatprep.subr.bf16.mxu0 0
    %2274 = vmatpush1.bf16.msra.mxu0 0
    %2275 = vmatprep.subr.bf16.mxu0 0
    %2276 = vmatpush1.bf16.msra.mxu0 0
    %2277 = vmatprep.subr.bf16.mxu0 0
    %2278 = vmatpush1.bf16.msra.mxu0 0
    %2279 = vmatprep.subr.bf16.mxu0 0
    %2280 = vmatpush1.bf16.msra.mxu0 0
    %2281 = vmatprep.subr.bf16.mxu0 0
    %2282 = vmatpush1.bf16.msra.mxu0 0
    %2283 = vmatprep.subr.bf16.mxu0 0
    %2284 = vmatpush1.bf16.msra.mxu0 0
    %2285 = vmatprep.subr.bf16.mxu0 0
    %2286 = vmatpush1.bf16.msra.mxu0 0
    %2287 = vmatprep.subr.bf16.mxu0 0
    %2288 = vmatpush1.bf16.msra.mxu0 0
    %2289 = vmatprep.subr.bf16.mxu0 0
    %2290 = vmatpush1.bf16.msra.mxu0 0
    %2291 = vmatprep.subr.bf16.mxu0 0
    %2292 = vmatpush1.bf16.msra.mxu0 0
    %2293 = vmatprep.mubr.bf16.mxu0 0
    %2294 = vmatmul.mubr.bf16.gmra.mrb[0].mxu0 %v2218
    %v2295 = vpop.f32.mrb[0].mxu0
    %v2296 = vadd.f32 0.0, %v2295
    %v2297 = vpop.f32.mrb[0].mxu0
    %v2298 = vadd.f32 0.0, %v2297
    %v2299 = vpop.f32.mrb[0].mxu0
    %v2300 = vpop.f32.mrb[0].mxu0
    %2301 = vdwg.mxu0
    %s2302 = scalar_lea.vmem [#allocation2], 37
    %v2303 = vld [vmem:[%s2302] ss:$8 sm:$0xf]
    %v2308 = vcombine.low %v2255, %v2257
    %v2309 = vcombine.low %v2296, %v2298
    %v2311 = vunpack.c.l.s4 1966171168
    %v2312 = vunpack.c.0.s8 %v2311
    %v2313 = vlaneseq
    %v2314 = vshrl.u32 %v2313, 7
    %v2315 = vsub.s32 %v2312, %v2314
    %v2316 = vrot.slane %v2308, %v2315
    %v2318 = vunpack.c.l.s4 1966171168
    %v2319 = vunpack.c.0.s8 %v2318
    %v2320 = vlaneseq
    %v2321 = vshrl.u32 %v2320, 7
    %v2322 = vsub.s32 %v2319, %v2321
    %v2323 = vrot.slane %v2309, %v2322
    %v2324 = vcombine.low %v2316, %v2323
    %v2326 = vunpack.c.l.s4 1966171168
    %v2327 = vunpack.c.0.s8 %v2326
    %v2328 = vlaneseq
    %v2329 = vshrl.u32 %v2328, 7
    %v2330 = vsub.s32 %v2327, %v2329
    %v2331 = vrot.slane %v2324, %v2330
    %v2333 = vadd.f32 %v2303, %v2331
    %v2334 = vxor.u32 %v2333, 2147483648
    %v2335 = vmul.f32 %v2334, 1.442695
    %v2336 = vpow.pop %v2335
    %v2337 = vadd.f32 %v2336, 1.0
    %v2338 = vrcp.pop %v2337
    %v2339 = vmul.f32 1.0, %v2338
    %v2341 = vrot.slane %v2333, 1
    %v2343 = vxor.u32 %v2341, 2147483648
    %v2344 = vmul.f32 %v2343, 1.442695
    %v2345 = vpow.pop %v2344
    %v2346 = vadd.f32 %v2345, 1.0
    %v2347 = vrcp.pop %v2346
    %v2348 = vmul.f32 1.0, %v2347
    %v2349 = vrot.slane %v2333, 2
    %v2351 = vtanh.pop %v2349
    %v2352 = vrot.slane %v2333, 3
    %v2354 = vxor.u32 %v2352, 2147483648
    %v2355 = vmul.f32 %v2354, 1.442695
    %v2356 = vpow.pop %v2355
    %v2357 = vadd.f32 %v2356, 1.0
    %v2358 = vrcp.pop %v2357
    %v2359 = vmul.f32 1.0, %v2358
    %v2360 = vmul.f32 %v2348, %v2212
    %v2361 = vmul.f32 %v2339, %v2351
    %v2362 = vadd.f32 %v2360, %v2361
    %v2363 = vtanh.pop %v2362
    %v2364 = vmul.f32 %v2359, %v2363
    %2365 = vst.msk [vmem:[#allocation3 + $0xd] sm:$0x1] %vm414, %v2364
    %v2366 = vpack.c.bf16 %v2364, %v2364
    %v2368 = vsel %vm266, %v2366, 0
    %2370 = vmatprep.subr.bf16.mxu0 %v243
    %2371 = vmatpush1.bf16.msra.mxu0 %v242
    %2372 = vmatprep.subr.bf16.mxu0 %v247
    %2373 = vmatpush1.bf16.msra.mxu0 %v246
    %2374 = vmatprep.subr.bf16.mxu0 %v251
    %2375 = vmatpush1.bf16.msra.mxu0 %v250
    %2376 = vmatprep.subr.bf16.mxu0 0
    %2377 = vmatpush1.bf16.msra.mxu0 0
    %2378 = vmatprep.subr.bf16.mxu0 0
    %2379 = vmatpush1.bf16.msra.mxu0 0
    %2380 = vmatprep.subr.bf16.mxu0 0
    %2381 = vmatpush1.bf16.msra.mxu0 0
    %2382 = vmatprep.subr.bf16.mxu0 0
    %2383 = vmatpush1.bf16.msra.mxu0 0
    %2384 = vmatprep.subr.bf16.mxu0 0
    %2385 = vmatpush1.bf16.msra.mxu0 0
    %2386 = vmatprep.subr.bf16.mxu0 0
    %2387 = vmatpush1.bf16.msra.mxu0 0
    %2388 = vmatprep.subr.bf16.mxu0 0
    %2389 = vmatpush1.bf16.msra.mxu0 0
    %2390 = vmatprep.subr.bf16.mxu0 0
    %2391 = vmatpush1.bf16.msra.mxu0 0
    %2392 = vmatprep.subr.bf16.mxu0 0
    %2393 = vmatpush1.bf16.msra.mxu0 0
    %2394 = vmatprep.subr.bf16.mxu0 0
    %2395 = vmatpush1.bf16.msra.mxu0 0
    %2396 = vmatprep.subr.bf16.mxu0 0
    %2397 = vmatpush1.bf16.msra.mxu0 0
    %2398 = vmatprep.subr.bf16.mxu0 0
    %2399 = vmatpush1.bf16.msra.mxu0 0
    %2400 = vmatprep.subr.bf16.mxu0 0
    %2401 = vmatpush1.bf16.msra.mxu0 0
    %2402 = vmatprep.mubr.bf16.mxu0 0
    %2403 = vmatmul.mubr.bf16.gmra.mrb[0].mxu0 %v2368
    %v2404 = vpop.f32.mrb[0].mxu0
    %v2405 = vadd.f32 0.0, %v2404
    %v2406 = vpop.f32.mrb[0].mxu0
    %v2407 = vadd.f32 0.0, %v2406
    %v2408 = vpop.f32.mrb[0].mxu0
    %v2409 = vpop.f32.mrb[0].mxu0
    %2410 = vdwg.mxu0
    %2411 = vmatprep.subr.bf16.mxu0 %v245
    %2412 = vmatpush1.bf16.msra.mxu0 %v244
    %2413 = vmatprep.subr.bf16.mxu0 %v249
    %2414 = vmatpush1.bf16.msra.mxu0 %v248
    %2415 = vmatprep.subr.bf16.mxu0 %v253
    %2416 = vmatpush1.bf16.msra.mxu0 %v252
    %2417 = vmatprep.subr.bf16.mxu0 0
    %2418 = vmatpush1.bf16.msra.mxu0 0
    %2419 = vmatprep.subr.bf16.mxu0 0
    %2420 = vmatpush1.bf16.msra.mxu0 0
    %2421 = vmatprep.subr.bf16.mxu0 0
    %2422 = vmatpush1.bf16.msra.mxu0 0
    %2423 = vmatprep.subr.bf16.mxu0 0
    %2424 = vmatpush1.bf16.msra.mxu0 0
    %2425 = vmatprep.subr.bf16.mxu0 0
    %2426 = vmatpush1.bf16.msra.mxu0 0
    %2427 = vmatprep.subr.bf16.mxu0 0
    %2428 = vmatpush1.bf16.msra.mxu0 0
    %2429 = vmatprep.subr.bf16.mxu0 0
    %2430 = vmatpush1.bf16.msra.mxu0 0
    %2431 = vmatprep.subr.bf16.mxu0 0
    %2432 = vmatpush1.bf16.msra.mxu0 0
    %2433 = vmatprep.subr.bf16.mxu0 0
    %2434 = vmatpush1.bf16.msra.mxu0 0
    %2435 = vmatprep.subr.bf16.mxu0 0
    %2436 = vmatpush1.bf16.msra.mxu0 0
    %2437 = vmatprep.subr.bf16.mxu0 0
    %2438 = vmatpush1.bf16.msra.mxu0 0
    %2439 = vmatprep.subr.bf16.mxu0 0
    %2440 = vmatpush1.bf16.msra.mxu0 0
    %2441 = vmatprep.subr.bf16.mxu0 0
    %2442 = vmatpush1.bf16.msra.mxu0 0
    %2443 = vmatprep.mubr.bf16.mxu0 0
    %2444 = vmatmul.mubr.bf16.gmra.mrb[0].mxu0 %v2368
    %v2445 = vpop.f32.mrb[0].mxu0
    %v2446 = vadd.f32 0.0, %v2445
    %v2447 = vpop.f32.mrb[0].mxu0
    %v2448 = vadd.f32 0.0, %v2447
    %v2449 = vpop.f32.mrb[0].mxu0
    %v2450 = vpop.f32.mrb[0].mxu0
    %2451 = vdwg.mxu0
    %s2452 = scalar_lea.vmem [#allocation2], 38
    %v2453 = vld [vmem:[%s2452] ss:$8 sm:$0xf]
    %v2458 = vcombine.low %v2405, %v2407
    %v2459 = vcombine.low %v2446, %v2448
    %v2461 = vunpack.c.l.s4 1966171168
    %v2462 = vunpack.c.0.s8 %v2461
    %v2463 = vlaneseq
    %v2464 = vshrl.u32 %v2463, 7
    %v2465 = vsub.s32 %v2462, %v2464
    %v2466 = vrot.slane %v2458, %v2465
    %v2468 = vunpack.c.l.s4 1966171168
    %v2469 = vunpack.c.0.s8 %v2468
    %v2470 = vlaneseq
    %v2471 = vshrl.u32 %v2470, 7
    %v2472 = vsub.s32 %v2469, %v2471
    %v2473 = vrot.slane %v2459, %v2472
    %v2474 = vcombine.low %v2466, %v2473
    %v2476 = vunpack.c.l.s4 1966171168
    %v2477 = vunpack.c.0.s8 %v2476
    %v2478 = vlaneseq
    %v2479 = vshrl.u32 %v2478, 7
    %v2480 = vsub.s32 %v2477, %v2479
    %v2481 = vrot.slane %v2474, %v2480
    %v2483 = vadd.f32 %v2453, %v2481
    %v2484 = vxor.u32 %v2483, 2147483648
    %v2485 = vmul.f32 %v2484, 1.442695
    %v2486 = vpow.pop %v2485
    %v2487 = vadd.f32 %v2486, 1.0
    %v2488 = vrcp.pop %v2487
    %v2489 = vmul.f32 1.0, %v2488
    %v2491 = vrot.slane %v2483, 1
    %v2493 = vxor.u32 %v2491, 2147483648
    %v2494 = vmul.f32 %v2493, 1.442695
    %v2495 = vpow.pop %v2494
    %v2496 = vadd.f32 %v2495, 1.0
    %v2497 = vrcp.pop %v2496
    %v2498 = vmul.f32 1.0, %v2497
    %v2499 = vrot.slane %v2483, 2
    %v2501 = vtanh.pop %v2499
    %v2502 = vrot.slane %v2483, 3
    %v2504 = vxor.u32 %v2502, 2147483648
    %v2505 = vmul.f32 %v2504, 1.442695
    %v2506 = vpow.pop %v2505
    %v2507 = vadd.f32 %v2506, 1.0
    %v2508 = vrcp.pop %v2507
    %v2509 = vmul.f32 1.0, %v2508
    %v2510 = vmul.f32 %v2498, %v2362
    %v2511 = vmul.f32 %v2489, %v2501
    %v2512 = vadd.f32 %v2510, %v2511
    %v2513 = vtanh.pop %v2512
    %v2514 = vmul.f32 %v2509, %v2513
    %2515 = vst.msk [vmem:[#allocation3 + $0xe] sm:$0x1] %vm414, %v2514
    %v2516 = vpack.c.bf16 %v2514, %v2514
    %v2518 = vsel %vm266, %v2516, 0
    %2520 = vmatprep.subr.bf16.mxu0 %v243
    %2521 = vmatpush1.bf16.msra.mxu0 %v242
    %2522 = vmatprep.subr.bf16.mxu0 %v247
    %2523 = vmatpush1.bf16.msra.mxu0 %v246
    %2524 = vmatprep.subr.bf16.mxu0 %v251
    %2525 = vmatpush1.bf16.msra.mxu0 %v250
    %2526 = vmatprep.subr.bf16.mxu0 0
    %2527 = vmatpush1.bf16.msra.mxu0 0
    %2528 = vmatprep.subr.bf16.mxu0 0
    %2529 = vmatpush1.bf16.msra.mxu0 0
    %2530 = vmatprep.subr.bf16.mxu0 0
    %2531 = vmatpush1.bf16.msra.mxu0 0
    %2532 = vmatprep.subr.bf16.mxu0 0
    %2533 = vmatpush1.bf16.msra.mxu0 0
    %2534 = vmatprep.subr.bf16.mxu0 0
    %2535 = vmatpush1.bf16.msra.mxu0 0
    %2536 = vmatprep.subr.bf16.mxu0 0
    %2537 = vmatpush1.bf16.msra.mxu0 0
    %2538 = vmatprep.subr.bf16.mxu0 0
    %2539 = vmatpush1.bf16.msra.mxu0 0
    %2540 = vmatprep.subr.bf16.mxu0 0
    %2541 = vmatpush1.bf16.msra.mxu0 0
    %2542 = vmatprep.subr.bf16.mxu0 0
    %2543 = vmatpush1.bf16.msra.mxu0 0
    %2544 = vmatprep.subr.bf16.mxu0 0
    %2545 = vmatpush1.bf16.msra.mxu0 0
    %2546 = vmatprep.subr.bf16.mxu0 0
    %2547 = vmatpush1.bf16.msra.mxu0 0
    %2548 = vmatprep.subr.bf16.mxu0 0
    %2549 = vmatpush1.bf16.msra.mxu0 0
    %2550 = vmatprep.subr.bf16.mxu0 0
    %2551 = vmatpush1.bf16.msra.mxu0 0
    %2552 = vmatprep.mubr.bf16.mxu0 0
    %2553 = vmatmul.mubr.bf16.gmra.mrb[0].mxu0 %v2518
    %v2554 = vpop.f32.mrb[0].mxu0
    %v2555 = vadd.f32 0.0, %v2554
    %v2556 = vpop.f32.mrb[0].mxu0
    %v2557 = vadd.f32 0.0, %v2556
    %v2558 = vpop.f32.mrb[0].mxu0
    %v2559 = vpop.f32.mrb[0].mxu0
    %2560 = vdwg.mxu0
    %2561 = vmatprep.subr.bf16.mxu0 %v245
    %2562 = vmatpush1.bf16.msra.mxu0 %v244
    %2563 = vmatprep.subr.bf16.mxu0 %v249
    %2564 = vmatpush1.bf16.msra.mxu0 %v248
    %2565 = vmatprep.subr.bf16.mxu0 %v253
    %2566 = vmatpush1.bf16.msra.mxu0 %v252
    %2567 = vmatprep.subr.bf16.mxu0 0
    %2568 = vmatpush1.bf16.msra.mxu0 0
    %2569 = vmatprep.subr.bf16.mxu0 0
    %2570 = vmatpush1.bf16.msra.mxu0 0
    %2571 = vmatprep.subr.bf16.mxu0 0
    %2572 = vmatpush1.bf16.msra.mxu0 0
    %2573 = vmatprep.subr.bf16.mxu0 0
    %2574 = vmatpush1.bf16.msra.mxu0 0
    %2575 = vmatprep.subr.bf16.mxu0 0
    %2576 = vmatpush1.bf16.msra.mxu0 0
    %2577 = vmatprep.subr.bf16.mxu0 0
    %2578 = vmatpush1.bf16.msra.mxu0 0
    %2579 = vmatprep.subr.bf16.mxu0 0
    %2580 = vmatpush1.bf16.msra.mxu0 0
    %2581 = vmatprep.subr.bf16.mxu0 0
    %2582 = vmatpush1.bf16.msra.mxu0 0
    %2583 = vmatprep.subr.bf16.mxu0 0
    %2584 = vmatpush1.bf16.msra.mxu0 0
    %2585 = vmatprep.subr.bf16.mxu0 0
    %2586 = vmatpush1.bf16.msra.mxu0 0
    %2587 = vmatprep.subr.bf16.mxu0 0
    %2588 = vmatpush1.bf16.msra.mxu0 0
    %2589 = vmatprep.subr.bf16.mxu0 0
    %2590 = vmatpush1.bf16.msra.mxu0 0
    %2591 = vmatprep.subr.bf16.mxu0 0
    %2592 = vmatpush1.bf16.msra.mxu0 0
    %2593 = vmatprep.mubr.bf16.mxu0 0
    %2594 = vmatmul.mubr.bf16.gmra.mrb[0].mxu0 %v2518
    %v2595 = vpop.f32.mrb[0].mxu0
    %v2596 = vadd.f32 0.0, %v2595
    %v2597 = vpop.f32.mrb[0].mxu0
    %v2598 = vadd.f32 0.0, %v2597
    %v2599 = vpop.f32.mrb[0].mxu0
    %v2600 = vpop.f32.mrb[0].mxu0
    %2601 = vdwg.mxu0
    %s2602 = scalar_lea.vmem [#allocation2], 39
    %v2603 = vld [vmem:[%s2602] ss:$8 sm:$0xf]
    %v2608 = vcombine.low %v2555, %v2557
    %v2609 = vcombine.low %v2596, %v2598
    %v2611 = vunpack.c.l.s4 1966171168
    %v2612 = vunpack.c.0.s8 %v2611
    %v2613 = vlaneseq
    %v2614 = vshrl.u32 %v2613, 7
    %v2615 = vsub.s32 %v2612, %v2614
    %v2616 = vrot.slane %v2608, %v2615
    %v2618 = vunpack.c.l.s4 1966171168
    %v2619 = vunpack.c.0.s8 %v2618
    %v2620 = vlaneseq
    %v2621 = vshrl.u32 %v2620, 7
    %v2622 = vsub.s32 %v2619, %v2621
    %v2623 = vrot.slane %v2609, %v2622
    %v2624 = vcombine.low %v2616, %v2623
    %v2626 = vunpack.c.l.s4 1966171168
    %v2627 = vunpack.c.0.s8 %v2626
    %v2628 = vlaneseq
    %v2629 = vshrl.u32 %v2628, 7
    %v2630 = vsub.s32 %v2627, %v2629
    %v2631 = vrot.slane %v2624, %v2630
    %v2633 = vadd.f32 %v2603, %v2631
    %v2634 = vxor.u32 %v2633, 2147483648
    %v2635 = vmul.f32 %v2634, 1.442695
    %v2636 = vpow.pop %v2635
    %v2637 = vadd.f32 %v2636, 1.0
    %v2638 = vrcp.pop %v2637
    %v2639 = vmul.f32 1.0, %v2638
    %v2641 = vrot.slane %v2633, 1
    %v2643 = vxor.u32 %v2641, 2147483648
    %v2644 = vmul.f32 %v2643, 1.442695
    %v2645 = vpow.pop %v2644
    %v2646 = vadd.f32 %v2645, 1.0
    %v2647 = vrcp.pop %v2646
    %v2648 = vmul.f32 1.0, %v2647
    %v2649 = vrot.slane %v2633, 2
    %v2651 = vtanh.pop %v2649
    %v2652 = vrot.slane %v2633, 3
    %v2654 = vxor.u32 %v2652, 2147483648
    %v2655 = vmul.f32 %v2654, 1.442695
    %v2656 = vpow.pop %v2655
    %v2657 = vadd.f32 %v2656, 1.0
    %v2658 = vrcp.pop %v2657
    %v2659 = vmul.f32 1.0, %v2658
    %v2660 = vmul.f32 %v2648, %v2512
    %v2661 = vmul.f32 %v2639, %v2651
    %v2662 = vadd.f32 %v2660, %v2661
    %v2663 = vtanh.pop %v2662
    %v2664 = vmul.f32 %v2659, %v2663
    %2665 = vst.msk [vmem:[#allocation3 + $0xf] sm:$0x1] %vm414, %v2664
    %v2666 = vld [vmem:[#allocation3] sm:$0xff]
    %v2667 = vld [vmem:[#allocation3 + $0x8] sm:$0xff]
    %v2668 = vld [vmem:[#allocation6] sm:$0xff]
    %v2669 = vld [vmem:[#allocation6 + $0x8] sm:$0xff]
    %v2670 = vld [vmem:[#allocation6 + $0x10] sm:$0xff]
    %v2671 = vld [vmem:[#allocation6 + $0x18] sm:$0xff]
    %v2672 = vld [vmem:[#allocation6 + $0x20] sm:$0xff]
    %v2673 = vld [vmem:[#allocation6 + $0x28] sm:$0xff]
    %v2674 = vld [vmem:[#allocation6 + $0x30] sm:$0x1]
    %v2675 = vld [vmem:[#allocation6 + $0x31] sm:$0x1]
    %v2676 = vld [vmem:[#allocation6 + $0x32] sm:$0x1]
    %v2677 = vmax.f32 %v2666, 0.0
    %v2678 = vmax.f32 %v2667, 0.0
    %v2679 = vlaneseq
    %v2680 = vshrl.u32 %v2679, 7
    %v2681 = vsub.s32 0, %v2680
    %v2682 = vrot.slane %v2674, %v2681
    %v2684 = vsel %vm266, %v2677, 0
    %v2687 = vsel %vm266, %v2678, 0
    %2689 = vmatprep.subr.mxu0 0.0
    %2690 = vmatpush1.msra.mxu0 %v2668
    %2691 = vmatprep.subr.mxu0 0.0
    %2692 = vmatpush1.msra.mxu0 %v2669
    %2693 = vmatprep.subr.mxu0 0.0
    %2694 = vmatpush1.msra.mxu0 %v2670
    %2695 = vmatprep.subr.mxu0 0.0
    %2696 = vmatpush1.msra.mxu0 %v2671
    %2697 = vmatprep.subr.mxu0 0.0
    %2698 = vmatpush1.msra.mxu0 %v2672
    %2699 = vmatprep.subr.mxu0 0.0
    %2700 = vmatpush1.msra.mxu0 %v2673
    %2701 = vmatprep.subr.mxu0 0.0
    %2702 = vmatpush1.msra.mxu0 0.0
    %2703 = vmatprep.subr.mxu0 0.0
    %2704 = vmatpush1.msra.mxu0 0.0
    %2705 = vmatprep.subr.mxu0 0.0
    %2706 = vmatpush1.msra.mxu0 0.0
    %2707 = vmatprep.subr.mxu0 0.0
    %2708 = vmatpush1.msra.mxu0 0.0
    %2709 = vmatprep.subr.mxu0 0.0
    %2710 = vmatpush1.msra.mxu0 0.0
    %2711 = vmatprep.subr.mxu0 0.0
    %2712 = vmatpush1.msra.mxu0 0.0
    %2713 = vmatprep.subr.mxu0 0.0
    %2714 = vmatpush1.msra.mxu0 0.0
    %2715 = vmatprep.subr.mxu0 0.0
    %2716 = vmatpush1.msra.mxu0 0.0
    %2717 = vmatprep.subr.mxu0 0.0
    %2718 = vmatpush1.msra.mxu0 0.0
    %2719 = vmatprep.subr.mxu0 0.0
    %2720 = vmatpush1.msra.mxu0 0.0
    %2721 = vmatprep.subr.mxu0 0.0
    %2722 = vmatpush1.msra.mxu0 0.0
    %2723 = vmatprep.subr.mxu0 0.0
    %2724 = vmatpush1.msra.mxu0 0.0
    %2725 = vmatprep.subr.mxu0 0.0
    %2726 = vmatpush1.msra.mxu0 0.0
    %2727 = vmatprep.subr.mxu0 0.0
    %2728 = vmatpush1.msra.mxu0 0.0
    %2729 = vmatprep.subr.mxu0 0.0
    %2730 = vmatpush1.msra.mxu0 0.0
    %2731 = vmatprep.subr.mxu0 0.0
    %2732 = vmatpush1.msra.mxu0 0.0
    %2733 = vmatprep.subr.mxu0 0.0
    %2734 = vmatpush1.msra.mxu0 0.0
    %2735 = vmatprep.subr.mxu0 0.0
    %2736 = vmatpush1.msra.mxu0 0.0
    %2737 = vmatprep.subr.mxu0 0.0
    %2738 = vmatpush1.msra.mxu0 0.0
    %2739 = vmatprep.subr.mxu0 0.0
    %2740 = vmatpush1.msra.mxu0 0.0
    %2741 = vmatprep.subr.mxu0 0.0
    %2742 = vmatpush1.msra.mxu0 0.0
    %2743 = vmatprep.subr.mxu0 0.0
    %2744 = vmatpush1.msra.mxu0 0.0
    %2745 = vmatprep.subr.mxu0 0.0
    %2746 = vmatpush1.msra.mxu0 0.0
    %2747 = vmatprep.subr.mxu0 0.0
    %2748 = vmatpush1.msra.mxu0 0.0
    %2749 = vmatprep.subr.mxu0 0.0
    %2750 = vmatpush1.msra.mxu0 0.0
    %2751 = vmatprep.subr.mxu0 0.0
    %2752 = vmatpush1.msra.mxu0 0.0
    %2753 = vmatprep.mubr.f32.mxu0 0.0
    %2754 = vmatmul.mubr.f32.gmra.mrb[0].mxu0 %v2684
    %v2755 = vpop.f32.mrb[0].mxu0
    %v2756 = vadd.f32 %v2682, %v2755
    %v2757 = vpop.f32.mrb[0].mxu0
    %2758 = vmatprep.mubr.f32.mxu0 0.0
    %2759 = vmatmul.mubr.f32.gmra.mrb[0].mxu0 %v2687
    %v2760 = vpop.f32.mrb[0].mxu0
    %v2761 = vadd.f32 %v2682, %v2760
    %v2762 = vpop.f32.mrb[0].mxu0
    %2763 = vdwg.mxu0
    %v2764 = vmax.f32 %v2756, 0.0
    %v2765 = vmax.f32 %v2761, 0.0
    %v2766 = vlaneseq
    %v2767 = vshrl.u32 %v2766, 7
    %v2768 = vsub.s32 0, %v2767
    %v2769 = vrot.slane %v2675, %v2768
    %v2770 = vmul.f32 %v2764, %v2769
    %v2771 = vmul.f32 %v2765, %v2769
    %vm2772 = vcmask 97280
    %v2773 = vsel %vm2772, %v2770, 0.0
    %2774 = vadd.xlane.f32.xlu0 %v2773
    %v2775 = vpop.xlane.xlu0 %2774
    %v2776 = vsel %vm2772, %v2771, 0.0
    %2777 = vadd.xlane.f32.xlu0 %v2776
    %v2778 = vpop.xlane.xlu0 %2777
    %v2779 = vlaneseq
    %v2780 = vshrl.u32 %v2779, 7
    %v2781 = vsub.s32 0, %v2780
    %v2782 = vrot.slane %v2676, %v2781
    %v2783 = vadd.f32 %v2775, %v2782
    %v2784 = vadd.f32 %v2778, %v2782
    %vm2785 = vcmask 7168
    %2786 = vst.msk [vmem:[%s4] sm:$0xff] %vm2785, %v2783
    %2787 = vst.msk [vmem:[%s4 + $0x8] sm:$0xff] %vm2785, %v2784
    // Predicated region
    $region26: #{tpu_custom_call.1} parent=1 // pred_check
      _
    $region27: #{tpu_custom_call.1} parent=1 // pred_check_branch
      %2789 = sbr.rel (0) target = $region29
    $region28: #{tpu_custom_call.1} parent=1 // pred_region
      _
    $region29: #{tpu_custom_call.1} parent=1 // pred_fallthru
      _
    // Predicated region
    $region30: #{tpu_custom_call.1} parent=1 // pred_check
      _
    $region31: #{tpu_custom_call.1} parent=1 // pred_check_branch
      %2791 = sbr.rel (0) target = $region33
    $region32: #{tpu_custom_call.1} parent=1 // pred_region
      _
    $region33: #{tpu_custom_call.1} parent=1 // pred_fallthru
      _
    %2792 = vsyncpa [#allocation5], 1
    %2793 = vsyncpa [#allocation7], 1

</llo_original>
